<compile_context>
chip_gen: v7x
topology: tpu7x:2x2x1
jax: 0.10.0
libtpu: 0.0.40
codegen_flags: <defaults>
</compile_context>

<pallas_src>
import functools

import jax
import jax.numpy as jnp
from jax.experimental import pallas as pl
from jax.experimental.pallas import tpu as pltpu


def _vmem_capacity_bytes():
    try:
        return int(pltpu.get_tpu_info().vmem_capacity_bytes)
    except Exception:
        return 64 * 1024 * 1024  # conservative (v7x per-core figure)


_VMEM_CAPACITY = _vmem_capacity_bytes()
_VMEM_BUDGET = (_VMEM_CAPACITY * 3) // 4


def _pick_row_tile(H, W, Cin, C2, itemsize, budget_bytes, min_grid_rows):
    """Largest legal input-row tile th whose live VMEM fits the budget.

    Legal: th is a multiple of 8 dividing H, or th == H (full extent).
    Falls back to the smallest legal tile if nothing fits the budget.
    """
    def est(th):
        blocks = itemsize * th * W * (2 * Cin + 16 * C2)   # 2x-buffered x/skip/out
        interm = 56 * th * W                               # f32 temporaries (generous)
        scat = 16 * W * W + 16 * th * th                   # iota-built scatter mats
        return blocks + interm + scat + (2 << 20)          # + slack

    cands = sorted({t for t in range(8, H + 1, 8) if H % t == 0} | {H})
    fits = [t for t in cands if est(t) <= budget_bytes]
    pref = [t for t in fits if (H // t) >= min_grid_rows]
    if pref:
        return max(pref)
    if fits:
        return max(fits)
    return min(cands)


def _fused_kernel(x_ref, skip_ref, wup_ref, bup_ref, wsk_ref, bsk_ref, o_ref,
                  *, Cin, Cout, th, W):
    """One (batch, row-tile) block of the fused ResidualUpsample forward.

    x_ref:    (1, Cin, th,   W )   VMEM   input rows  [i*th, (i+1)*th)
    skip_ref: (1, 2C,  2*th, 2W)   VMEM   skip rows   [2*i*th, 2*(i+1)*th)
    wup_ref:  (Cin*Cout*4,)        SMEM   ConvTranspose2d weight (flat)
    bup_ref:  (Cout,)              SMEM
    wsk_ref:  (Cout*2C,)           SMEM   1x1-conv weight (flat)
    bsk_ref:  (Cout,)              SMEM
    o_ref:    (1, 2C, 2*th, 2W)    VMEM   output rows [2*i*th, 2*(i+1)*th)
    """
    f32 = jnp.float32
    C2 = 2 * Cout
    th2 = 2 * th
    W2 = 2 * W

    # Exact 0/1 scatter matrices, built in VMEM from iota compares.
    lane = jax.lax.broadcasted_iota(jnp.int32, (W, W2), 1)
    col = jax.lax.broadcasted_iota(jnp.int32, (W, W2), 0)
    s0 = (lane == 2 * col).astype(f32)           # input col w -> output lane 2w
    s1 = (lane == 2 * col + 1).astype(f32)       # input col w -> output lane 2w+1
    orow = jax.lax.broadcasted_iota(jnp.int32, (th2, th), 0)
    irow = jax.lax.broadcasted_iota(jnp.int32, (th2, th), 1)
    p0 = (orow == 2 * irow).astype(f32)          # input row h -> output row 2h
    p1 = (orow == 2 * irow + 1).astype(f32)      # input row h -> output row 2h+1

    # ---- ConvTranspose2d(k=2, s=2): output channels [0, Cout) -------------
    # out[co, 2h+kh, 2w+kw] = sum_ci x[ci,h,w] * w_up[ci,co,kh,kw] + b_up[co]
    for co in range(Cout):
        rows = []
        for kh in range(2):
            xv = x_ref[0, 0].astype(f32)                     # (th, W)
            base = ((0 * Cout + co) * 2 + kh) * 2
            r0 = wup_ref[base + 0] * xv                      # kw = 0 partial
            r1 = wup_ref[base + 1] * xv                      # kw = 1 partial
            for ci in range(1, Cin):
                xv = x_ref[0, ci].astype(f32)                # re-read; no hoisting
                base = ((ci * Cout + co) * 2 + kh) * 2
                r0 = r0 + wup_ref[base + 0] * xv
                r1 = r1 + wup_ref[base + 1] * xv
            # Lane interleave (w, kw) -> 2w+kw via constant scatter matmuls.
            rows.append(jnp.dot(r0, s0, preferred_element_type=f32)
                        + jnp.dot(r1, s1, preferred_element_type=f32))  # (th, 2W)
        # Row interleave (h, kh) -> 2h+kh via constant scatter matmuls,
        # then one full-plane lane-dense store.
        plane = (jnp.dot(p0, rows[0], preferred_element_type=f32)
                 + jnp.dot(p1, rows[1], preferred_element_type=f32)
                 + bup_ref[co])                                         # (2th, 2W)
        o_ref[0, co] = plane.astype(o_ref.dtype)

    # ---- Conv2d 1x1 on the skip connection: channels [Cout, 2*Cout) -------
    for co in range(Cout):
        acc = wsk_ref[co * C2 + 0] * skip_ref[0, 0].astype(f32)        # (2th, 2W)
        for c in range(1, C2):
            acc = acc + wsk_ref[co * C2 + c] * skip_ref[0, c].astype(f32)
        o_ref[0, Cout + co] = (acc + bsk_ref[co]).astype(o_ref.dtype)


def residual_upsample(x, skip, w_up, b_up, w_skip, b_skip):
    """
    x:      (B, Cin,    H,  W )
    skip:   (B, 2*Cout, 2H, 2W)
    w_up:   (Cin, Cout, 2, 2)      -- nn.ConvTranspose2d weight layout
    b_up:   (Cout,)
    w_skip: (Cout, 2*Cout, 1, 1)   -- nn.Conv2d weight layout
    b_skip: (Cout,)
    returns (B, 2*Cout, 2H, 2W)    -- NCHW, matching the PyTorch module
    """
    B, Cin, H, W = x.shape
    Cout = w_up.shape[1]
    C2 = 2 * Cout
    assert skip.shape == (B, C2, 2 * H, 2 * W), skip.shape
    out_dtype = x.dtype
    W2 = 2 * W

    itemsize = jnp.dtype(x.dtype).itemsize
    min_rows = 2 if B < 2 else 1         # keep >=2 parallel grid steps (v7x: 2 TCs)
    th = _pick_row_tile(H, W, Cin, C2, itemsize, _VMEM_BUDGET, min_rows)
    grid = (B, H // th)

    # Flat parameter vectors for SMEM scalar access inside the kernel.
    w_up_flat = w_up.reshape(-1).astype(jnp.float32)      # ((ci*Cout+co)*2+kh)*2+kw
    w_skip_flat = w_skip.reshape(-1).astype(jnp.float32)  # co*2Cout + c
    b_up_f = b_up.astype(jnp.float32)
    b_skip_f = b_skip.astype(jnp.float32)

    kernel = functools.partial(_fused_kernel, Cin=Cin, Cout=Cout, th=th, W=W)

    return pl.pallas_call(
        kernel,
        out_shape=jax.ShapeDtypeStruct((B, C2, 2 * H, W2), out_dtype),
        grid=grid,
        in_specs=[
            pl.BlockSpec((1, Cin, th, W), lambda b, i: (b, 0, i, 0)),
            pl.BlockSpec((1, C2, 2 * th, W2), lambda b, i: (b, 0, i, 0)),
            pl.BlockSpec(memory_space=pltpu.MemorySpace.SMEM),   # w_up (flat)
            pl.BlockSpec(memory_space=pltpu.MemorySpace.SMEM),   # b_up
            pl.BlockSpec(memory_space=pltpu.MemorySpace.SMEM),   # w_skip (flat)
            pl.BlockSpec(memory_space=pltpu.MemorySpace.SMEM),   # b_skip
        ],
        out_specs=pl.BlockSpec((1, C2, 2 * th, W2), lambda b, i: (b, 0, i, 0)),
        compiler_params=pltpu.CompilerParams(
            dimension_semantics=("parallel", "parallel"),
            vmem_limit_bytes=int(_VMEM_BUDGET)),
    )(x, skip, w_up_flat, b_up_f, w_skip_flat, b_skip_f)


residual_upsample = jax.jit(residual_upsample)


# ---------------------------------------------------------------------------
# Pure-JAX reference (direct translation of the PyTorch math) for validation
# ---------------------------------------------------------------------------
def _reference(x, skip, w_up, b_up, w_skip, b_skip):
    B, Cin, H, W = x.shape
    Cout = w_up.shape[1]
    # ConvTranspose2d k=2 s=2
    t = jnp.einsum("bchw,cokl->bohkwl", x, w_up)        # (B,Cout,H,kh,W,kw)
    up = t.reshape(B, Cout, 2 * H, 2 * W) + b_up[None, :, None, None]
    # Conv2d 1x1
    sk = jnp.einsum("bchw,oc->bohw", skip, w_skip.reshape(Cout, -1))
    sk = sk + b_skip[None, :, None, None]
    return jnp.concatenate([up, sk], axis=1)


if __name__ == "__main__":
    B, Cin, Cout, H, W = 2, 8, 4, 16, 16

    key = jax.random.PRNGKey(0)
    k1, k2, k3, k4, k5, k6 = jax.random.split(key, 6)

    x = jax.random.normal(k1, (B, Cin, H, W), dtype=jnp.float32)
    skip = jax.random.normal(k2, (B, 2 * Cout, 2 * H, 2 * W), dtype=jnp.float32)

    # deterministic synthetic parameters (shapes match the nn.Module __init__)
    w_up = 0.1 * jax.random.normal(k3, (Cin, Cout, 2, 2), dtype=jnp.float32)
    b_up = 0.1 * jax.random.normal(k4, (Cout,), dtype=jnp.float32)
    w_skip = 0.1 * jax.random.normal(k5, (Cout, 2 * Cout, 1, 1), dtype=jnp.float32)
    b_skip = 0.1 * jax.random.normal(k6, (Cout,), dtype=jnp.float32)

    out = jax.block_until_ready(
        residual_upsample(x, skip, w_up, b_up, w_skip, b_skip))

    ref = _reference(x, skip, w_up, b_up, w_skip, b_skip)
    assert out.shape == (B, 2 * Cout, 2 * H, 2 * W), out.shape
    assert out.dtype == x.dtype, out.dtype
    assert jnp.allclose(out, ref, atol=1e-5, rtol=1e-5), "mismatch vs reference"

    print("KERNEL_OK")
</pallas_src>

<mosaic_0001>
module attributes {stable_mosaic.version = 11 : i64} {
  func.func @_fused_kernel(%arg0: i32, %arg1: i32, %arg2: memref<1x8x16x16xf32, #tpu.memory_space<vmem>>, %arg3: memref<1x8x32x32xf32, #tpu.memory_space<vmem>>, %arg4: memref<128xf32, #tpu.memory_space<smem>>, %arg5: memref<4xf32, #tpu.memory_space<smem>>, %arg6: memref<32xf32, #tpu.memory_space<smem>>, %arg7: memref<4xf32, #tpu.memory_space<smem>>, %arg8: memref<1x8x32x32xf32, #tpu.memory_space<vmem>>) attributes {dimension_semantics = [#tpu.dimension_semantics<parallel>, #tpu.dimension_semantics<parallel>], iteration_bounds = array<i64: 2, 1>, scalar_prefetch = 0 : i64, scratch_operands = 0 : i64, tpu.core_type = #tpu.core_type<tc>, window_params = [{transform_indices = @transform_0, window_bounds = array<i64: 1, 8, 16, 16>}, {transform_indices = @transform_1, window_bounds = array<i64: 1, 8, 32, 32>}, {transform_indices = @transform_2, window_bounds = array<i64: 128>}, {transform_indices = @transform_3, window_bounds = array<i64: 4>}, {transform_indices = @transform_4, window_bounds = array<i64: 32>}, {transform_indices = @transform_5, window_bounds = array<i64: 4>}, {transform_indices = @transform_6, window_bounds = array<i64: 1, 8, 32, 32>}]} {
    %0 = tpu.iota {dimensions = array<i32: 1>} : vector<16x32xi32>
    %1 = tpu.iota {dimensions = array<i32: 0>} : vector<16x32xi32>
    %c2_i32 = arith.constant 2 : i32
    %2 = vector.broadcast %c2_i32 : i32 to vector<16x32xi32>
    %3 = arith.muli %2, %1 : vector<16x32xi32>
    %4 = arith.cmpi eq, %0, %3 : vector<16x32xi32>
    %5 = arith.extui %4 : vector<16x32xi1> to vector<16x32xi32>
    %6 = arith.sitofp %5 : vector<16x32xi32> to vector<16x32xf32>
    %c2_i32_0 = arith.constant 2 : i32
    %7 = vector.broadcast %c2_i32_0 : i32 to vector<16x32xi32>
    %8 = arith.muli %7, %1 : vector<16x32xi32>
    %c1_i32 = arith.constant 1 : i32
    %9 = vector.broadcast %c1_i32 : i32 to vector<16x32xi32>
    %10 = arith.addi %8, %9 : vector<16x32xi32>
    %11 = arith.cmpi eq, %0, %10 : vector<16x32xi32>
    %12 = arith.extui %11 : vector<16x32xi1> to vector<16x32xi32>
    %13 = arith.sitofp %12 : vector<16x32xi32> to vector<16x32xf32>
    %14 = tpu.iota {dimensions = array<i32: 0>} : vector<32x16xi32>
    %15 = tpu.iota {dimensions = array<i32: 1>} : vector<32x16xi32>
    %c2_i32_1 = arith.constant 2 : i32
    %16 = vector.broadcast %c2_i32_1 : i32 to vector<32x16xi32>
    %17 = arith.muli %16, %15 : vector<32x16xi32>
    %18 = arith.cmpi eq, %14, %17 : vector<32x16xi32>
    %19 = arith.extui %18 : vector<32x16xi1> to vector<32x16xi32>
    %20 = arith.sitofp %19 : vector<32x16xi32> to vector<32x16xf32>
    %c2_i32_2 = arith.constant 2 : i32
    %21 = vector.broadcast %c2_i32_2 : i32 to vector<32x16xi32>
    %22 = arith.muli %21, %15 : vector<32x16xi32>
    %c1_i32_3 = arith.constant 1 : i32
    %23 = vector.broadcast %c1_i32_3 : i32 to vector<32x16xi32>
    %24 = arith.addi %22, %23 : vector<32x16xi32>
    %25 = arith.cmpi eq, %14, %24 : vector<32x16xi32>
    %26 = arith.extui %25 : vector<32x16xi1> to vector<32x16xi32>
    %27 = arith.sitofp %26 : vector<32x16xi32> to vector<32x16xf32>
    %c0 = arith.constant 0 : index
    %c0_4 = arith.constant 0 : index
    %c0_5 = arith.constant 0 : index
    %c0_6 = arith.constant 0 : index
    %28 = vector.load %arg2[%c0, %c0_4, %c0_5, %c0_6] : memref<1x8x16x16xf32, #tpu.memory_space<vmem>>, vector<1x1x16x16xf32>
    %29 = vector.shape_cast %28 : vector<1x1x16x16xf32> to vector<16x16xf32>
    %c0_7 = arith.constant 0 : index
    %30 = memref.load %arg4[%c0_7] : memref<128xf32, #tpu.memory_space<smem>>
    %31 = vector.broadcast %30 : f32 to vector<16x16xf32>
    %32 = arith.mulf %31, %29 : vector<16x16xf32>
    %c1 = arith.constant 1 : index
    %33 = memref.load %arg4[%c1] : memref<128xf32, #tpu.memory_space<smem>>
    %34 = vector.broadcast %33 : f32 to vector<16x16xf32>
    %35 = arith.mulf %34, %29 : vector<16x16xf32>
    %c0_8 = arith.constant 0 : index
    %c1_9 = arith.constant 1 : index
    %c0_10 = arith.constant 0 : index
    %c0_11 = arith.constant 0 : index
    %36 = vector.load %arg2[%c0_8, %c1_9, %c0_10, %c0_11] : memref<1x8x16x16xf32, #tpu.memory_space<vmem>>, vector<1x1x16x16xf32>
    %37 = vector.shape_cast %36 : vector<1x1x16x16xf32> to vector<16x16xf32>
    %c16 = arith.constant 16 : index
    %38 = memref.load %arg4[%c16] : memref<128xf32, #tpu.memory_space<smem>>
    %39 = vector.broadcast %38 : f32 to vector<16x16xf32>
    %40 = arith.mulf %39, %37 : vector<16x16xf32>
    %41 = arith.addf %32, %40 : vector<16x16xf32>
    %c17 = arith.constant 17 : index
    %42 = memref.load %arg4[%c17] : memref<128xf32, #tpu.memory_space<smem>>
    %43 = vector.broadcast %42 : f32 to vector<16x16xf32>
    %44 = arith.mulf %43, %37 : vector<16x16xf32>
    %45 = arith.addf %35, %44 : vector<16x16xf32>
    %c0_12 = arith.constant 0 : index
    %c2 = arith.constant 2 : index
    %c0_13 = arith.constant 0 : index
    %c0_14 = arith.constant 0 : index
    %46 = vector.load %arg2[%c0_12, %c2, %c0_13, %c0_14] : memref<1x8x16x16xf32, #tpu.memory_space<vmem>>, vector<1x1x16x16xf32>
    %47 = vector.shape_cast %46 : vector<1x1x16x16xf32> to vector<16x16xf32>
    %c32 = arith.constant 32 : index
    %48 = memref.load %arg4[%c32] : memref<128xf32, #tpu.memory_space<smem>>
    %49 = vector.broadcast %48 : f32 to vector<16x16xf32>
    %50 = arith.mulf %49, %47 : vector<16x16xf32>
    %51 = arith.addf %41, %50 : vector<16x16xf32>
    %c33 = arith.constant 33 : index
    %52 = memref.load %arg4[%c33] : memref<128xf32, #tpu.memory_space<smem>>
    %53 = vector.broadcast %52 : f32 to vector<16x16xf32>
    %54 = arith.mulf %53, %47 : vector<16x16xf32>
    %55 = arith.addf %45, %54 : vector<16x16xf32>
    %c0_15 = arith.constant 0 : index
    %c3 = arith.constant 3 : index
    %c0_16 = arith.constant 0 : index
    %c0_17 = arith.constant 0 : index
    %56 = vector.load %arg2[%c0_15, %c3, %c0_16, %c0_17] : memref<1x8x16x16xf32, #tpu.memory_space<vmem>>, vector<1x1x16x16xf32>
    %57 = vector.shape_cast %56 : vector<1x1x16x16xf32> to vector<16x16xf32>
    %c48 = arith.constant 48 : index
    %58 = memref.load %arg4[%c48] : memref<128xf32, #tpu.memory_space<smem>>
    %59 = vector.broadcast %58 : f32 to vector<16x16xf32>
    %60 = arith.mulf %59, %57 : vector<16x16xf32>
    %61 = arith.addf %51, %60 : vector<16x16xf32>
    %c49 = arith.constant 49 : index
    %62 = memref.load %arg4[%c49] : memref<128xf32, #tpu.memory_space<smem>>
    %63 = vector.broadcast %62 : f32 to vector<16x16xf32>
    %64 = arith.mulf %63, %57 : vector<16x16xf32>
    %65 = arith.addf %55, %64 : vector<16x16xf32>
    %c0_18 = arith.constant 0 : index
    %c4 = arith.constant 4 : index
    %c0_19 = arith.constant 0 : index
    %c0_20 = arith.constant 0 : index
    %66 = vector.load %arg2[%c0_18, %c4, %c0_19, %c0_20] : memref<1x8x16x16xf32, #tpu.memory_space<vmem>>, vector<1x1x16x16xf32>
    %67 = vector.shape_cast %66 : vector<1x1x16x16xf32> to vector<16x16xf32>
    %c64 = arith.constant 64 : index
    %68 = memref.load %arg4[%c64] : memref<128xf32, #tpu.memory_space<smem>>
    %69 = vector.broadcast %68 : f32 to vector<16x16xf32>
    %70 = arith.mulf %69, %67 : vector<16x16xf32>
    %71 = arith.addf %61, %70 : vector<16x16xf32>
    %c65 = arith.constant 65 : index
    %72 = memref.load %arg4[%c65] : memref<128xf32, #tpu.memory_space<smem>>
    %73 = vector.broadcast %72 : f32 to vector<16x16xf32>
    %74 = arith.mulf %73, %67 : vector<16x16xf32>
    %75 = arith.addf %65, %74 : vector<16x16xf32>
    %c0_21 = arith.constant 0 : index
    %c5 = arith.constant 5 : index
    %c0_22 = arith.constant 0 : index
    %c0_23 = arith.constant 0 : index
    %76 = vector.load %arg2[%c0_21, %c5, %c0_22, %c0_23] : memref<1x8x16x16xf32, #tpu.memory_space<vmem>>, vector<1x1x16x16xf32>
    %77 = vector.shape_cast %76 : vector<1x1x16x16xf32> to vector<16x16xf32>
    %c80 = arith.constant 80 : index
    %78 = memref.load %arg4[%c80] : memref<128xf32, #tpu.memory_space<smem>>
    %79 = vector.broadcast %78 : f32 to vector<16x16xf32>
    %80 = arith.mulf %79, %77 : vector<16x16xf32>
    %81 = arith.addf %71, %80 : vector<16x16xf32>
    %c81 = arith.constant 81 : index
    %82 = memref.load %arg4[%c81] : memref<128xf32, #tpu.memory_space<smem>>
    %83 = vector.broadcast %82 : f32 to vector<16x16xf32>
    %84 = arith.mulf %83, %77 : vector<16x16xf32>
    %85 = arith.addf %75, %84 : vector<16x16xf32>
    %c0_24 = arith.constant 0 : index
    %c6 = arith.constant 6 : index
    %c0_25 = arith.constant 0 : index
    %c0_26 = arith.constant 0 : index
    %86 = vector.load %arg2[%c0_24, %c6, %c0_25, %c0_26] : memref<1x8x16x16xf32, #tpu.memory_space<vmem>>, vector<1x1x16x16xf32>
    %87 = vector.shape_cast %86 : vector<1x1x16x16xf32> to vector<16x16xf32>
    %c96 = arith.constant 96 : index
    %88 = memref.load %arg4[%c96] : memref<128xf32, #tpu.memory_space<smem>>
    %89 = vector.broadcast %88 : f32 to vector<16x16xf32>
    %90 = arith.mulf %89, %87 : vector<16x16xf32>
    %91 = arith.addf %81, %90 : vector<16x16xf32>
    %c97 = arith.constant 97 : index
    %92 = memref.load %arg4[%c97] : memref<128xf32, #tpu.memory_space<smem>>
    %93 = vector.broadcast %92 : f32 to vector<16x16xf32>
    %94 = arith.mulf %93, %87 : vector<16x16xf32>
    %95 = arith.addf %85, %94 : vector<16x16xf32>
    %c0_27 = arith.constant 0 : index
    %c7 = arith.constant 7 : index
    %c0_28 = arith.constant 0 : index
    %c0_29 = arith.constant 0 : index
    %96 = vector.load %arg2[%c0_27, %c7, %c0_28, %c0_29] : memref<1x8x16x16xf32, #tpu.memory_space<vmem>>, vector<1x1x16x16xf32>
    %97 = vector.shape_cast %96 : vector<1x1x16x16xf32> to vector<16x16xf32>
    %c112 = arith.constant 112 : index
    %98 = memref.load %arg4[%c112] : memref<128xf32, #tpu.memory_space<smem>>
    %99 = vector.broadcast %98 : f32 to vector<16x16xf32>
    %100 = arith.mulf %99, %97 : vector<16x16xf32>
    %101 = arith.addf %91, %100 : vector<16x16xf32>
    %c113 = arith.constant 113 : index
    %102 = memref.load %arg4[%c113] : memref<128xf32, #tpu.memory_space<smem>>
    %103 = vector.broadcast %102 : f32 to vector<16x16xf32>
    %104 = arith.mulf %103, %97 : vector<16x16xf32>
    %105 = arith.addf %95, %104 : vector<16x16xf32>
    %cst = arith.constant dense<0.000000e+00> : vector<16x32xf32>
    %106 = tpu.matmul %101, %6, %cst {dimension_numbers = #tpu.dot_dimension_numbers<[1], [0], [0], [1], [0, 0, 1, 1], [], []>} : vector<16x16xf32>, vector<16x32xf32>, vector<16x32xf32> -> vector<16x32xf32>
    %cst_30 = arith.constant dense<0.000000e+00> : vector<16x32xf32>
    %107 = tpu.matmul %105, %13, %cst_30 {dimension_numbers = #tpu.dot_dimension_numbers<[1], [0], [0], [1], [0, 0, 1, 1], [], []>} : vector<16x16xf32>, vector<16x32xf32>, vector<16x32xf32> -> vector<16x32xf32>
    %108 = arith.addf %106, %107 : vector<16x32xf32>
    %c0_31 = arith.constant 0 : index
    %c0_32 = arith.constant 0 : index
    %c0_33 = arith.constant 0 : index
    %c0_34 = arith.constant 0 : index
    %109 = vector.load %arg2[%c0_31, %c0_32, %c0_33, %c0_34] : memref<1x8x16x16xf32, #tpu.memory_space<vmem>>, vector<1x1x16x16xf32>
    %110 = vector.shape_cast %109 : vector<1x1x16x16xf32> to vector<16x16xf32>
    %c2_35 = arith.constant 2 : index
    %111 = memref.load %arg4[%c2_35] : memref<128xf32, #tpu.memory_space<smem>>
    %112 = vector.broadcast %111 : f32 to vector<16x16xf32>
    %113 = arith.mulf %112, %110 : vector<16x16xf32>
    %c3_36 = arith.constant 3 : index
    %114 = memref.load %arg4[%c3_36] : memref<128xf32, #tpu.memory_space<smem>>
    %115 = vector.broadcast %114 : f32 to vector<16x16xf32>
    %116 = arith.mulf %115, %110 : vector<16x16xf32>
    %c0_37 = arith.constant 0 : index
    %c1_38 = arith.constant 1 : index
    %c0_39 = arith.constant 0 : index
    %c0_40 = arith.constant 0 : index
    %117 = vector.load %arg2[%c0_37, %c1_38, %c0_39, %c0_40] : memref<1x8x16x16xf32, #tpu.memory_space<vmem>>, vector<1x1x16x16xf32>
    %118 = vector.shape_cast %117 : vector<1x1x16x16xf32> to vector<16x16xf32>
    %c18 = arith.constant 18 : index
    %119 = memref.load %arg4[%c18] : memref<128xf32, #tpu.memory_space<smem>>
    %120 = vector.broadcast %119 : f32 to vector<16x16xf32>
    %121 = arith.mulf %120, %118 : vector<16x16xf32>
    %122 = arith.addf %113, %121 : vector<16x16xf32>
    %c19 = arith.constant 19 : index
    %123 = memref.load %arg4[%c19] : memref<128xf32, #tpu.memory_space<smem>>
    %124 = vector.broadcast %123 : f32 to vector<16x16xf32>
    %125 = arith.mulf %124, %118 : vector<16x16xf32>
    %126 = arith.addf %116, %125 : vector<16x16xf32>
    %c0_41 = arith.constant 0 : index
    %c2_42 = arith.constant 2 : index
    %c0_43 = arith.constant 0 : index
    %c0_44 = arith.constant 0 : index
    %127 = vector.load %arg2[%c0_41, %c2_42, %c0_43, %c0_44] : memref<1x8x16x16xf32, #tpu.memory_space<vmem>>, vector<1x1x16x16xf32>
    %128 = vector.shape_cast %127 : vector<1x1x16x16xf32> to vector<16x16xf32>
    %c34 = arith.constant 34 : index
    %129 = memref.load %arg4[%c34] : memref<128xf32, #tpu.memory_space<smem>>
    %130 = vector.broadcast %129 : f32 to vector<16x16xf32>
    %131 = arith.mulf %130, %128 : vector<16x16xf32>
    %132 = arith.addf %122, %131 : vector<16x16xf32>
    %c35 = arith.constant 35 : index
    %133 = memref.load %arg4[%c35] : memref<128xf32, #tpu.memory_space<smem>>
    %134 = vector.broadcast %133 : f32 to vector<16x16xf32>
    %135 = arith.mulf %134, %128 : vector<16x16xf32>
    %136 = arith.addf %126, %135 : vector<16x16xf32>
    %c0_45 = arith.constant 0 : index
    %c3_46 = arith.constant 3 : index
    %c0_47 = arith.constant 0 : index
    %c0_48 = arith.constant 0 : index
    %137 = vector.load %arg2[%c0_45, %c3_46, %c0_47, %c0_48] : memref<1x8x16x16xf32, #tpu.memory_space<vmem>>, vector<1x1x16x16xf32>
    %138 = vector.shape_cast %137 : vector<1x1x16x16xf32> to vector<16x16xf32>
    %c50 = arith.constant 50 : index
    %139 = memref.load %arg4[%c50] : memref<128xf32, #tpu.memory_space<smem>>
    %140 = vector.broadcast %139 : f32 to vector<16x16xf32>
    %141 = arith.mulf %140, %138 : vector<16x16xf32>
    %142 = arith.addf %132, %141 : vector<16x16xf32>
    %c51 = arith.constant 51 : index
    %143 = memref.load %arg4[%c51] : memref<128xf32, #tpu.memory_space<smem>>
    %144 = vector.broadcast %143 : f32 to vector<16x16xf32>
    %145 = arith.mulf %144, %138 : vector<16x16xf32>
    %146 = arith.addf %136, %145 : vector<16x16xf32>
    %c0_49 = arith.constant 0 : index
    %c4_50 = arith.constant 4 : index
    %c0_51 = arith.constant 0 : index
    %c0_52 = arith.constant 0 : index
    %147 = vector.load %arg2[%c0_49, %c4_50, %c0_51, %c0_52] : memref<1x8x16x16xf32, #tpu.memory_space<vmem>>, vector<1x1x16x16xf32>
    %148 = vector.shape_cast %147 : vector<1x1x16x16xf32> to vector<16x16xf32>
    %c66 = arith.constant 66 : index
    %149 = memref.load %arg4[%c66] : memref<128xf32, #tpu.memory_space<smem>>
    %150 = vector.broadcast %149 : f32 to vector<16x16xf32>
    %151 = arith.mulf %150, %148 : vector<16x16xf32>
    %152 = arith.addf %142, %151 : vector<16x16xf32>
    %c67 = arith.constant 67 : index
    %153 = memref.load %arg4[%c67] : memref<128xf32, #tpu.memory_space<smem>>
    %154 = vector.broadcast %153 : f32 to vector<16x16xf32>
    %155 = arith.mulf %154, %148 : vector<16x16xf32>
    %156 = arith.addf %146, %155 : vector<16x16xf32>
    %c0_53 = arith.constant 0 : index
    %c5_54 = arith.constant 5 : index
    %c0_55 = arith.constant 0 : index
    %c0_56 = arith.constant 0 : index
    %157 = vector.load %arg2[%c0_53, %c5_54, %c0_55, %c0_56] : memref<1x8x16x16xf32, #tpu.memory_space<vmem>>, vector<1x1x16x16xf32>
    %158 = vector.shape_cast %157 : vector<1x1x16x16xf32> to vector<16x16xf32>
    %c82 = arith.constant 82 : index
    %159 = memref.load %arg4[%c82] : memref<128xf32, #tpu.memory_space<smem>>
    %160 = vector.broadcast %159 : f32 to vector<16x16xf32>
    %161 = arith.mulf %160, %158 : vector<16x16xf32>
    %162 = arith.addf %152, %161 : vector<16x16xf32>
    %c83 = arith.constant 83 : index
    %163 = memref.load %arg4[%c83] : memref<128xf32, #tpu.memory_space<smem>>
    %164 = vector.broadcast %163 : f32 to vector<16x16xf32>
    %165 = arith.mulf %164, %158 : vector<16x16xf32>
    %166 = arith.addf %156, %165 : vector<16x16xf32>
    %c0_57 = arith.constant 0 : index
    %c6_58 = arith.constant 6 : index
    %c0_59 = arith.constant 0 : index
    %c0_60 = arith.constant 0 : index
    %167 = vector.load %arg2[%c0_57, %c6_58, %c0_59, %c0_60] : memref<1x8x16x16xf32, #tpu.memory_space<vmem>>, vector<1x1x16x16xf32>
    %168 = vector.shape_cast %167 : vector<1x1x16x16xf32> to vector<16x16xf32>
    %c98 = arith.constant 98 : index
    %169 = memref.load %arg4[%c98] : memref<128xf32, #tpu.memory_space<smem>>
    %170 = vector.broadcast %169 : f32 to vector<16x16xf32>
    %171 = arith.mulf %170, %168 : vector<16x16xf32>
    %172 = arith.addf %162, %171 : vector<16x16xf32>
    %c99 = arith.constant 99 : index
    %173 = memref.load %arg4[%c99] : memref<128xf32, #tpu.memory_space<smem>>
    %174 = vector.broadcast %173 : f32 to vector<16x16xf32>
    %175 = arith.mulf %174, %168 : vector<16x16xf32>
    %176 = arith.addf %166, %175 : vector<16x16xf32>
    %c0_61 = arith.constant 0 : index
    %c7_62 = arith.constant 7 : index
    %c0_63 = arith.constant 0 : index
    %c0_64 = arith.constant 0 : index
    %177 = vector.load %arg2[%c0_61, %c7_62, %c0_63, %c0_64] : memref<1x8x16x16xf32, #tpu.memory_space<vmem>>, vector<1x1x16x16xf32>
    %178 = vector.shape_cast %177 : vector<1x1x16x16xf32> to vector<16x16xf32>
    %c114 = arith.constant 114 : index
    %179 = memref.load %arg4[%c114] : memref<128xf32, #tpu.memory_space<smem>>
    %180 = vector.broadcast %179 : f32 to vector<16x16xf32>
    %181 = arith.mulf %180, %178 : vector<16x16xf32>
    %182 = arith.addf %172, %181 : vector<16x16xf32>
    %c115 = arith.constant 115 : index
    %183 = memref.load %arg4[%c115] : memref<128xf32, #tpu.memory_space<smem>>
    %184 = vector.broadcast %183 : f32 to vector<16x16xf32>
    %185 = arith.mulf %184, %178 : vector<16x16xf32>
    %186 = arith.addf %176, %185 : vector<16x16xf32>
    %cst_65 = arith.constant dense<0.000000e+00> : vector<16x32xf32>
    %187 = tpu.matmul %182, %6, %cst_65 {dimension_numbers = #tpu.dot_dimension_numbers<[1], [0], [0], [1], [0, 0, 1, 1], [], []>} : vector<16x16xf32>, vector<16x32xf32>, vector<16x32xf32> -> vector<16x32xf32>
    %cst_66 = arith.constant dense<0.000000e+00> : vector<16x32xf32>
    %188 = tpu.matmul %186, %13, %cst_66 {dimension_numbers = #tpu.dot_dimension_numbers<[1], [0], [0], [1], [0, 0, 1, 1], [], []>} : vector<16x16xf32>, vector<16x32xf32>, vector<16x32xf32> -> vector<16x32xf32>
    %189 = arith.addf %187, %188 : vector<16x32xf32>
    %cst_67 = arith.constant dense<0.000000e+00> : vector<32x32xf32>
    %190 = tpu.matmul %20, %108, %cst_67 {dimension_numbers = #tpu.dot_dimension_numbers<[1], [0], [0], [1], [0, 0, 1, 1], [], []>} : vector<32x16xf32>, vector<16x32xf32>, vector<32x32xf32> -> vector<32x32xf32>
    %cst_68 = arith.constant dense<0.000000e+00> : vector<32x32xf32>
    %191 = tpu.matmul %27, %189, %cst_68 {dimension_numbers = #tpu.dot_dimension_numbers<[1], [0], [0], [1], [0, 0, 1, 1], [], []>} : vector<32x16xf32>, vector<16x32xf32>, vector<32x32xf32> -> vector<32x32xf32>
    %192 = arith.addf %190, %191 : vector<32x32xf32>
    %c0_69 = arith.constant 0 : index
    %193 = memref.load %arg5[%c0_69] : memref<4xf32, #tpu.memory_space<smem>>
    %194 = vector.broadcast %193 : f32 to vector<32x32xf32>
    %195 = arith.addf %192, %194 : vector<32x32xf32>
    %c0_70 = arith.constant 0 : index
    %c0_71 = arith.constant 0 : index
    %c0_72 = arith.constant 0 : index
    %c0_73 = arith.constant 0 : index
    %196 = vector.load %arg8[%c0_70, %c0_71, %c0_72, %c0_73] : memref<1x8x32x32xf32, #tpu.memory_space<vmem>>, vector<1x1x32x32xf32>
    %197 = vector.shape_cast %196 : vector<1x1x32x32xf32> to vector<32x32xf32>
    %198 = vector.shape_cast %195 : vector<32x32xf32> to vector<1x1x32x32xf32>
    tpu.vector_store %arg8[%c0_70, %c0_71, %c0_72, %c0_73], %198 {strides = array<i32>} : memref<1x8x32x32xf32, #tpu.memory_space<vmem>>, vector<1x1x32x32xf32>,
    %c0_74 = arith.constant 0 : index
    %c0_75 = arith.constant 0 : index
    %c0_76 = arith.constant 0 : index
    %c0_77 = arith.constant 0 : index
    %199 = vector.load %arg2[%c0_74, %c0_75, %c0_76, %c0_77] : memref<1x8x16x16xf32, #tpu.memory_space<vmem>>, vector<1x1x16x16xf32>
    %200 = vector.shape_cast %199 : vector<1x1x16x16xf32> to vector<16x16xf32>
    %c4_78 = arith.constant 4 : index
    %201 = memref.load %arg4[%c4_78] : memref<128xf32, #tpu.memory_space<smem>>
    %202 = vector.broadcast %201 : f32 to vector<16x16xf32>
    %203 = arith.mulf %202, %200 : vector<16x16xf32>
    %c5_79 = arith.constant 5 : index
    %204 = memref.load %arg4[%c5_79] : memref<128xf32, #tpu.memory_space<smem>>
    %205 = vector.broadcast %204 : f32 to vector<16x16xf32>
    %206 = arith.mulf %205, %200 : vector<16x16xf32>
    %c0_80 = arith.constant 0 : index
    %c1_81 = arith.constant 1 : index
    %c0_82 = arith.constant 0 : index
    %c0_83 = arith.constant 0 : index
    %207 = vector.load %arg2[%c0_80, %c1_81, %c0_82, %c0_83] : memref<1x8x16x16xf32, #tpu.memory_space<vmem>>, vector<1x1x16x16xf32>
    %208 = vector.shape_cast %207 : vector<1x1x16x16xf32> to vector<16x16xf32>
    %c20 = arith.constant 20 : index
    %209 = memref.load %arg4[%c20] : memref<128xf32, #tpu.memory_space<smem>>
    %210 = vector.broadcast %209 : f32 to vector<16x16xf32>
    %211 = arith.mulf %210, %208 : vector<16x16xf32>
    %212 = arith.addf %203, %211 : vector<16x16xf32>
    %c21 = arith.constant 21 : index
    %213 = memref.load %arg4[%c21] : memref<128xf32, #tpu.memory_space<smem>>
    %214 = vector.broadcast %213 : f32 to vector<16x16xf32>
    %215 = arith.mulf %214, %208 : vector<16x16xf32>
    %216 = arith.addf %206, %215 : vector<16x16xf32>
    %c0_84 = arith.constant 0 : index
    %c2_85 = arith.constant 2 : index
    %c0_86 = arith.constant 0 : index
    %c0_87 = arith.constant 0 : index
    %217 = vector.load %arg2[%c0_84, %c2_85, %c0_86, %c0_87] : memref<1x8x16x16xf32, #tpu.memory_space<vmem>>, vector<1x1x16x16xf32>
    %218 = vector.shape_cast %217 : vector<1x1x16x16xf32> to vector<16x16xf32>
    %c36 = arith.constant 36 : index
    %219 = memref.load %arg4[%c36] : memref<128xf32, #tpu.memory_space<smem>>
    %220 = vector.broadcast %219 : f32 to vector<16x16xf32>
    %221 = arith.mulf %220, %218 : vector<16x16xf32>
    %222 = arith.addf %212, %221 : vector<16x16xf32>
    %c37 = arith.constant 37 : index
    %223 = memref.load %arg4[%c37] : memref<128xf32, #tpu.memory_space<smem>>
    %224 = vector.broadcast %223 : f32 to vector<16x16xf32>
    %225 = arith.mulf %224, %218 : vector<16x16xf32>
    %226 = arith.addf %216, %225 : vector<16x16xf32>
    %c0_88 = arith.constant 0 : index
    %c3_89 = arith.constant 3 : index
    %c0_90 = arith.constant 0 : index
    %c0_91 = arith.constant 0 : index
    %227 = vector.load %arg2[%c0_88, %c3_89, %c0_90, %c0_91] : memref<1x8x16x16xf32, #tpu.memory_space<vmem>>, vector<1x1x16x16xf32>
    %228 = vector.shape_cast %227 : vector<1x1x16x16xf32> to vector<16x16xf32>
    %c52 = arith.constant 52 : index
    %229 = memref.load %arg4[%c52] : memref<128xf32, #tpu.memory_space<smem>>
    %230 = vector.broadcast %229 : f32 to vector<16x16xf32>
    %231 = arith.mulf %230, %228 : vector<16x16xf32>
    %232 = arith.addf %222, %231 : vector<16x16xf32>
    %c53 = arith.constant 53 : index
    %233 = memref.load %arg4[%c53] : memref<128xf32, #tpu.memory_space<smem>>
    %234 = vector.broadcast %233 : f32 to vector<16x16xf32>
    %235 = arith.mulf %234, %228 : vector<16x16xf32>
    %236 = arith.addf %226, %235 : vector<16x16xf32>
    %c0_92 = arith.constant 0 : index
    %c4_93 = arith.constant 4 : index
    %c0_94 = arith.constant 0 : index
    %c0_95 = arith.constant 0 : index
    %237 = vector.load %arg2[%c0_92, %c4_93, %c0_94, %c0_95] : memref<1x8x16x16xf32, #tpu.memory_space<vmem>>, vector<1x1x16x16xf32>
    %238 = vector.shape_cast %237 : vector<1x1x16x16xf32> to vector<16x16xf32>
    %c68 = arith.constant 68 : index
    %239 = memref.load %arg4[%c68] : memref<128xf32, #tpu.memory_space<smem>>
    %240 = vector.broadcast %239 : f32 to vector<16x16xf32>
    %241 = arith.mulf %240, %238 : vector<16x16xf32>
    %242 = arith.addf %232, %241 : vector<16x16xf32>
    %c69 = arith.constant 69 : index
    %243 = memref.load %arg4[%c69] : memref<128xf32, #tpu.memory_space<smem>>
    %244 = vector.broadcast %243 : f32 to vector<16x16xf32>
    %245 = arith.mulf %244, %238 : vector<16x16xf32>
    %246 = arith.addf %236, %245 : vector<16x16xf32>
    %c0_96 = arith.constant 0 : index
    %c5_97 = arith.constant 5 : index
    %c0_98 = arith.constant 0 : index
    %c0_99 = arith.constant 0 : index
    %247 = vector.load %arg2[%c0_96, %c5_97, %c0_98, %c0_99] : memref<1x8x16x16xf32, #tpu.memory_space<vmem>>, vector<1x1x16x16xf32>
    %248 = vector.shape_cast %247 : vector<1x1x16x16xf32> to vector<16x16xf32>
    %c84 = arith.constant 84 : index
    %249 = memref.load %arg4[%c84] : memref<128xf32, #tpu.memory_space<smem>>
    %250 = vector.broadcast %249 : f32 to vector<16x16xf32>
    %251 = arith.mulf %250, %248 : vector<16x16xf32>
    %252 = arith.addf %242, %251 : vector<16x16xf32>
    %c85 = arith.constant 85 : index
    %253 = memref.load %arg4[%c85] : memref<128xf32, #tpu.memory_space<smem>>
    %254 = vector.broadcast %253 : f32 to vector<16x16xf32>
    %255 = arith.mulf %254, %248 : vector<16x16xf32>
    %256 = arith.addf %246, %255 : vector<16x16xf32>
    %c0_100 = arith.constant 0 : index
    %c6_101 = arith.constant 6 : index
    %c0_102 = arith.constant 0 : index
    %c0_103 = arith.constant 0 : index
    %257 = vector.load %arg2[%c0_100, %c6_101, %c0_102, %c0_103] : memref<1x8x16x16xf32, #tpu.memory_space<vmem>>, vector<1x1x16x16xf32>
    %258 = vector.shape_cast %257 : vector<1x1x16x16xf32> to vector<16x16xf32>
    %c100 = arith.constant 100 : index
    %259 = memref.load %arg4[%c100] : memref<128xf32, #tpu.memory_space<smem>>
    %260 = vector.broadcast %259 : f32 to vector<16x16xf32>
    %261 = arith.mulf %260, %258 : vector<16x16xf32>
    %262 = arith.addf %252, %261 : vector<16x16xf32>
    %c101 = arith.constant 101 : index
    %263 = memref.load %arg4[%c101] : memref<128xf32, #tpu.memory_space<smem>>
    %264 = vector.broadcast %263 : f32 to vector<16x16xf32>
    %265 = arith.mulf %264, %258 : vector<16x16xf32>
    %266 = arith.addf %256, %265 : vector<16x16xf32>
    %c0_104 = arith.constant 0 : index
    %c7_105 = arith.constant 7 : index
    %c0_106 = arith.constant 0 : index
    %c0_107 = arith.constant 0 : index
    %267 = vector.load %arg2[%c0_104, %c7_105, %c0_106, %c0_107] : memref<1x8x16x16xf32, #tpu.memory_space<vmem>>, vector<1x1x16x16xf32>
    %268 = vector.shape_cast %267 : vector<1x1x16x16xf32> to vector<16x16xf32>
    %c116 = arith.constant 116 : index
    %269 = memref.load %arg4[%c116] : memref<128xf32, #tpu.memory_space<smem>>
    %270 = vector.broadcast %269 : f32 to vector<16x16xf32>
    %271 = arith.mulf %270, %268 : vector<16x16xf32>
    %272 = arith.addf %262, %271 : vector<16x16xf32>
    %c117 = arith.constant 117 : index
    %273 = memref.load %arg4[%c117] : memref<128xf32, #tpu.memory_space<smem>>
    %274 = vector.broadcast %273 : f32 to vector<16x16xf32>
    %275 = arith.mulf %274, %268 : vector<16x16xf32>
    %276 = arith.addf %266, %275 : vector<16x16xf32>
    %cst_108 = arith.constant dense<0.000000e+00> : vector<16x32xf32>
    %277 = tpu.matmul %272, %6, %cst_108 {dimension_numbers = #tpu.dot_dimension_numbers<[1], [0], [0], [1], [0, 0, 1, 1], [], []>} : vector<16x16xf32>, vector<16x32xf32>, vector<16x32xf32> -> vector<16x32xf32>
    %cst_109 = arith.constant dense<0.000000e+00> : vector<16x32xf32>
    %278 = tpu.matmul %276, %13, %cst_109 {dimension_numbers = #tpu.dot_dimension_numbers<[1], [0], [0], [1], [0, 0, 1, 1], [], []>} : vector<16x16xf32>, vector<16x32xf32>, vector<16x32xf32> -> vector<16x32xf32>
    %279 = arith.addf %277, %278 : vector<16x32xf32>
    %c0_110 = arith.constant 0 : index
    %c0_111 = arith.constant 0 : index
    %c0_112 = arith.constant 0 : index
    %c0_113 = arith.constant 0 : index
    %280 = vector.load %arg2[%c0_110, %c0_111, %c0_112, %c0_113] : memref<1x8x16x16xf32, #tpu.memory_space<vmem>>, vector<1x1x16x16xf32>
    %281 = vector.shape_cast %280 : vector<1x1x16x16xf32> to vector<16x16xf32>
    %c6_114 = arith.constant 6 : index
    %282 = memref.load %arg4[%c6_114] : memref<128xf32, #tpu.memory_space<smem>>
    %283 = vector.broadcast %282 : f32 to vector<16x16xf32>
    %284 = arith.mulf %283, %281 : vector<16x16xf32>
    %c7_115 = arith.constant 7 : index
    %285 = memref.load %arg4[%c7_115] : memref<128xf32, #tpu.memory_space<smem>>
    %286 = vector.broadcast %285 : f32 to vector<16x16xf32>
    %287 = arith.mulf %286, %281 : vector<16x16xf32>
    %c0_116 = arith.constant 0 : index
    %c1_117 = arith.constant 1 : index
    %c0_118 = arith.constant 0 : index
    %c0_119 = arith.constant 0 : index
    %288 = vector.load %arg2[%c0_116, %c1_117, %c0_118, %c0_119] : memref<1x8x16x16xf32, #tpu.memory_space<vmem>>, vector<1x1x16x16xf32>
    %289 = vector.shape_cast %288 : vector<1x1x16x16xf32> to vector<16x16xf32>
    %c22 = arith.constant 22 : index
    %290 = memref.load %arg4[%c22] : memref<128xf32, #tpu.memory_space<smem>>
    %291 = vector.broadcast %290 : f32 to vector<16x16xf32>
    %292 = arith.mulf %291, %289 : vector<16x16xf32>
    %293 = arith.addf %284, %292 : vector<16x16xf32>
    %c23 = arith.constant 23 : index
    %294 = memref.load %arg4[%c23] : memref<128xf32, #tpu.memory_space<smem>>
    %295 = vector.broadcast %294 : f32 to vector<16x16xf32>
    %296 = arith.mulf %295, %289 : vector<16x16xf32>
    %297 = arith.addf %287, %296 : vector<16x16xf32>
    %c0_120 = arith.constant 0 : index
    %c2_121 = arith.constant 2 : index
    %c0_122 = arith.constant 0 : index
    %c0_123 = arith.constant 0 : index
    %298 = vector.load %arg2[%c0_120, %c2_121, %c0_122, %c0_123] : memref<1x8x16x16xf32, #tpu.memory_space<vmem>>, vector<1x1x16x16xf32>
    %299 = vector.shape_cast %298 : vector<1x1x16x16xf32> to vector<16x16xf32>
    %c38 = arith.constant 38 : index
    %300 = memref.load %arg4[%c38] : memref<128xf32, #tpu.memory_space<smem>>
    %301 = vector.broadcast %300 : f32 to vector<16x16xf32>
    %302 = arith.mulf %301, %299 : vector<16x16xf32>
    %303 = arith.addf %293, %302 : vector<16x16xf32>
    %c39 = arith.constant 39 : index
    %304 = memref.load %arg4[%c39] : memref<128xf32, #tpu.memory_space<smem>>
    %305 = vector.broadcast %304 : f32 to vector<16x16xf32>
    %306 = arith.mulf %305, %299 : vector<16x16xf32>
    %307 = arith.addf %297, %306 : vector<16x16xf32>
    %c0_124 = arith.constant 0 : index
    %c3_125 = arith.constant 3 : index
    %c0_126 = arith.constant 0 : index
    %c0_127 = arith.constant 0 : index
    %308 = vector.load %arg2[%c0_124, %c3_125, %c0_126, %c0_127] : memref<1x8x16x16xf32, #tpu.memory_space<vmem>>, vector<1x1x16x16xf32>
    %309 = vector.shape_cast %308 : vector<1x1x16x16xf32> to vector<16x16xf32>
    %c54 = arith.constant 54 : index
    %310 = memref.load %arg4[%c54] : memref<128xf32, #tpu.memory_space<smem>>
    %311 = vector.broadcast %310 : f32 to vector<16x16xf32>
    %312 = arith.mulf %311, %309 : vector<16x16xf32>
    %313 = arith.addf %303, %312 : vector<16x16xf32>
    %c55 = arith.constant 55 : index
    %314 = memref.load %arg4[%c55] : memref<128xf32, #tpu.memory_space<smem>>
    %315 = vector.broadcast %314 : f32 to vector<16x16xf32>
    %316 = arith.mulf %315, %309 : vector<16x16xf32>
    %317 = arith.addf %307, %316 : vector<16x16xf32>
    %c0_128 = arith.constant 0 : index
    %c4_129 = arith.constant 4 : index
    %c0_130 = arith.constant 0 : index
    %c0_131 = arith.constant 0 : index
    %318 = vector.load %arg2[%c0_128, %c4_129, %c0_130, %c0_131] : memref<1x8x16x16xf32, #tpu.memory_space<vmem>>, vector<1x1x16x16xf32>
    %319 = vector.shape_cast %318 : vector<1x1x16x16xf32> to vector<16x16xf32>
    %c70 = arith.constant 70 : index
    %320 = memref.load %arg4[%c70] : memref<128xf32, #tpu.memory_space<smem>>
    %321 = vector.broadcast %320 : f32 to vector<16x16xf32>
    %322 = arith.mulf %321, %319 : vector<16x16xf32>
    %323 = arith.addf %313, %322 : vector<16x16xf32>
    %c71 = arith.constant 71 : index
    %324 = memref.load %arg4[%c71] : memref<128xf32, #tpu.memory_space<smem>>
    %325 = vector.broadcast %324 : f32 to vector<16x16xf32>
    %326 = arith.mulf %325, %319 : vector<16x16xf32>
    %327 = arith.addf %317, %326 : vector<16x16xf32>
    %c0_132 = arith.constant 0 : index
    %c5_133 = arith.constant 5 : index
    %c0_134 = arith.constant 0 : index
    %c0_135 = arith.constant 0 : index
    %328 = vector.load %arg2[%c0_132, %c5_133, %c0_134, %c0_135] : memref<1x8x16x16xf32, #tpu.memory_space<vmem>>, vector<1x1x16x16xf32>
    %329 = vector.shape_cast %328 : vector<1x1x16x16xf32> to vector<16x16xf32>
    %c86 = arith.constant 86 : index
    %330 = memref.load %arg4[%c86] : memref<128xf32, #tpu.memory_space<smem>>
    %331 = vector.broadcast %330 : f32 to vector<16x16xf32>
    %332 = arith.mulf %331, %329 : vector<16x16xf32>
    %333 = arith.addf %323, %332 : vector<16x16xf32>
    %c87 = arith.constant 87 : index
    %334 = memref.load %arg4[%c87] : memref<128xf32, #tpu.memory_space<smem>>
    %335 = vector.broadcast %334 : f32 to vector<16x16xf32>
    %336 = arith.mulf %335, %329 : vector<16x16xf32>
    %337 = arith.addf %327, %336 : vector<16x16xf32>
    %c0_136 = arith.constant 0 : index
    %c6_137 = arith.constant 6 : index
    %c0_138 = arith.constant 0 : index
    %c0_139 = arith.constant 0 : index
    %338 = vector.load %arg2[%c0_136, %c6_137, %c0_138, %c0_139] : memref<1x8x16x16xf32, #tpu.memory_space<vmem>>, vector<1x1x16x16xf32>
    %339 = vector.shape_cast %338 : vector<1x1x16x16xf32> to vector<16x16xf32>
    %c102 = arith.constant 102 : index
    %340 = memref.load %arg4[%c102] : memref<128xf32, #tpu.memory_space<smem>>
    %341 = vector.broadcast %340 : f32 to vector<16x16xf32>
    %342 = arith.mulf %341, %339 : vector<16x16xf32>
    %343 = arith.addf %333, %342 : vector<16x16xf32>
    %c103 = arith.constant 103 : index
    %344 = memref.load %arg4[%c103] : memref<128xf32, #tpu.memory_space<smem>>
    %345 = vector.broadcast %344 : f32 to vector<16x16xf32>
    %346 = arith.mulf %345, %339 : vector<16x16xf32>
    %347 = arith.addf %337, %346 : vector<16x16xf32>
    %c0_140 = arith.constant 0 : index
    %c7_141 = arith.constant 7 : index
    %c0_142 = arith.constant 0 : index
    %c0_143 = arith.constant 0 : index
    %348 = vector.load %arg2[%c0_140, %c7_141, %c0_142, %c0_143] : memref<1x8x16x16xf32, #tpu.memory_space<vmem>>, vector<1x1x16x16xf32>
    %349 = vector.shape_cast %348 : vector<1x1x16x16xf32> to vector<16x16xf32>
    %c118 = arith.constant 118 : index
    %350 = memref.load %arg4[%c118] : memref<128xf32, #tpu.memory_space<smem>>
    %351 = vector.broadcast %350 : f32 to vector<16x16xf32>
    %352 = arith.mulf %351, %349 : vector<16x16xf32>
    %353 = arith.addf %343, %352 : vector<16x16xf32>
    %c119 = arith.constant 119 : index
    %354 = memref.load %arg4[%c119] : memref<128xf32, #tpu.memory_space<smem>>
    %355 = vector.broadcast %354 : f32 to vector<16x16xf32>
    %356 = arith.mulf %355, %349 : vector<16x16xf32>
    %357 = arith.addf %347, %356 : vector<16x16xf32>
    %cst_144 = arith.constant dense<0.000000e+00> : vector<16x32xf32>
    %358 = tpu.matmul %353, %6, %cst_144 {dimension_numbers = #tpu.dot_dimension_numbers<[1], [0], [0], [1], [0, 0, 1, 1], [], []>} : vector<16x16xf32>, vector<16x32xf32>, vector<16x32xf32> -> vector<16x32xf32>
    %cst_145 = arith.constant dense<0.000000e+00> : vector<16x32xf32>
    %359 = tpu.matmul %357, %13, %cst_145 {dimension_numbers = #tpu.dot_dimension_numbers<[1], [0], [0], [1], [0, 0, 1, 1], [], []>} : vector<16x16xf32>, vector<16x32xf32>, vector<16x32xf32> -> vector<16x32xf32>
    %360 = arith.addf %358, %359 : vector<16x32xf32>
    %cst_146 = arith.constant dense<0.000000e+00> : vector<32x32xf32>
    %361 = tpu.matmul %20, %279, %cst_146 {dimension_numbers = #tpu.dot_dimension_numbers<[1], [0], [0], [1], [0, 0, 1, 1], [], []>} : vector<32x16xf32>, vector<16x32xf32>, vector<32x32xf32> -> vector<32x32xf32>
    %cst_147 = arith.constant dense<0.000000e+00> : vector<32x32xf32>
    %362 = tpu.matmul %27, %360, %cst_147 {dimension_numbers = #tpu.dot_dimension_numbers<[1], [0], [0], [1], [0, 0, 1, 1], [], []>} : vector<32x16xf32>, vector<16x32xf32>, vector<32x32xf32> -> vector<32x32xf32>
    %363 = arith.addf %361, %362 : vector<32x32xf32>
    %c1_148 = arith.constant 1 : index
    %364 = memref.load %arg5[%c1_148] : memref<4xf32, #tpu.memory_space<smem>>
    %365 = vector.broadcast %364 : f32 to vector<32x32xf32>
    %366 = arith.addf %363, %365 : vector<32x32xf32>
    %c0_149 = arith.constant 0 : index
    %c1_150 = arith.constant 1 : index
    %c0_151 = arith.constant 0 : index
    %c0_152 = arith.constant 0 : index
    %367 = vector.load %arg8[%c0_149, %c1_150, %c0_151, %c0_152] : memref<1x8x32x32xf32, #tpu.memory_space<vmem>>, vector<1x1x32x32xf32>
    %368 = vector.shape_cast %367 : vector<1x1x32x32xf32> to vector<32x32xf32>
    %369 = vector.shape_cast %366 : vector<32x32xf32> to vector<1x1x32x32xf32>
    tpu.vector_store %arg8[%c0_149, %c1_150, %c0_151, %c0_152], %369 {strides = array<i32>} : memref<1x8x32x32xf32, #tpu.memory_space<vmem>>, vector<1x1x32x32xf32>,
    %c0_153 = arith.constant 0 : index
    %c0_154 = arith.constant 0 : index
    %c0_155 = arith.constant 0 : index
    %c0_156 = arith.constant 0 : index
    %370 = vector.load %arg2[%c0_153, %c0_154, %c0_155, %c0_156] : memref<1x8x16x16xf32, #tpu.memory_space<vmem>>, vector<1x1x16x16xf32>
    %371 = vector.shape_cast %370 : vector<1x1x16x16xf32> to vector<16x16xf32>
    %c8 = arith.constant 8 : index
    %372 = memref.load %arg4[%c8] : memref<128xf32, #tpu.memory_space<smem>>
    %373 = vector.broadcast %372 : f32 to vector<16x16xf32>
    %374 = arith.mulf %373, %371 : vector<16x16xf32>
    %c9 = arith.constant 9 : index
    %375 = memref.load %arg4[%c9] : memref<128xf32, #tpu.memory_space<smem>>
    %376 = vector.broadcast %375 : f32 to vector<16x16xf32>
    %377 = arith.mulf %376, %371 : vector<16x16xf32>
    %c0_157 = arith.constant 0 : index
    %c1_158 = arith.constant 1 : index
    %c0_159 = arith.constant 0 : index
    %c0_160 = arith.constant 0 : index
    %378 = vector.load %arg2[%c0_157, %c1_158, %c0_159, %c0_160] : memref<1x8x16x16xf32, #tpu.memory_space<vmem>>, vector<1x1x16x16xf32>
    %379 = vector.shape_cast %378 : vector<1x1x16x16xf32> to vector<16x16xf32>
    %c24 = arith.constant 24 : index
    %380 = memref.load %arg4[%c24] : memref<128xf32, #tpu.memory_space<smem>>
    %381 = vector.broadcast %380 : f32 to vector<16x16xf32>
    %382 = arith.mulf %381, %379 : vector<16x16xf32>
    %383 = arith.addf %374, %382 : vector<16x16xf32>
    %c25 = arith.constant 25 : index
    %384 = memref.load %arg4[%c25] : memref<128xf32, #tpu.memory_space<smem>>
    %385 = vector.broadcast %384 : f32 to vector<16x16xf32>
    %386 = arith.mulf %385, %379 : vector<16x16xf32>
    %387 = arith.addf %377, %386 : vector<16x16xf32>
    %c0_161 = arith.constant 0 : index
    %c2_162 = arith.constant 2 : index
    %c0_163 = arith.constant 0 : index
    %c0_164 = arith.constant 0 : index
    %388 = vector.load %arg2[%c0_161, %c2_162, %c0_163, %c0_164] : memref<1x8x16x16xf32, #tpu.memory_space<vmem>>, vector<1x1x16x16xf32>
    %389 = vector.shape_cast %388 : vector<1x1x16x16xf32> to vector<16x16xf32>
    %c40 = arith.constant 40 : index
    %390 = memref.load %arg4[%c40] : memref<128xf32, #tpu.memory_space<smem>>
    %391 = vector.broadcast %390 : f32 to vector<16x16xf32>
    %392 = arith.mulf %391, %389 : vector<16x16xf32>
    %393 = arith.addf %383, %392 : vector<16x16xf32>
    %c41 = arith.constant 41 : index
    %394 = memref.load %arg4[%c41] : memref<128xf32, #tpu.memory_space<smem>>
    %395 = vector.broadcast %394 : f32 to vector<16x16xf32>
    %396 = arith.mulf %395, %389 : vector<16x16xf32>
    %397 = arith.addf %387, %396 : vector<16x16xf32>
    %c0_165 = arith.constant 0 : index
    %c3_166 = arith.constant 3 : index
    %c0_167 = arith.constant 0 : index
    %c0_168 = arith.constant 0 : index
    %398 = vector.load %arg2[%c0_165, %c3_166, %c0_167, %c0_168] : memref<1x8x16x16xf32, #tpu.memory_space<vmem>>, vector<1x1x16x16xf32>
    %399 = vector.shape_cast %398 : vector<1x1x16x16xf32> to vector<16x16xf32>
    %c56 = arith.constant 56 : index
    %400 = memref.load %arg4[%c56] : memref<128xf32, #tpu.memory_space<smem>>
    %401 = vector.broadcast %400 : f32 to vector<16x16xf32>
    %402 = arith.mulf %401, %399 : vector<16x16xf32>
    %403 = arith.addf %393, %402 : vector<16x16xf32>
    %c57 = arith.constant 57 : index
    %404 = memref.load %arg4[%c57] : memref<128xf32, #tpu.memory_space<smem>>
    %405 = vector.broadcast %404 : f32 to vector<16x16xf32>
    %406 = arith.mulf %405, %399 : vector<16x16xf32>
    %407 = arith.addf %397, %406 : vector<16x16xf32>
    %c0_169 = arith.constant 0 : index
    %c4_170 = arith.constant 4 : index
    %c0_171 = arith.constant 0 : index
    %c0_172 = arith.constant 0 : index
    %408 = vector.load %arg2[%c0_169, %c4_170, %c0_171, %c0_172] : memref<1x8x16x16xf32, #tpu.memory_space<vmem>>, vector<1x1x16x16xf32>
    %409 = vector.shape_cast %408 : vector<1x1x16x16xf32> to vector<16x16xf32>
    %c72 = arith.constant 72 : index
    %410 = memref.load %arg4[%c72] : memref<128xf32, #tpu.memory_space<smem>>
    %411 = vector.broadcast %410 : f32 to vector<16x16xf32>
    %412 = arith.mulf %411, %409 : vector<16x16xf32>
    %413 = arith.addf %403, %412 : vector<16x16xf32>
    %c73 = arith.constant 73 : index
    %414 = memref.load %arg4[%c73] : memref<128xf32, #tpu.memory_space<smem>>
    %415 = vector.broadcast %414 : f32 to vector<16x16xf32>
    %416 = arith.mulf %415, %409 : vector<16x16xf32>
    %417 = arith.addf %407, %416 : vector<16x16xf32>
    %c0_173 = arith.constant 0 : index
    %c5_174 = arith.constant 5 : index
    %c0_175 = arith.constant 0 : index
    %c0_176 = arith.constant 0 : index
    %418 = vector.load %arg2[%c0_173, %c5_174, %c0_175, %c0_176] : memref<1x8x16x16xf32, #tpu.memory_space<vmem>>, vector<1x1x16x16xf32>
    %419 = vector.shape_cast %418 : vector<1x1x16x16xf32> to vector<16x16xf32>
    %c88 = arith.constant 88 : index
    %420 = memref.load %arg4[%c88] : memref<128xf32, #tpu.memory_space<smem>>
    %421 = vector.broadcast %420 : f32 to vector<16x16xf32>
    %422 = arith.mulf %421, %419 : vector<16x16xf32>
    %423 = arith.addf %413, %422 : vector<16x16xf32>
    %c89 = arith.constant 89 : index
    %424 = memref.load %arg4[%c89] : memref<128xf32, #tpu.memory_space<smem>>
    %425 = vector.broadcast %424 : f32 to vector<16x16xf32>
    %426 = arith.mulf %425, %419 : vector<16x16xf32>
    %427 = arith.addf %417, %426 : vector<16x16xf32>
    %c0_177 = arith.constant 0 : index
    %c6_178 = arith.constant 6 : index
    %c0_179 = arith.constant 0 : index
    %c0_180 = arith.constant 0 : index
    %428 = vector.load %arg2[%c0_177, %c6_178, %c0_179, %c0_180] : memref<1x8x16x16xf32, #tpu.memory_space<vmem>>, vector<1x1x16x16xf32>
    %429 = vector.shape_cast %428 : vector<1x1x16x16xf32> to vector<16x16xf32>
    %c104 = arith.constant 104 : index
    %430 = memref.load %arg4[%c104] : memref<128xf32, #tpu.memory_space<smem>>
    %431 = vector.broadcast %430 : f32 to vector<16x16xf32>
    %432 = arith.mulf %431, %429 : vector<16x16xf32>
    %433 = arith.addf %423, %432 : vector<16x16xf32>
    %c105 = arith.constant 105 : index
    %434 = memref.load %arg4[%c105] : memref<128xf32, #tpu.memory_space<smem>>
    %435 = vector.broadcast %434 : f32 to vector<16x16xf32>
    %436 = arith.mulf %435, %429 : vector<16x16xf32>
    %437 = arith.addf %427, %436 : vector<16x16xf32>
    %c0_181 = arith.constant 0 : index
    %c7_182 = arith.constant 7 : index
    %c0_183 = arith.constant 0 : index
    %c0_184 = arith.constant 0 : index
    %438 = vector.load %arg2[%c0_181, %c7_182, %c0_183, %c0_184] : memref<1x8x16x16xf32, #tpu.memory_space<vmem>>, vector<1x1x16x16xf32>
    %439 = vector.shape_cast %438 : vector<1x1x16x16xf32> to vector<16x16xf32>
    %c120 = arith.constant 120 : index
    %440 = memref.load %arg4[%c120] : memref<128xf32, #tpu.memory_space<smem>>
    %441 = vector.broadcast %440 : f32 to vector<16x16xf32>
    %442 = arith.mulf %441, %439 : vector<16x16xf32>
    %443 = arith.addf %433, %442 : vector<16x16xf32>
    %c121 = arith.constant 121 : index
    %444 = memref.load %arg4[%c121] : memref<128xf32, #tpu.memory_space<smem>>
    %445 = vector.broadcast %444 : f32 to vector<16x16xf32>
    %446 = arith.mulf %445, %439 : vector<16x16xf32>
    %447 = arith.addf %437, %446 : vector<16x16xf32>
    %cst_185 = arith.constant dense<0.000000e+00> : vector<16x32xf32>
    %448 = tpu.matmul %443, %6, %cst_185 {dimension_numbers = #tpu.dot_dimension_numbers<[1], [0], [0], [1], [0, 0, 1, 1], [], []>} : vector<16x16xf32>, vector<16x32xf32>, vector<16x32xf32> -> vector<16x32xf32>
    %cst_186 = arith.constant dense<0.000000e+00> : vector<16x32xf32>
    %449 = tpu.matmul %447, %13, %cst_186 {dimension_numbers = #tpu.dot_dimension_numbers<[1], [0], [0], [1], [0, 0, 1, 1], [], []>} : vector<16x16xf32>, vector<16x32xf32>, vector<16x32xf32> -> vector<16x32xf32>
    %450 = arith.addf %448, %449 : vector<16x32xf32>
    %c0_187 = arith.constant 0 : index
    %c0_188 = arith.constant 0 : index
    %c0_189 = arith.constant 0 : index
    %c0_190 = arith.constant 0 : index
    %451 = vector.load %arg2[%c0_187, %c0_188, %c0_189, %c0_190] : memref<1x8x16x16xf32, #tpu.memory_space<vmem>>, vector<1x1x16x16xf32>
    %452 = vector.shape_cast %451 : vector<1x1x16x16xf32> to vector<16x16xf32>
    %c10 = arith.constant 10 : index
    %453 = memref.load %arg4[%c10] : memref<128xf32, #tpu.memory_space<smem>>
    %454 = vector.broadcast %453 : f32 to vector<16x16xf32>
    %455 = arith.mulf %454, %452 : vector<16x16xf32>
    %c11 = arith.constant 11 : index
    %456 = memref.load %arg4[%c11] : memref<128xf32, #tpu.memory_space<smem>>
    %457 = vector.broadcast %456 : f32 to vector<16x16xf32>
    %458 = arith.mulf %457, %452 : vector<16x16xf32>
    %c0_191 = arith.constant 0 : index
    %c1_192 = arith.constant 1 : index
    %c0_193 = arith.constant 0 : index
    %c0_194 = arith.constant 0 : index
    %459 = vector.load %arg2[%c0_191, %c1_192, %c0_193, %c0_194] : memref<1x8x16x16xf32, #tpu.memory_space<vmem>>, vector<1x1x16x16xf32>
    %460 = vector.shape_cast %459 : vector<1x1x16x16xf32> to vector<16x16xf32>
    %c26 = arith.constant 26 : index
    %461 = memref.load %arg4[%c26] : memref<128xf32, #tpu.memory_space<smem>>
    %462 = vector.broadcast %461 : f32 to vector<16x16xf32>
    %463 = arith.mulf %462, %460 : vector<16x16xf32>
    %464 = arith.addf %455, %463 : vector<16x16xf32>
    %c27 = arith.constant 27 : index
    %465 = memref.load %arg4[%c27] : memref<128xf32, #tpu.memory_space<smem>>
    %466 = vector.broadcast %465 : f32 to vector<16x16xf32>
    %467 = arith.mulf %466, %460 : vector<16x16xf32>
    %468 = arith.addf %458, %467 : vector<16x16xf32>
    %c0_195 = arith.constant 0 : index
    %c2_196 = arith.constant 2 : index
    %c0_197 = arith.constant 0 : index
    %c0_198 = arith.constant 0 : index
    %469 = vector.load %arg2[%c0_195, %c2_196, %c0_197, %c0_198] : memref<1x8x16x16xf32, #tpu.memory_space<vmem>>, vector<1x1x16x16xf32>
    %470 = vector.shape_cast %469 : vector<1x1x16x16xf32> to vector<16x16xf32>
    %c42 = arith.constant 42 : index
    %471 = memref.load %arg4[%c42] : memref<128xf32, #tpu.memory_space<smem>>
    %472 = vector.broadcast %471 : f32 to vector<16x16xf32>
    %473 = arith.mulf %472, %470 : vector<16x16xf32>
    %474 = arith.addf %464, %473 : vector<16x16xf32>
    %c43 = arith.constant 43 : index
    %475 = memref.load %arg4[%c43] : memref<128xf32, #tpu.memory_space<smem>>
    %476 = vector.broadcast %475 : f32 to vector<16x16xf32>
    %477 = arith.mulf %476, %470 : vector<16x16xf32>
    %478 = arith.addf %468, %477 : vector<16x16xf32>
    %c0_199 = arith.constant 0 : index
    %c3_200 = arith.constant 3 : index
    %c0_201 = arith.constant 0 : index
    %c0_202 = arith.constant 0 : index
    %479 = vector.load %arg2[%c0_199, %c3_200, %c0_201, %c0_202] : memref<1x8x16x16xf32, #tpu.memory_space<vmem>>, vector<1x1x16x16xf32>
    %480 = vector.shape_cast %479 : vector<1x1x16x16xf32> to vector<16x16xf32>
    %c58 = arith.constant 58 : index
    %481 = memref.load %arg4[%c58] : memref<128xf32, #tpu.memory_space<smem>>
    %482 = vector.broadcast %481 : f32 to vector<16x16xf32>
    %483 = arith.mulf %482, %480 : vector<16x16xf32>
    %484 = arith.addf %474, %483 : vector<16x16xf32>
    %c59 = arith.constant 59 : index
    %485 = memref.load %arg4[%c59] : memref<128xf32, #tpu.memory_space<smem>>
    %486 = vector.broadcast %485 : f32 to vector<16x16xf32>
    %487 = arith.mulf %486, %480 : vector<16x16xf32>
    %488 = arith.addf %478, %487 : vector<16x16xf32>
    %c0_203 = arith.constant 0 : index
    %c4_204 = arith.constant 4 : index
    %c0_205 = arith.constant 0 : index
    %c0_206 = arith.constant 0 : index
    %489 = vector.load %arg2[%c0_203, %c4_204, %c0_205, %c0_206] : memref<1x8x16x16xf32, #tpu.memory_space<vmem>>, vector<1x1x16x16xf32>
    %490 = vector.shape_cast %489 : vector<1x1x16x16xf32> to vector<16x16xf32>
    %c74 = arith.constant 74 : index
    %491 = memref.load %arg4[%c74] : memref<128xf32, #tpu.memory_space<smem>>
    %492 = vector.broadcast %491 : f32 to vector<16x16xf32>
    %493 = arith.mulf %492, %490 : vector<16x16xf32>
    %494 = arith.addf %484, %493 : vector<16x16xf32>
    %c75 = arith.constant 75 : index
    %495 = memref.load %arg4[%c75] : memref<128xf32, #tpu.memory_space<smem>>
    %496 = vector.broadcast %495 : f32 to vector<16x16xf32>
    %497 = arith.mulf %496, %490 : vector<16x16xf32>
    %498 = arith.addf %488, %497 : vector<16x16xf32>
    %c0_207 = arith.constant 0 : index
    %c5_208 = arith.constant 5 : index
    %c0_209 = arith.constant 0 : index
    %c0_210 = arith.constant 0 : index
    %499 = vector.load %arg2[%c0_207, %c5_208, %c0_209, %c0_210] : memref<1x8x16x16xf32, #tpu.memory_space<vmem>>, vector<1x1x16x16xf32>
    %500 = vector.shape_cast %499 : vector<1x1x16x16xf32> to vector<16x16xf32>
    %c90 = arith.constant 90 : index
    %501 = memref.load %arg4[%c90] : memref<128xf32, #tpu.memory_space<smem>>
    %502 = vector.broadcast %501 : f32 to vector<16x16xf32>
    %503 = arith.mulf %502, %500 : vector<16x16xf32>
    %504 = arith.addf %494, %503 : vector<16x16xf32>
    %c91 = arith.constant 91 : index
    %505 = memref.load %arg4[%c91] : memref<128xf32, #tpu.memory_space<smem>>
    %506 = vector.broadcast %505 : f32 to vector<16x16xf32>
    %507 = arith.mulf %506, %500 : vector<16x16xf32>
    %508 = arith.addf %498, %507 : vector<16x16xf32>
    %c0_211 = arith.constant 0 : index
    %c6_212 = arith.constant 6 : index
    %c0_213 = arith.constant 0 : index
    %c0_214 = arith.constant 0 : index
    %509 = vector.load %arg2[%c0_211, %c6_212, %c0_213, %c0_214] : memref<1x8x16x16xf32, #tpu.memory_space<vmem>>, vector<1x1x16x16xf32>
    %510 = vector.shape_cast %509 : vector<1x1x16x16xf32> to vector<16x16xf32>
    %c106 = arith.constant 106 : index
    %511 = memref.load %arg4[%c106] : memref<128xf32, #tpu.memory_space<smem>>
    %512 = vector.broadcast %511 : f32 to vector<16x16xf32>
    %513 = arith.mulf %512, %510 : vector<16x16xf32>
    %514 = arith.addf %504, %513 : vector<16x16xf32>
    %c107 = arith.constant 107 : index
    %515 = memref.load %arg4[%c107] : memref<128xf32, #tpu.memory_space<smem>>
    %516 = vector.broadcast %515 : f32 to vector<16x16xf32>
    %517 = arith.mulf %516, %510 : vector<16x16xf32>
    %518 = arith.addf %508, %517 : vector<16x16xf32>
    %c0_215 = arith.constant 0 : index
    %c7_216 = arith.constant 7 : index
    %c0_217 = arith.constant 0 : index
    %c0_218 = arith.constant 0 : index
    %519 = vector.load %arg2[%c0_215, %c7_216, %c0_217, %c0_218] : memref<1x8x16x16xf32, #tpu.memory_space<vmem>>, vector<1x1x16x16xf32>
    %520 = vector.shape_cast %519 : vector<1x1x16x16xf32> to vector<16x16xf32>
    %c122 = arith.constant 122 : index
    %521 = memref.load %arg4[%c122] : memref<128xf32, #tpu.memory_space<smem>>
    %522 = vector.broadcast %521 : f32 to vector<16x16xf32>
    %523 = arith.mulf %522, %520 : vector<16x16xf32>
    %524 = arith.addf %514, %523 : vector<16x16xf32>
    %c123 = arith.constant 123 : index
    %525 = memref.load %arg4[%c123] : memref<128xf32, #tpu.memory_space<smem>>
    %526 = vector.broadcast %525 : f32 to vector<16x16xf32>
    %527 = arith.mulf %526, %520 : vector<16x16xf32>
    %528 = arith.addf %518, %527 : vector<16x16xf32>
    %cst_219 = arith.constant dense<0.000000e+00> : vector<16x32xf32>
    %529 = tpu.matmul %524, %6, %cst_219 {dimension_numbers = #tpu.dot_dimension_numbers<[1], [0], [0], [1], [0, 0, 1, 1], [], []>} : vector<16x16xf32>, vector<16x32xf32>, vector<16x32xf32> -> vector<16x32xf32>
    %cst_220 = arith.constant dense<0.000000e+00> : vector<16x32xf32>
    %530 = tpu.matmul %528, %13, %cst_220 {dimension_numbers = #tpu.dot_dimension_numbers<[1], [0], [0], [1], [0, 0, 1, 1], [], []>} : vector<16x16xf32>, vector<16x32xf32>, vector<16x32xf32> -> vector<16x32xf32>
    %531 = arith.addf %529, %530 : vector<16x32xf32>
    %cst_221 = arith.constant dense<0.000000e+00> : vector<32x32xf32>
    %532 = tpu.matmul %20, %450, %cst_221 {dimension_numbers = #tpu.dot_dimension_numbers<[1], [0], [0], [1], [0, 0, 1, 1], [], []>} : vector<32x16xf32>, vector<16x32xf32>, vector<32x32xf32> -> vector<32x32xf32>
    %cst_222 = arith.constant dense<0.000000e+00> : vector<32x32xf32>
    %533 = tpu.matmul %27, %531, %cst_222 {dimension_numbers = #tpu.dot_dimension_numbers<[1], [0], [0], [1], [0, 0, 1, 1], [], []>} : vector<32x16xf32>, vector<16x32xf32>, vector<32x32xf32> -> vector<32x32xf32>
    %534 = arith.addf %532, %533 : vector<32x32xf32>
    %c2_223 = arith.constant 2 : index
    %535 = memref.load %arg5[%c2_223] : memref<4xf32, #tpu.memory_space<smem>>
    %536 = vector.broadcast %535 : f32 to vector<32x32xf32>
    %537 = arith.addf %534, %536 : vector<32x32xf32>
    %c0_224 = arith.constant 0 : index
    %c2_225 = arith.constant 2 : index
    %c0_226 = arith.constant 0 : index
    %c0_227 = arith.constant 0 : index
    %538 = vector.load %arg8[%c0_224, %c2_225, %c0_226, %c0_227] : memref<1x8x32x32xf32, #tpu.memory_space<vmem>>, vector<1x1x32x32xf32>
    %539 = vector.shape_cast %538 : vector<1x1x32x32xf32> to vector<32x32xf32>
    %540 = vector.shape_cast %537 : vector<32x32xf32> to vector<1x1x32x32xf32>
    tpu.vector_store %arg8[%c0_224, %c2_225, %c0_226, %c0_227], %540 {strides = array<i32>} : memref<1x8x32x32xf32, #tpu.memory_space<vmem>>, vector<1x1x32x32xf32>,
    %c0_228 = arith.constant 0 : index
    %c0_229 = arith.constant 0 : index
    %c0_230 = arith.constant 0 : index
    %c0_231 = arith.constant 0 : index
    %541 = vector.load %arg2[%c0_228, %c0_229, %c0_230, %c0_231] : memref<1x8x16x16xf32, #tpu.memory_space<vmem>>, vector<1x1x16x16xf32>
    %542 = vector.shape_cast %541 : vector<1x1x16x16xf32> to vector<16x16xf32>
    %c12 = arith.constant 12 : index
    %543 = memref.load %arg4[%c12] : memref<128xf32, #tpu.memory_space<smem>>
    %544 = vector.broadcast %543 : f32 to vector<16x16xf32>
    %545 = arith.mulf %544, %542 : vector<16x16xf32>
    %c13 = arith.constant 13 : index
    %546 = memref.load %arg4[%c13] : memref<128xf32, #tpu.memory_space<smem>>
    %547 = vector.broadcast %546 : f32 to vector<16x16xf32>
    %548 = arith.mulf %547, %542 : vector<16x16xf32>
    %c0_232 = arith.constant 0 : index
    %c1_233 = arith.constant 1 : index
    %c0_234 = arith.constant 0 : index
    %c0_235 = arith.constant 0 : index
    %549 = vector.load %arg2[%c0_232, %c1_233, %c0_234, %c0_235] : memref<1x8x16x16xf32, #tpu.memory_space<vmem>>, vector<1x1x16x16xf32>
    %550 = vector.shape_cast %549 : vector<1x1x16x16xf32> to vector<16x16xf32>
    %c28 = arith.constant 28 : index
    %551 = memref.load %arg4[%c28] : memref<128xf32, #tpu.memory_space<smem>>
    %552 = vector.broadcast %551 : f32 to vector<16x16xf32>
    %553 = arith.mulf %552, %550 : vector<16x16xf32>
    %554 = arith.addf %545, %553 : vector<16x16xf32>
    %c29 = arith.constant 29 : index
    %555 = memref.load %arg4[%c29] : memref<128xf32, #tpu.memory_space<smem>>
    %556 = vector.broadcast %555 : f32 to vector<16x16xf32>
    %557 = arith.mulf %556, %550 : vector<16x16xf32>
    %558 = arith.addf %548, %557 : vector<16x16xf32>
    %c0_236 = arith.constant 0 : index
    %c2_237 = arith.constant 2 : index
    %c0_238 = arith.constant 0 : index
    %c0_239 = arith.constant 0 : index
    %559 = vector.load %arg2[%c0_236, %c2_237, %c0_238, %c0_239] : memref<1x8x16x16xf32, #tpu.memory_space<vmem>>, vector<1x1x16x16xf32>
    %560 = vector.shape_cast %559 : vector<1x1x16x16xf32> to vector<16x16xf32>
    %c44 = arith.constant 44 : index
    %561 = memref.load %arg4[%c44] : memref<128xf32, #tpu.memory_space<smem>>
    %562 = vector.broadcast %561 : f32 to vector<16x16xf32>
    %563 = arith.mulf %562, %560 : vector<16x16xf32>
    %564 = arith.addf %554, %563 : vector<16x16xf32>
    %c45 = arith.constant 45 : index
    %565 = memref.load %arg4[%c45] : memref<128xf32, #tpu.memory_space<smem>>
    %566 = vector.broadcast %565 : f32 to vector<16x16xf32>
    %567 = arith.mulf %566, %560 : vector<16x16xf32>
    %568 = arith.addf %558, %567 : vector<16x16xf32>
    %c0_240 = arith.constant 0 : index
    %c3_241 = arith.constant 3 : index
    %c0_242 = arith.constant 0 : index
    %c0_243 = arith.constant 0 : index
    %569 = vector.load %arg2[%c0_240, %c3_241, %c0_242, %c0_243] : memref<1x8x16x16xf32, #tpu.memory_space<vmem>>, vector<1x1x16x16xf32>
    %570 = vector.shape_cast %569 : vector<1x1x16x16xf32> to vector<16x16xf32>
    %c60 = arith.constant 60 : index
    %571 = memref.load %arg4[%c60] : memref<128xf32, #tpu.memory_space<smem>>
    %572 = vector.broadcast %571 : f32 to vector<16x16xf32>
    %573 = arith.mulf %572, %570 : vector<16x16xf32>
    %574 = arith.addf %564, %573 : vector<16x16xf32>
    %c61 = arith.constant 61 : index
    %575 = memref.load %arg4[%c61] : memref<128xf32, #tpu.memory_space<smem>>
    %576 = vector.broadcast %575 : f32 to vector<16x16xf32>
    %577 = arith.mulf %576, %570 : vector<16x16xf32>
    %578 = arith.addf %568, %577 : vector<16x16xf32>
    %c0_244 = arith.constant 0 : index
    %c4_245 = arith.constant 4 : index
    %c0_246 = arith.constant 0 : index
    %c0_247 = arith.constant 0 : index
    %579 = vector.load %arg2[%c0_244, %c4_245, %c0_246, %c0_247] : memref<1x8x16x16xf32, #tpu.memory_space<vmem>>, vector<1x1x16x16xf32>
    %580 = vector.shape_cast %579 : vector<1x1x16x16xf32> to vector<16x16xf32>
    %c76 = arith.constant 76 : index
    %581 = memref.load %arg4[%c76] : memref<128xf32, #tpu.memory_space<smem>>
    %582 = vector.broadcast %581 : f32 to vector<16x16xf32>
    %583 = arith.mulf %582, %580 : vector<16x16xf32>
    %584 = arith.addf %574, %583 : vector<16x16xf32>
    %c77 = arith.constant 77 : index
    %585 = memref.load %arg4[%c77] : memref<128xf32, #tpu.memory_space<smem>>
    %586 = vector.broadcast %585 : f32 to vector<16x16xf32>
    %587 = arith.mulf %586, %580 : vector<16x16xf32>
    %588 = arith.addf %578, %587 : vector<16x16xf32>
    %c0_248 = arith.constant 0 : index
    %c5_249 = arith.constant 5 : index
    %c0_250 = arith.constant 0 : index
    %c0_251 = arith.constant 0 : index
    %589 = vector.load %arg2[%c0_248, %c5_249, %c0_250, %c0_251] : memref<1x8x16x16xf32, #tpu.memory_space<vmem>>, vector<1x1x16x16xf32>
    %590 = vector.shape_cast %589 : vector<1x1x16x16xf32> to vector<16x16xf32>
    %c92 = arith.constant 92 : index
    %591 = memref.load %arg4[%c92] : memref<128xf32, #tpu.memory_space<smem>>
    %592 = vector.broadcast %591 : f32 to vector<16x16xf32>
    %593 = arith.mulf %592, %590 : vector<16x16xf32>
    %594 = arith.addf %584, %593 : vector<16x16xf32>
    %c93 = arith.constant 93 : index
    %595 = memref.load %arg4[%c93] : memref<128xf32, #tpu.memory_space<smem>>
    %596 = vector.broadcast %595 : f32 to vector<16x16xf32>
    %597 = arith.mulf %596, %590 : vector<16x16xf32>
    %598 = arith.addf %588, %597 : vector<16x16xf32>
    %c0_252 = arith.constant 0 : index
    %c6_253 = arith.constant 6 : index
    %c0_254 = arith.constant 0 : index
    %c0_255 = arith.constant 0 : index
    %599 = vector.load %arg2[%c0_252, %c6_253, %c0_254, %c0_255] : memref<1x8x16x16xf32, #tpu.memory_space<vmem>>, vector<1x1x16x16xf32>
    %600 = vector.shape_cast %599 : vector<1x1x16x16xf32> to vector<16x16xf32>
    %c108 = arith.constant 108 : index
    %601 = memref.load %arg4[%c108] : memref<128xf32, #tpu.memory_space<smem>>
    %602 = vector.broadcast %601 : f32 to vector<16x16xf32>
    %603 = arith.mulf %602, %600 : vector<16x16xf32>
    %604 = arith.addf %594, %603 : vector<16x16xf32>
    %c109 = arith.constant 109 : index
    %605 = memref.load %arg4[%c109] : memref<128xf32, #tpu.memory_space<smem>>
    %606 = vector.broadcast %605 : f32 to vector<16x16xf32>
    %607 = arith.mulf %606, %600 : vector<16x16xf32>
    %608 = arith.addf %598, %607 : vector<16x16xf32>
    %c0_256 = arith.constant 0 : index
    %c7_257 = arith.constant 7 : index
    %c0_258 = arith.constant 0 : index
    %c0_259 = arith.constant 0 : index
    %609 = vector.load %arg2[%c0_256, %c7_257, %c0_258, %c0_259] : memref<1x8x16x16xf32, #tpu.memory_space<vmem>>, vector<1x1x16x16xf32>
    %610 = vector.shape_cast %609 : vector<1x1x16x16xf32> to vector<16x16xf32>
    %c124 = arith.constant 124 : index
    %611 = memref.load %arg4[%c124] : memref<128xf32, #tpu.memory_space<smem>>
    %612 = vector.broadcast %611 : f32 to vector<16x16xf32>
    %613 = arith.mulf %612, %610 : vector<16x16xf32>
    %614 = arith.addf %604, %613 : vector<16x16xf32>
    %c125 = arith.constant 125 : index
    %615 = memref.load %arg4[%c125] : memref<128xf32, #tpu.memory_space<smem>>
    %616 = vector.broadcast %615 : f32 to vector<16x16xf32>
    %617 = arith.mulf %616, %610 : vector<16x16xf32>
    %618 = arith.addf %608, %617 : vector<16x16xf32>
    %cst_260 = arith.constant dense<0.000000e+00> : vector<16x32xf32>
    %619 = tpu.matmul %614, %6, %cst_260 {dimension_numbers = #tpu.dot_dimension_numbers<[1], [0], [0], [1], [0, 0, 1, 1], [], []>} : vector<16x16xf32>, vector<16x32xf32>, vector<16x32xf32> -> vector<16x32xf32>
    %cst_261 = arith.constant dense<0.000000e+00> : vector<16x32xf32>
    %620 = tpu.matmul %618, %13, %cst_261 {dimension_numbers = #tpu.dot_dimension_numbers<[1], [0], [0], [1], [0, 0, 1, 1], [], []>} : vector<16x16xf32>, vector<16x32xf32>, vector<16x32xf32> -> vector<16x32xf32>
    %621 = arith.addf %619, %620 : vector<16x32xf32>
    %c0_262 = arith.constant 0 : index
    %c0_263 = arith.constant 0 : index
    %c0_264 = arith.constant 0 : index
    %c0_265 = arith.constant 0 : index
    %622 = vector.load %arg2[%c0_262, %c0_263, %c0_264, %c0_265] : memref<1x8x16x16xf32, #tpu.memory_space<vmem>>, vector<1x1x16x16xf32>
    %623 = vector.shape_cast %622 : vector<1x1x16x16xf32> to vector<16x16xf32>
    %c14 = arith.constant 14 : index
    %624 = memref.load %arg4[%c14] : memref<128xf32, #tpu.memory_space<smem>>
    %625 = vector.broadcast %624 : f32 to vector<16x16xf32>
    %626 = arith.mulf %625, %623 : vector<16x16xf32>
    %c15 = arith.constant 15 : index
    %627 = memref.load %arg4[%c15] : memref<128xf32, #tpu.memory_space<smem>>
    %628 = vector.broadcast %627 : f32 to vector<16x16xf32>
    %629 = arith.mulf %628, %623 : vector<16x16xf32>
    %c0_266 = arith.constant 0 : index
    %c1_267 = arith.constant 1 : index
    %c0_268 = arith.constant 0 : index
    %c0_269 = arith.constant 0 : index
    %630 = vector.load %arg2[%c0_266, %c1_267, %c0_268, %c0_269] : memref<1x8x16x16xf32, #tpu.memory_space<vmem>>, vector<1x1x16x16xf32>
    %631 = vector.shape_cast %630 : vector<1x1x16x16xf32> to vector<16x16xf32>
    %c30 = arith.constant 30 : index
    %632 = memref.load %arg4[%c30] : memref<128xf32, #tpu.memory_space<smem>>
    %633 = vector.broadcast %632 : f32 to vector<16x16xf32>
    %634 = arith.mulf %633, %631 : vector<16x16xf32>
    %635 = arith.addf %626, %634 : vector<16x16xf32>
    %c31 = arith.constant 31 : index
    %636 = memref.load %arg4[%c31] : memref<128xf32, #tpu.memory_space<smem>>
    %637 = vector.broadcast %636 : f32 to vector<16x16xf32>
    %638 = arith.mulf %637, %631 : vector<16x16xf32>
    %639 = arith.addf %629, %638 : vector<16x16xf32>
    %c0_270 = arith.constant 0 : index
    %c2_271 = arith.constant 2 : index
    %c0_272 = arith.constant 0 : index
    %c0_273 = arith.constant 0 : index
    %640 = vector.load %arg2[%c0_270, %c2_271, %c0_272, %c0_273] : memref<1x8x16x16xf32, #tpu.memory_space<vmem>>, vector<1x1x16x16xf32>
    %641 = vector.shape_cast %640 : vector<1x1x16x16xf32> to vector<16x16xf32>
    %c46 = arith.constant 46 : index
    %642 = memref.load %arg4[%c46] : memref<128xf32, #tpu.memory_space<smem>>
    %643 = vector.broadcast %642 : f32 to vector<16x16xf32>
    %644 = arith.mulf %643, %641 : vector<16x16xf32>
    %645 = arith.addf %635, %644 : vector<16x16xf32>
    %c47 = arith.constant 47 : index
    %646 = memref.load %arg4[%c47] : memref<128xf32, #tpu.memory_space<smem>>
    %647 = vector.broadcast %646 : f32 to vector<16x16xf32>
    %648 = arith.mulf %647, %641 : vector<16x16xf32>
    %649 = arith.addf %639, %648 : vector<16x16xf32>
    %c0_274 = arith.constant 0 : index
    %c3_275 = arith.constant 3 : index
    %c0_276 = arith.constant 0 : index
    %c0_277 = arith.constant 0 : index
    %650 = vector.load %arg2[%c0_274, %c3_275, %c0_276, %c0_277] : memref<1x8x16x16xf32, #tpu.memory_space<vmem>>, vector<1x1x16x16xf32>
    %651 = vector.shape_cast %650 : vector<1x1x16x16xf32> to vector<16x16xf32>
    %c62 = arith.constant 62 : index
    %652 = memref.load %arg4[%c62] : memref<128xf32, #tpu.memory_space<smem>>
    %653 = vector.broadcast %652 : f32 to vector<16x16xf32>
    %654 = arith.mulf %653, %651 : vector<16x16xf32>
    %655 = arith.addf %645, %654 : vector<16x16xf32>
    %c63 = arith.constant 63 : index
    %656 = memref.load %arg4[%c63] : memref<128xf32, #tpu.memory_space<smem>>
    %657 = vector.broadcast %656 : f32 to vector<16x16xf32>
    %658 = arith.mulf %657, %651 : vector<16x16xf32>
    %659 = arith.addf %649, %658 : vector<16x16xf32>
    %c0_278 = arith.constant 0 : index
    %c4_279 = arith.constant 4 : index
    %c0_280 = arith.constant 0 : index
    %c0_281 = arith.constant 0 : index
    %660 = vector.load %arg2[%c0_278, %c4_279, %c0_280, %c0_281] : memref<1x8x16x16xf32, #tpu.memory_space<vmem>>, vector<1x1x16x16xf32>
    %661 = vector.shape_cast %660 : vector<1x1x16x16xf32> to vector<16x16xf32>
    %c78 = arith.constant 78 : index
    %662 = memref.load %arg4[%c78] : memref<128xf32, #tpu.memory_space<smem>>
    %663 = vector.broadcast %662 : f32 to vector<16x16xf32>
    %664 = arith.mulf %663, %661 : vector<16x16xf32>
    %665 = arith.addf %655, %664 : vector<16x16xf32>
    %c79 = arith.constant 79 : index
    %666 = memref.load %arg4[%c79] : memref<128xf32, #tpu.memory_space<smem>>
    %667 = vector.broadcast %666 : f32 to vector<16x16xf32>
    %668 = arith.mulf %667, %661 : vector<16x16xf32>
    %669 = arith.addf %659, %668 : vector<16x16xf32>
    %c0_282 = arith.constant 0 : index
    %c5_283 = arith.constant 5 : index
    %c0_284 = arith.constant 0 : index
    %c0_285 = arith.constant 0 : index
    %670 = vector.load %arg2[%c0_282, %c5_283, %c0_284, %c0_285] : memref<1x8x16x16xf32, #tpu.memory_space<vmem>>, vector<1x1x16x16xf32>
    %671 = vector.shape_cast %670 : vector<1x1x16x16xf32> to vector<16x16xf32>
    %c94 = arith.constant 94 : index
    %672 = memref.load %arg4[%c94] : memref<128xf32, #tpu.memory_space<smem>>
    %673 = vector.broadcast %672 : f32 to vector<16x16xf32>
    %674 = arith.mulf %673, %671 : vector<16x16xf32>
    %675 = arith.addf %665, %674 : vector<16x16xf32>
    %c95 = arith.constant 95 : index
    %676 = memref.load %arg4[%c95] : memref<128xf32, #tpu.memory_space<smem>>
    %677 = vector.broadcast %676 : f32 to vector<16x16xf32>
    %678 = arith.mulf %677, %671 : vector<16x16xf32>
    %679 = arith.addf %669, %678 : vector<16x16xf32>
    %c0_286 = arith.constant 0 : index
    %c6_287 = arith.constant 6 : index
    %c0_288 = arith.constant 0 : index
    %c0_289 = arith.constant 0 : index
    %680 = vector.load %arg2[%c0_286, %c6_287, %c0_288, %c0_289] : memref<1x8x16x16xf32, #tpu.memory_space<vmem>>, vector<1x1x16x16xf32>
    %681 = vector.shape_cast %680 : vector<1x1x16x16xf32> to vector<16x16xf32>
    %c110 = arith.constant 110 : index
    %682 = memref.load %arg4[%c110] : memref<128xf32, #tpu.memory_space<smem>>
    %683 = vector.broadcast %682 : f32 to vector<16x16xf32>
    %684 = arith.mulf %683, %681 : vector<16x16xf32>
    %685 = arith.addf %675, %684 : vector<16x16xf32>
    %c111 = arith.constant 111 : index
    %686 = memref.load %arg4[%c111] : memref<128xf32, #tpu.memory_space<smem>>
    %687 = vector.broadcast %686 : f32 to vector<16x16xf32>
    %688 = arith.mulf %687, %681 : vector<16x16xf32>
    %689 = arith.addf %679, %688 : vector<16x16xf32>
    %c0_290 = arith.constant 0 : index
    %c7_291 = arith.constant 7 : index
    %c0_292 = arith.constant 0 : index
    %c0_293 = arith.constant 0 : index
    %690 = vector.load %arg2[%c0_290, %c7_291, %c0_292, %c0_293] : memref<1x8x16x16xf32, #tpu.memory_space<vmem>>, vector<1x1x16x16xf32>
    %691 = vector.shape_cast %690 : vector<1x1x16x16xf32> to vector<16x16xf32>
    %c126 = arith.constant 126 : index
    %692 = memref.load %arg4[%c126] : memref<128xf32, #tpu.memory_space<smem>>
    %693 = vector.broadcast %692 : f32 to vector<16x16xf32>
    %694 = arith.mulf %693, %691 : vector<16x16xf32>
    %695 = arith.addf %685, %694 : vector<16x16xf32>
    %c127 = arith.constant 127 : index
    %696 = memref.load %arg4[%c127] : memref<128xf32, #tpu.memory_space<smem>>
    %697 = vector.broadcast %696 : f32 to vector<16x16xf32>
    %698 = arith.mulf %697, %691 : vector<16x16xf32>
    %699 = arith.addf %689, %698 : vector<16x16xf32>
    %cst_294 = arith.constant dense<0.000000e+00> : vector<16x32xf32>
    %700 = tpu.matmul %695, %6, %cst_294 {dimension_numbers = #tpu.dot_dimension_numbers<[1], [0], [0], [1], [0, 0, 1, 1], [], []>} : vector<16x16xf32>, vector<16x32xf32>, vector<16x32xf32> -> vector<16x32xf32>
    %cst_295 = arith.constant dense<0.000000e+00> : vector<16x32xf32>
    %701 = tpu.matmul %699, %13, %cst_295 {dimension_numbers = #tpu.dot_dimension_numbers<[1], [0], [0], [1], [0, 0, 1, 1], [], []>} : vector<16x16xf32>, vector<16x32xf32>, vector<16x32xf32> -> vector<16x32xf32>
    %702 = arith.addf %700, %701 : vector<16x32xf32>
    %cst_296 = arith.constant dense<0.000000e+00> : vector<32x32xf32>
    %703 = tpu.matmul %20, %621, %cst_296 {dimension_numbers = #tpu.dot_dimension_numbers<[1], [0], [0], [1], [0, 0, 1, 1], [], []>} : vector<32x16xf32>, vector<16x32xf32>, vector<32x32xf32> -> vector<32x32xf32>
    %cst_297 = arith.constant dense<0.000000e+00> : vector<32x32xf32>
    %704 = tpu.matmul %27, %702, %cst_297 {dimension_numbers = #tpu.dot_dimension_numbers<[1], [0], [0], [1], [0, 0, 1, 1], [], []>} : vector<32x16xf32>, vector<16x32xf32>, vector<32x32xf32> -> vector<32x32xf32>
    %705 = arith.addf %703, %704 : vector<32x32xf32>
    %c3_298 = arith.constant 3 : index
    %706 = memref.load %arg5[%c3_298] : memref<4xf32, #tpu.memory_space<smem>>
    %707 = vector.broadcast %706 : f32 to vector<32x32xf32>
    %708 = arith.addf %705, %707 : vector<32x32xf32>
    %c0_299 = arith.constant 0 : index
    %c3_300 = arith.constant 3 : index
    %c0_301 = arith.constant 0 : index
    %c0_302 = arith.constant 0 : index
    %709 = vector.load %arg8[%c0_299, %c3_300, %c0_301, %c0_302] : memref<1x8x32x32xf32, #tpu.memory_space<vmem>>, vector<1x1x32x32xf32>
    %710 = vector.shape_cast %709 : vector<1x1x32x32xf32> to vector<32x32xf32>
    %711 = vector.shape_cast %708 : vector<32x32xf32> to vector<1x1x32x32xf32>
    tpu.vector_store %arg8[%c0_299, %c3_300, %c0_301, %c0_302], %711 {strides = array<i32>} : memref<1x8x32x32xf32, #tpu.memory_space<vmem>>, vector<1x1x32x32xf32>,
    %c0_303 = arith.constant 0 : index
    %712 = memref.load %arg6[%c0_303] : memref<32xf32, #tpu.memory_space<smem>>
    %c0_304 = arith.constant 0 : index
    %c0_305 = arith.constant 0 : index
    %c0_306 = arith.constant 0 : index
    %c0_307 = arith.constant 0 : index
    %713 = vector.load %arg3[%c0_304, %c0_305, %c0_306, %c0_307] : memref<1x8x32x32xf32, #tpu.memory_space<vmem>>, vector<1x1x32x32xf32>
    %714 = vector.shape_cast %713 : vector<1x1x32x32xf32> to vector<32x32xf32>
    %715 = vector.broadcast %712 : f32 to vector<32x32xf32>
    %716 = arith.mulf %715, %714 : vector<32x32xf32>
    %c1_308 = arith.constant 1 : index
    %717 = memref.load %arg6[%c1_308] : memref<32xf32, #tpu.memory_space<smem>>
    %c0_309 = arith.constant 0 : index
    %c1_310 = arith.constant 1 : index
    %c0_311 = arith.constant 0 : index
    %c0_312 = arith.constant 0 : index
    %718 = vector.load %arg3[%c0_309, %c1_310, %c0_311, %c0_312] : memref<1x8x32x32xf32, #tpu.memory_space<vmem>>, vector<1x1x32x32xf32>
    %719 = vector.shape_cast %718 : vector<1x1x32x32xf32> to vector<32x32xf32>
    %720 = vector.broadcast %717 : f32 to vector<32x32xf32>
    %721 = arith.mulf %720, %719 : vector<32x32xf32>
    %722 = arith.addf %716, %721 : vector<32x32xf32>
    %c2_313 = arith.constant 2 : index
    %723 = memref.load %arg6[%c2_313] : memref<32xf32, #tpu.memory_space<smem>>
    %c0_314 = arith.constant 0 : index
    %c2_315 = arith.constant 2 : index
    %c0_316 = arith.constant 0 : index
    %c0_317 = arith.constant 0 : index
    %724 = vector.load %arg3[%c0_314, %c2_315, %c0_316, %c0_317] : memref<1x8x32x32xf32, #tpu.memory_space<vmem>>, vector<1x1x32x32xf32>
    %725 = vector.shape_cast %724 : vector<1x1x32x32xf32> to vector<32x32xf32>
    %726 = vector.broadcast %723 : f32 to vector<32x32xf32>
    %727 = arith.mulf %726, %725 : vector<32x32xf32>
    %728 = arith.addf %722, %727 : vector<32x32xf32>
    %c3_318 = arith.constant 3 : index
    %729 = memref.load %arg6[%c3_318] : memref<32xf32, #tpu.memory_space<smem>>
    %c0_319 = arith.constant 0 : index
    %c3_320 = arith.constant 3 : index
    %c0_321 = arith.constant 0 : index
    %c0_322 = arith.constant 0 : index
    %730 = vector.load %arg3[%c0_319, %c3_320, %c0_321, %c0_322] : memref<1x8x32x32xf32, #tpu.memory_space<vmem>>, vector<1x1x32x32xf32>
    %731 = vector.shape_cast %730 : vector<1x1x32x32xf32> to vector<32x32xf32>
    %732 = vector.broadcast %729 : f32 to vector<32x32xf32>
    %733 = arith.mulf %732, %731 : vector<32x32xf32>
    %734 = arith.addf %728, %733 : vector<32x32xf32>
    %c4_323 = arith.constant 4 : index
    %735 = memref.load %arg6[%c4_323] : memref<32xf32, #tpu.memory_space<smem>>
    %c0_324 = arith.constant 0 : index
    %c4_325 = arith.constant 4 : index
    %c0_326 = arith.constant 0 : index
    %c0_327 = arith.constant 0 : index
    %736 = vector.load %arg3[%c0_324, %c4_325, %c0_326, %c0_327] : memref<1x8x32x32xf32, #tpu.memory_space<vmem>>, vector<1x1x32x32xf32>
    %737 = vector.shape_cast %736 : vector<1x1x32x32xf32> to vector<32x32xf32>
    %738 = vector.broadcast %735 : f32 to vector<32x32xf32>
    %739 = arith.mulf %738, %737 : vector<32x32xf32>
    %740 = arith.addf %734, %739 : vector<32x32xf32>
    %c5_328 = arith.constant 5 : index
    %741 = memref.load %arg6[%c5_328] : memref<32xf32, #tpu.memory_space<smem>>
    %c0_329 = arith.constant 0 : index
    %c5_330 = arith.constant 5 : index
    %c0_331 = arith.constant 0 : index
    %c0_332 = arith.constant 0 : index
    %742 = vector.load %arg3[%c0_329, %c5_330, %c0_331, %c0_332] : memref<1x8x32x32xf32, #tpu.memory_space<vmem>>, vector<1x1x32x32xf32>
    %743 = vector.shape_cast %742 : vector<1x1x32x32xf32> to vector<32x32xf32>
    %744 = vector.broadcast %741 : f32 to vector<32x32xf32>
    %745 = arith.mulf %744, %743 : vector<32x32xf32>
    %746 = arith.addf %740, %745 : vector<32x32xf32>
    %c6_333 = arith.constant 6 : index
    %747 = memref.load %arg6[%c6_333] : memref<32xf32, #tpu.memory_space<smem>>
    %c0_334 = arith.constant 0 : index
    %c6_335 = arith.constant 6 : index
    %c0_336 = arith.constant 0 : index
    %c0_337 = arith.constant 0 : index
    %748 = vector.load %arg3[%c0_334, %c6_335, %c0_336, %c0_337] : memref<1x8x32x32xf32, #tpu.memory_space<vmem>>, vector<1x1x32x32xf32>
    %749 = vector.shape_cast %748 : vector<1x1x32x32xf32> to vector<32x32xf32>
    %750 = vector.broadcast %747 : f32 to vector<32x32xf32>
    %751 = arith.mulf %750, %749 : vector<32x32xf32>
    %752 = arith.addf %746, %751 : vector<32x32xf32>
    %c7_338 = arith.constant 7 : index
    %753 = memref.load %arg6[%c7_338] : memref<32xf32, #tpu.memory_space<smem>>
    %c0_339 = arith.constant 0 : index
    %c7_340 = arith.constant 7 : index
    %c0_341 = arith.constant 0 : index
    %c0_342 = arith.constant 0 : index
    %754 = vector.load %arg3[%c0_339, %c7_340, %c0_341, %c0_342] : memref<1x8x32x32xf32, #tpu.memory_space<vmem>>, vector<1x1x32x32xf32>
    %755 = vector.shape_cast %754 : vector<1x1x32x32xf32> to vector<32x32xf32>
    %756 = vector.broadcast %753 : f32 to vector<32x32xf32>
    %757 = arith.mulf %756, %755 : vector<32x32xf32>
    %758 = arith.addf %752, %757 : vector<32x32xf32>
    %c0_343 = arith.constant 0 : index
    %759 = memref.load %arg7[%c0_343] : memref<4xf32, #tpu.memory_space<smem>>
    %760 = vector.broadcast %759 : f32 to vector<32x32xf32>
    %761 = arith.addf %758, %760 : vector<32x32xf32>
    %c0_344 = arith.constant 0 : index
    %c4_345 = arith.constant 4 : index
    %c0_346 = arith.constant 0 : index
    %c0_347 = arith.constant 0 : index
    %762 = vector.load %arg8[%c0_344, %c4_345, %c0_346, %c0_347] : memref<1x8x32x32xf32, #tpu.memory_space<vmem>>, vector<1x1x32x32xf32>
    %763 = vector.shape_cast %762 : vector<1x1x32x32xf32> to vector<32x32xf32>
    %764 = vector.shape_cast %761 : vector<32x32xf32> to vector<1x1x32x32xf32>
    tpu.vector_store %arg8[%c0_344, %c4_345, %c0_346, %c0_347], %764 {strides = array<i32>} : memref<1x8x32x32xf32, #tpu.memory_space<vmem>>, vector<1x1x32x32xf32>,
    %c8_348 = arith.constant 8 : index
    %765 = memref.load %arg6[%c8_348] : memref<32xf32, #tpu.memory_space<smem>>
    %c0_349 = arith.constant 0 : index
    %c0_350 = arith.constant 0 : index
    %c0_351 = arith.constant 0 : index
    %c0_352 = arith.constant 0 : index
    %766 = vector.load %arg3[%c0_349, %c0_350, %c0_351, %c0_352] : memref<1x8x32x32xf32, #tpu.memory_space<vmem>>, vector<1x1x32x32xf32>
    %767 = vector.shape_cast %766 : vector<1x1x32x32xf32> to vector<32x32xf32>
    %768 = vector.broadcast %765 : f32 to vector<32x32xf32>
    %769 = arith.mulf %768, %767 : vector<32x32xf32>
    %c9_353 = arith.constant 9 : index
    %770 = memref.load %arg6[%c9_353] : memref<32xf32, #tpu.memory_space<smem>>
    %c0_354 = arith.constant 0 : index
    %c1_355 = arith.constant 1 : index
    %c0_356 = arith.constant 0 : index
    %c0_357 = arith.constant 0 : index
    %771 = vector.load %arg3[%c0_354, %c1_355, %c0_356, %c0_357] : memref<1x8x32x32xf32, #tpu.memory_space<vmem>>, vector<1x1x32x32xf32>
    %772 = vector.shape_cast %771 : vector<1x1x32x32xf32> to vector<32x32xf32>
    %773 = vector.broadcast %770 : f32 to vector<32x32xf32>
    %774 = arith.mulf %773, %772 : vector<32x32xf32>
    %775 = arith.addf %769, %774 : vector<32x32xf32>
    %c10_358 = arith.constant 10 : index
    %776 = memref.load %arg6[%c10_358] : memref<32xf32, #tpu.memory_space<smem>>
    %c0_359 = arith.constant 0 : index
    %c2_360 = arith.constant 2 : index
    %c0_361 = arith.constant 0 : index
    %c0_362 = arith.constant 0 : index
    %777 = vector.load %arg3[%c0_359, %c2_360, %c0_361, %c0_362] : memref<1x8x32x32xf32, #tpu.memory_space<vmem>>, vector<1x1x32x32xf32>
    %778 = vector.shape_cast %777 : vector<1x1x32x32xf32> to vector<32x32xf32>
    %779 = vector.broadcast %776 : f32 to vector<32x32xf32>
    %780 = arith.mulf %779, %778 : vector<32x32xf32>
    %781 = arith.addf %775, %780 : vector<32x32xf32>
    %c11_363 = arith.constant 11 : index
    %782 = memref.load %arg6[%c11_363] : memref<32xf32, #tpu.memory_space<smem>>
    %c0_364 = arith.constant 0 : index
    %c3_365 = arith.constant 3 : index
    %c0_366 = arith.constant 0 : index
    %c0_367 = arith.constant 0 : index
    %783 = vector.load %arg3[%c0_364, %c3_365, %c0_366, %c0_367] : memref<1x8x32x32xf32, #tpu.memory_space<vmem>>, vector<1x1x32x32xf32>
    %784 = vector.shape_cast %783 : vector<1x1x32x32xf32> to vector<32x32xf32>
    %785 = vector.broadcast %782 : f32 to vector<32x32xf32>
    %786 = arith.mulf %785, %784 : vector<32x32xf32>
    %787 = arith.addf %781, %786 : vector<32x32xf32>
    %c12_368 = arith.constant 12 : index
    %788 = memref.load %arg6[%c12_368] : memref<32xf32, #tpu.memory_space<smem>>
    %c0_369 = arith.constant 0 : index
    %c4_370 = arith.constant 4 : index
    %c0_371 = arith.constant 0 : index
    %c0_372 = arith.constant 0 : index
    %789 = vector.load %arg3[%c0_369, %c4_370, %c0_371, %c0_372] : memref<1x8x32x32xf32, #tpu.memory_space<vmem>>, vector<1x1x32x32xf32>
    %790 = vector.shape_cast %789 : vector<1x1x32x32xf32> to vector<32x32xf32>
    %791 = vector.broadcast %788 : f32 to vector<32x32xf32>
    %792 = arith.mulf %791, %790 : vector<32x32xf32>
    %793 = arith.addf %787, %792 : vector<32x32xf32>
    %c13_373 = arith.constant 13 : index
    %794 = memref.load %arg6[%c13_373] : memref<32xf32, #tpu.memory_space<smem>>
    %c0_374 = arith.constant 0 : index
    %c5_375 = arith.constant 5 : index
    %c0_376 = arith.constant 0 : index
    %c0_377 = arith.constant 0 : index
    %795 = vector.load %arg3[%c0_374, %c5_375, %c0_376, %c0_377] : memref<1x8x32x32xf32, #tpu.memory_space<vmem>>, vector<1x1x32x32xf32>
    %796 = vector.shape_cast %795 : vector<1x1x32x32xf32> to vector<32x32xf32>
    %797 = vector.broadcast %794 : f32 to vector<32x32xf32>
    %798 = arith.mulf %797, %796 : vector<32x32xf32>
    %799 = arith.addf %793, %798 : vector<32x32xf32>
    %c14_378 = arith.constant 14 : index
    %800 = memref.load %arg6[%c14_378] : memref<32xf32, #tpu.memory_space<smem>>
    %c0_379 = arith.constant 0 : index
    %c6_380 = arith.constant 6 : index
    %c0_381 = arith.constant 0 : index
    %c0_382 = arith.constant 0 : index
    %801 = vector.load %arg3[%c0_379, %c6_380, %c0_381, %c0_382] : memref<1x8x32x32xf32, #tpu.memory_space<vmem>>, vector<1x1x32x32xf32>
    %802 = vector.shape_cast %801 : vector<1x1x32x32xf32> to vector<32x32xf32>
    %803 = vector.broadcast %800 : f32 to vector<32x32xf32>
    %804 = arith.mulf %803, %802 : vector<32x32xf32>
    %805 = arith.addf %799, %804 : vector<32x32xf32>
    %c15_383 = arith.constant 15 : index
    %806 = memref.load %arg6[%c15_383] : memref<32xf32, #tpu.memory_space<smem>>
    %c0_384 = arith.constant 0 : index
    %c7_385 = arith.constant 7 : index
    %c0_386 = arith.constant 0 : index
    %c0_387 = arith.constant 0 : index
    %807 = vector.load %arg3[%c0_384, %c7_385, %c0_386, %c0_387] : memref<1x8x32x32xf32, #tpu.memory_space<vmem>>, vector<1x1x32x32xf32>
    %808 = vector.shape_cast %807 : vector<1x1x32x32xf32> to vector<32x32xf32>
    %809 = vector.broadcast %806 : f32 to vector<32x32xf32>
    %810 = arith.mulf %809, %808 : vector<32x32xf32>
    %811 = arith.addf %805, %810 : vector<32x32xf32>
    %c1_388 = arith.constant 1 : index
    %812 = memref.load %arg7[%c1_388] : memref<4xf32, #tpu.memory_space<smem>>
    %813 = vector.broadcast %812 : f32 to vector<32x32xf32>
    %814 = arith.addf %811, %813 : vector<32x32xf32>
    %c0_389 = arith.constant 0 : index
    %c5_390 = arith.constant 5 : index
    %c0_391 = arith.constant 0 : index
    %c0_392 = arith.constant 0 : index
    %815 = vector.load %arg8[%c0_389, %c5_390, %c0_391, %c0_392] : memref<1x8x32x32xf32, #tpu.memory_space<vmem>>, vector<1x1x32x32xf32>
    %816 = vector.shape_cast %815 : vector<1x1x32x32xf32> to vector<32x32xf32>
    %817 = vector.shape_cast %814 : vector<32x32xf32> to vector<1x1x32x32xf32>
    tpu.vector_store %arg8[%c0_389, %c5_390, %c0_391, %c0_392], %817 {strides = array<i32>} : memref<1x8x32x32xf32, #tpu.memory_space<vmem>>, vector<1x1x32x32xf32>,
    %c16_393 = arith.constant 16 : index
    %818 = memref.load %arg6[%c16_393] : memref<32xf32, #tpu.memory_space<smem>>
    %c0_394 = arith.constant 0 : index
    %c0_395 = arith.constant 0 : index
    %c0_396 = arith.constant 0 : index
    %c0_397 = arith.constant 0 : index
    %819 = vector.load %arg3[%c0_394, %c0_395, %c0_396, %c0_397] : memref<1x8x32x32xf32, #tpu.memory_space<vmem>>, vector<1x1x32x32xf32>
    %820 = vector.shape_cast %819 : vector<1x1x32x32xf32> to vector<32x32xf32>
    %821 = vector.broadcast %818 : f32 to vector<32x32xf32>
    %822 = arith.mulf %821, %820 : vector<32x32xf32>
    %c17_398 = arith.constant 17 : index
    %823 = memref.load %arg6[%c17_398] : memref<32xf32, #tpu.memory_space<smem>>
    %c0_399 = arith.constant 0 : index
    %c1_400 = arith.constant 1 : index
    %c0_401 = arith.constant 0 : index
    %c0_402 = arith.constant 0 : index
    %824 = vector.load %arg3[%c0_399, %c1_400, %c0_401, %c0_402] : memref<1x8x32x32xf32, #tpu.memory_space<vmem>>, vector<1x1x32x32xf32>
    %825 = vector.shape_cast %824 : vector<1x1x32x32xf32> to vector<32x32xf32>
    %826 = vector.broadcast %823 : f32 to vector<32x32xf32>
    %827 = arith.mulf %826, %825 : vector<32x32xf32>
    %828 = arith.addf %822, %827 : vector<32x32xf32>
    %c18_403 = arith.constant 18 : index
    %829 = memref.load %arg6[%c18_403] : memref<32xf32, #tpu.memory_space<smem>>
    %c0_404 = arith.constant 0 : index
    %c2_405 = arith.constant 2 : index
    %c0_406 = arith.constant 0 : index
    %c0_407 = arith.constant 0 : index
    %830 = vector.load %arg3[%c0_404, %c2_405, %c0_406, %c0_407] : memref<1x8x32x32xf32, #tpu.memory_space<vmem>>, vector<1x1x32x32xf32>
    %831 = vector.shape_cast %830 : vector<1x1x32x32xf32> to vector<32x32xf32>
    %832 = vector.broadcast %829 : f32 to vector<32x32xf32>
    %833 = arith.mulf %832, %831 : vector<32x32xf32>
    %834 = arith.addf %828, %833 : vector<32x32xf32>
    %c19_408 = arith.constant 19 : index
    %835 = memref.load %arg6[%c19_408] : memref<32xf32, #tpu.memory_space<smem>>
    %c0_409 = arith.constant 0 : index
    %c3_410 = arith.constant 3 : index
    %c0_411 = arith.constant 0 : index
    %c0_412 = arith.constant 0 : index
    %836 = vector.load %arg3[%c0_409, %c3_410, %c0_411, %c0_412] : memref<1x8x32x32xf32, #tpu.memory_space<vmem>>, vector<1x1x32x32xf32>
    %837 = vector.shape_cast %836 : vector<1x1x32x32xf32> to vector<32x32xf32>
    %838 = vector.broadcast %835 : f32 to vector<32x32xf32>
    %839 = arith.mulf %838, %837 : vector<32x32xf32>
    %840 = arith.addf %834, %839 : vector<32x32xf32>
    %c20_413 = arith.constant 20 : index
    %841 = memref.load %arg6[%c20_413] : memref<32xf32, #tpu.memory_space<smem>>
    %c0_414 = arith.constant 0 : index
    %c4_415 = arith.constant 4 : index
    %c0_416 = arith.constant 0 : index
    %c0_417 = arith.constant 0 : index
    %842 = vector.load %arg3[%c0_414, %c4_415, %c0_416, %c0_417] : memref<1x8x32x32xf32, #tpu.memory_space<vmem>>, vector<1x1x32x32xf32>
    %843 = vector.shape_cast %842 : vector<1x1x32x32xf32> to vector<32x32xf32>
    %844 = vector.broadcast %841 : f32 to vector<32x32xf32>
    %845 = arith.mulf %844, %843 : vector<32x32xf32>
    %846 = arith.addf %840, %845 : vector<32x32xf32>
    %c21_418 = arith.constant 21 : index
    %847 = memref.load %arg6[%c21_418] : memref<32xf32, #tpu.memory_space<smem>>
    %c0_419 = arith.constant 0 : index
    %c5_420 = arith.constant 5 : index
    %c0_421 = arith.constant 0 : index
    %c0_422 = arith.constant 0 : index
    %848 = vector.load %arg3[%c0_419, %c5_420, %c0_421, %c0_422] : memref<1x8x32x32xf32, #tpu.memory_space<vmem>>, vector<1x1x32x32xf32>
    %849 = vector.shape_cast %848 : vector<1x1x32x32xf32> to vector<32x32xf32>
    %850 = vector.broadcast %847 : f32 to vector<32x32xf32>
    %851 = arith.mulf %850, %849 : vector<32x32xf32>
    %852 = arith.addf %846, %851 : vector<32x32xf32>
    %c22_423 = arith.constant 22 : index
    %853 = memref.load %arg6[%c22_423] : memref<32xf32, #tpu.memory_space<smem>>
    %c0_424 = arith.constant 0 : index
    %c6_425 = arith.constant 6 : index
    %c0_426 = arith.constant 0 : index
    %c0_427 = arith.constant 0 : index
    %854 = vector.load %arg3[%c0_424, %c6_425, %c0_426, %c0_427] : memref<1x8x32x32xf32, #tpu.memory_space<vmem>>, vector<1x1x32x32xf32>
    %855 = vector.shape_cast %854 : vector<1x1x32x32xf32> to vector<32x32xf32>
    %856 = vector.broadcast %853 : f32 to vector<32x32xf32>
    %857 = arith.mulf %856, %855 : vector<32x32xf32>
    %858 = arith.addf %852, %857 : vector<32x32xf32>
    %c23_428 = arith.constant 23 : index
    %859 = memref.load %arg6[%c23_428] : memref<32xf32, #tpu.memory_space<smem>>
    %c0_429 = arith.constant 0 : index
    %c7_430 = arith.constant 7 : index
    %c0_431 = arith.constant 0 : index
    %c0_432 = arith.constant 0 : index
    %860 = vector.load %arg3[%c0_429, %c7_430, %c0_431, %c0_432] : memref<1x8x32x32xf32, #tpu.memory_space<vmem>>, vector<1x1x32x32xf32>
    %861 = vector.shape_cast %860 : vector<1x1x32x32xf32> to vector<32x32xf32>
    %862 = vector.broadcast %859 : f32 to vector<32x32xf32>
    %863 = arith.mulf %862, %861 : vector<32x32xf32>
    %864 = arith.addf %858, %863 : vector<32x32xf32>
    %c2_433 = arith.constant 2 : index
    %865 = memref.load %arg7[%c2_433] : memref<4xf32, #tpu.memory_space<smem>>
    %866 = vector.broadcast %865 : f32 to vector<32x32xf32>
    %867 = arith.addf %864, %866 : vector<32x32xf32>
    %c0_434 = arith.constant 0 : index
    %c6_435 = arith.constant 6 : index
    %c0_436 = arith.constant 0 : index
    %c0_437 = arith.constant 0 : index
    %868 = vector.load %arg8[%c0_434, %c6_435, %c0_436, %c0_437] : memref<1x8x32x32xf32, #tpu.memory_space<vmem>>, vector<1x1x32x32xf32>
    %869 = vector.shape_cast %868 : vector<1x1x32x32xf32> to vector<32x32xf32>
    %870 = vector.shape_cast %867 : vector<32x32xf32> to vector<1x1x32x32xf32>
    tpu.vector_store %arg8[%c0_434, %c6_435, %c0_436, %c0_437], %870 {strides = array<i32>} : memref<1x8x32x32xf32, #tpu.memory_space<vmem>>, vector<1x1x32x32xf32>,
    %c24_438 = arith.constant 24 : index
    %871 = memref.load %arg6[%c24_438] : memref<32xf32, #tpu.memory_space<smem>>
    %c0_439 = arith.constant 0 : index
    %c0_440 = arith.constant 0 : index
    %c0_441 = arith.constant 0 : index
    %c0_442 = arith.constant 0 : index
    %872 = vector.load %arg3[%c0_439, %c0_440, %c0_441, %c0_442] : memref<1x8x32x32xf32, #tpu.memory_space<vmem>>, vector<1x1x32x32xf32>
    %873 = vector.shape_cast %872 : vector<1x1x32x32xf32> to vector<32x32xf32>
    %874 = vector.broadcast %871 : f32 to vector<32x32xf32>
    %875 = arith.mulf %874, %873 : vector<32x32xf32>
    %c25_443 = arith.constant 25 : index
    %876 = memref.load %arg6[%c25_443] : memref<32xf32, #tpu.memory_space<smem>>
    %c0_444 = arith.constant 0 : index
    %c1_445 = arith.constant 1 : index
    %c0_446 = arith.constant 0 : index
    %c0_447 = arith.constant 0 : index
    %877 = vector.load %arg3[%c0_444, %c1_445, %c0_446, %c0_447] : memref<1x8x32x32xf32, #tpu.memory_space<vmem>>, vector<1x1x32x32xf32>
    %878 = vector.shape_cast %877 : vector<1x1x32x32xf32> to vector<32x32xf32>
    %879 = vector.broadcast %876 : f32 to vector<32x32xf32>
    %880 = arith.mulf %879, %878 : vector<32x32xf32>
    %881 = arith.addf %875, %880 : vector<32x32xf32>
    %c26_448 = arith.constant 26 : index
    %882 = memref.load %arg6[%c26_448] : memref<32xf32, #tpu.memory_space<smem>>
    %c0_449 = arith.constant 0 : index
    %c2_450 = arith.constant 2 : index
    %c0_451 = arith.constant 0 : index
    %c0_452 = arith.constant 0 : index
    %883 = vector.load %arg3[%c0_449, %c2_450, %c0_451, %c0_452] : memref<1x8x32x32xf32, #tpu.memory_space<vmem>>, vector<1x1x32x32xf32>
    %884 = vector.shape_cast %883 : vector<1x1x32x32xf32> to vector<32x32xf32>
    %885 = vector.broadcast %882 : f32 to vector<32x32xf32>
    %886 = arith.mulf %885, %884 : vector<32x32xf32>
    %887 = arith.addf %881, %886 : vector<32x32xf32>
    %c27_453 = arith.constant 27 : index
    %888 = memref.load %arg6[%c27_453] : memref<32xf32, #tpu.memory_space<smem>>
    %c0_454 = arith.constant 0 : index
    %c3_455 = arith.constant 3 : index
    %c0_456 = arith.constant 0 : index
    %c0_457 = arith.constant 0 : index
    %889 = vector.load %arg3[%c0_454, %c3_455, %c0_456, %c0_457] : memref<1x8x32x32xf32, #tpu.memory_space<vmem>>, vector<1x1x32x32xf32>
    %890 = vector.shape_cast %889 : vector<1x1x32x32xf32> to vector<32x32xf32>
    %891 = vector.broadcast %888 : f32 to vector<32x32xf32>
    %892 = arith.mulf %891, %890 : vector<32x32xf32>
    %893 = arith.addf %887, %892 : vector<32x32xf32>
    %c28_458 = arith.constant 28 : index
    %894 = memref.load %arg6[%c28_458] : memref<32xf32, #tpu.memory_space<smem>>
    %c0_459 = arith.constant 0 : index
    %c4_460 = arith.constant 4 : index
    %c0_461 = arith.constant 0 : index
    %c0_462 = arith.constant 0 : index
    %895 = vector.load %arg3[%c0_459, %c4_460, %c0_461, %c0_462] : memref<1x8x32x32xf32, #tpu.memory_space<vmem>>, vector<1x1x32x32xf32>
    %896 = vector.shape_cast %895 : vector<1x1x32x32xf32> to vector<32x32xf32>
    %897 = vector.broadcast %894 : f32 to vector<32x32xf32>
    %898 = arith.mulf %897, %896 : vector<32x32xf32>
    %899 = arith.addf %893, %898 : vector<32x32xf32>
    %c29_463 = arith.constant 29 : index
    %900 = memref.load %arg6[%c29_463] : memref<32xf32, #tpu.memory_space<smem>>
    %c0_464 = arith.constant 0 : index
    %c5_465 = arith.constant 5 : index
    %c0_466 = arith.constant 0 : index
    %c0_467 = arith.constant 0 : index
    %901 = vector.load %arg3[%c0_464, %c5_465, %c0_466, %c0_467] : memref<1x8x32x32xf32, #tpu.memory_space<vmem>>, vector<1x1x32x32xf32>
    %902 = vector.shape_cast %901 : vector<1x1x32x32xf32> to vector<32x32xf32>
    %903 = vector.broadcast %900 : f32 to vector<32x32xf32>
    %904 = arith.mulf %903, %902 : vector<32x32xf32>
    %905 = arith.addf %899, %904 : vector<32x32xf32>
    %c30_468 = arith.constant 30 : index
    %906 = memref.load %arg6[%c30_468] : memref<32xf32, #tpu.memory_space<smem>>
    %c0_469 = arith.constant 0 : index
    %c6_470 = arith.constant 6 : index
    %c0_471 = arith.constant 0 : index
    %c0_472 = arith.constant 0 : index
    %907 = vector.load %arg3[%c0_469, %c6_470, %c0_471, %c0_472] : memref<1x8x32x32xf32, #tpu.memory_space<vmem>>, vector<1x1x32x32xf32>
    %908 = vector.shape_cast %907 : vector<1x1x32x32xf32> to vector<32x32xf32>
    %909 = vector.broadcast %906 : f32 to vector<32x32xf32>
    %910 = arith.mulf %909, %908 : vector<32x32xf32>
    %911 = arith.addf %905, %910 : vector<32x32xf32>
    %c31_473 = arith.constant 31 : index
    %912 = memref.load %arg6[%c31_473] : memref<32xf32, #tpu.memory_space<smem>>
    %c0_474 = arith.constant 0 : index
    %c7_475 = arith.constant 7 : index
    %c0_476 = arith.constant 0 : index
    %c0_477 = arith.constant 0 : index
    %913 = vector.load %arg3[%c0_474, %c7_475, %c0_476, %c0_477] : memref<1x8x32x32xf32, #tpu.memory_space<vmem>>, vector<1x1x32x32xf32>
    %914 = vector.shape_cast %913 : vector<1x1x32x32xf32> to vector<32x32xf32>
    %915 = vector.broadcast %912 : f32 to vector<32x32xf32>
    %916 = arith.mulf %915, %914 : vector<32x32xf32>
    %917 = arith.addf %911, %916 : vector<32x32xf32>
    %c3_478 = arith.constant 3 : index
    %918 = memref.load %arg7[%c3_478] : memref<4xf32, #tpu.memory_space<smem>>
    %919 = vector.broadcast %918 : f32 to vector<32x32xf32>
    %920 = arith.addf %917, %919 : vector<32x32xf32>
    %c0_479 = arith.constant 0 : index
    %c7_480 = arith.constant 7 : index
    %c0_481 = arith.constant 0 : index
    %c0_482 = arith.constant 0 : index
    %921 = vector.load %arg8[%c0_479, %c7_480, %c0_481, %c0_482] : memref<1x8x32x32xf32, #tpu.memory_space<vmem>>, vector<1x1x32x32xf32>
    %922 = vector.shape_cast %921 : vector<1x1x32x32xf32> to vector<32x32xf32>
    %923 = vector.shape_cast %920 : vector<32x32xf32> to vector<1x1x32x32xf32>
    tpu.vector_store %arg8[%c0_479, %c7_480, %c0_481, %c0_482], %923 {strides = array<i32>} : memref<1x8x32x32xf32, #tpu.memory_space<vmem>>, vector<1x1x32x32xf32>,
    return
  }
  func.func @transform_0(%arg0: i32, %arg1: i32) -> (i32, i32, i32, i32) {
    %c0_i32 = arith.constant 0 : i32
    %c0_i32_0 = arith.constant 0 : i32
    %c0_i32_1 = arith.constant 0 : i32
    return %arg0, %c0_i32, %arg1, %c0_i32_0 : i32, i32, i32, i32
  }
  func.func @transform_1(%arg0: i32, %arg1: i32) -> (i32, i32, i32, i32) {
    %c0_i32 = arith.constant 0 : i32
    %c0_i32_0 = arith.constant 0 : i32
    %c0_i32_1 = arith.constant 0 : i32
    return %arg0, %c0_i32, %arg1, %c0_i32_0 : i32, i32, i32, i32
  }
  func.func @transform_2(%arg0: i32, %arg1: i32) -> i32 {
    %c0_i32 = arith.constant 0 : i32
    %c0_i32_0 = arith.constant 0 : i32
    return %c0_i32 : i32
  }
  func.func @transform_3(%arg0: i32, %arg1: i32) -> i32 {
    %c0_i32 = arith.constant 0 : i32
    %c0_i32_0 = arith.constant 0 : i32
    return %c0_i32 : i32
  }
  func.func @transform_4(%arg0: i32, %arg1: i32) -> i32 {
    %c0_i32 = arith.constant 0 : i32
    %c0_i32_0 = arith.constant 0 : i32
    return %c0_i32 : i32
  }
  func.func @transform_5(%arg0: i32, %arg1: i32) -> i32 {
    %c0_i32 = arith.constant 0 : i32
    %c0_i32_0 = arith.constant 0 : i32
    return %c0_i32 : i32
  }
  func.func @transform_6(%arg0: i32, %arg1: i32) -> (i32, i32, i32, i32) {
    %c0_i32 = arith.constant 0 : i32
    %c0_i32_0 = arith.constant 0 : i32
    %c0_i32_1 = arith.constant 0 : i32
    return %arg0, %c0_i32, %arg1, %c0_i32_0 : i32, i32, i32, i32
  }
}

</mosaic_0001>

<llo_original>
// kernel: residual_upsample.1
$region0: #{residual_upsample.1}
  #allocation0 [shape = 'u32[]', space=smem, size = 0x4, offset = 0x4, fixed_abs, tag = 'smem constant byte address 0x4 - core index']
  #allocation1 [shape = 'u32[144,128]{1,0:T(1,128)}', space=vmem, size = 0x12000, scoped, tag = 'internal scratch']
  %s0 = inlined_call_operand.hbm [shape: f32[2,8,16,16], index: 0, kind: input, shape index: {}]
  %s1 = inlined_call_operand.hbm [shape: f32[2,8,32,32], index: 1, kind: input, shape index: {}]
  %s2 = inlined_call_operand.vmem [shape: f32[128], index: 2, kind: input, shape index: {}]
  %s3 = inlined_call_operand.vmem [shape: f32[4], index: 3, kind: input, shape index: {}]
  %s4 = inlined_call_operand.vmem [shape: f32[32], index: 4, kind: input, shape index: {}]
  %s5 = inlined_call_operand.vmem [shape: f32[4], index: 5, kind: input, shape index: {}]
  %s6 = inlined_call_operand.hbm [shape: f32[2,8,32,32], index: 6, kind: output, shape index: {}]
  %s7 = sld [smem:[#allocation0]]
  $region81: #{residual_upsample.1} parent=0
    _
  %s9 = ssub.s32 1, %s7
  %s10 = scalar_select 0, %s9, %s7
  $region1: #{residual_upsample.1} parent=0
    #allocation2 [shape = 'u8[131072]{0}', space=vmem, size = 0x20000, scoped, tag = 'input window, operand 0']
    #allocation3 [shape = 's32[2]{0}', space=sflag, size = 0x8, scoped, tag = 'scoped memory for residual_upsample.1']
    #allocation4 [shape = 's32[2]{0}', space=sflag, size = 0x8, scoped, tag = 'scoped memory for residual_upsample.1']
    #allocation5 [shape = 's32[2]{0}', space=sflag, size = 0x8, scoped, tag = 'scoped memory for residual_upsample.1']
    #allocation6 [shape = 'u8[262144]{0}', space=vmem, size = 0x40000, scoped, tag = 'input window, operand 1']
    #allocation7 [shape = 's32[2]{0}', space=sflag, size = 0x8, scoped, tag = 'scoped memory for residual_upsample.1']
    #allocation8 [shape = 'u8[512]{0}', space=smem, size = 0x200, scoped, tag = 'input window, operand 2, single buffered']
    #allocation9 [shape = 'u8[512]{0}', space=smem, size = 0x200, scoped, tag = 'input window, operand 3, single buffered']
    #allocation10 [shape = 's32[1]{0}', space=sflag, size = 0x4, scoped, tag = 'scoped memory for residual_upsample.1']
    #allocation11 [shape = 'u8[512]{0}', space=smem, size = 0x200, scoped, tag = 'input window, operand 4, single buffered']
    #allocation12 [shape = 'u8[512]{0}', space=smem, size = 0x200, scoped, tag = 'input window, operand 5, single buffered']
    #allocation13 [shape = 's32[1]{0}', space=sflag, size = 0x4, scoped, tag = 'scoped memory for residual_upsample.1']
    #allocation14 [shape = 'u8[262144]{0}', space=vmem, size = 0x40000, scoped, tag = 'output window, operand 0']
    %11 = vsyncpa [#allocation3], 0
    %s12 = scalar_lea.sflag [#allocation3], 1
    %13 = vsyncpa %s12, 0
    %14 = vsyncpa [#allocation7], 0
    %s15 = scalar_lea.sflag [#allocation7], 1
    %16 = vsyncpa %s15, 0
    %17 = vsyncpa [#allocation5], 0
    %18 = vsyncpa [#allocation10], 0
    %19 = vsyncpa [#allocation13], 0
    %20 = vsyncpa [#allocation4], 0
    %s21 = scalar_lea.sflag [#allocation4], 1
    %22 = vsyncpa %s21, 0
    loop: start=0, step=1, limit=4
    $region2: #{residual_upsample.1} parent=1 // loop_pre_header
      _
    $region3: #{residual_upsample.1} parent=1 // loop_header
      %s24 = sphi 0, %s28
      %p25 = scmp.ge.s32.totalorder %s24, 4
      %s31 = sphi 0, %s43
      %s32 = sphi 0, %s39
      %s33 = sphi 0, %s31
      %s34 = sphi 0, %s32
      %s35 = sphi 0, %s33
      %s36 = sphi 0, %s34
      %s48 = sphi 0, %s50
      %s51 = sphi 0, %s48
      %s52 = sphi 0, %s51
      %s68 = sphi 0, %s52
      %s76 = sphi 0, %s78
      %s79 = sphi 0, %s76
      %s80 = sphi 0, %s79
      %s96 = sphi 0, %s80
      %s100 = sphi 0, %s100
      %s102 = sphi 0, %s100
      %s103 = sphi 0, %s102
      %s117 = sphi 0, %s103
      %s121 = sphi 0, %s121
      %s123 = sphi 0, %s121
      %s124 = sphi 0, %s123
      %s138 = sphi 0, %s124
      %s142 = sphi 0, %s142
      %s144 = sphi 0, %s142
      %s145 = sphi 0, %s144
      %s159 = sphi 0, %s145
      %s163 = sphi 0, %s163
      %s165 = sphi 0, %s163
      %s166 = sphi 0, %s165
      %s180 = sphi 0, %s166
      %s188 = sphi 0, %s190
      %s191 = sphi 0, %s188
      %s192 = sphi 0, %s191
      %s208 = sphi 0, %s192
    $region4: #{residual_upsample.1} parent=1 // loop_header_branch
      %27 = sbr.rel (%p25) target = $region8
    $region5: #{residual_upsample.1} parent=1 // loop_body
      %s29 = ssub.s32 %s24, 1
      %s30 = ssub.s32 %s24, 2
      %s37 = sadd.s32 1, %s32
      %p38 = scmp.ge.s32.totalorder %s37, 1
      %s39 = scalar_select %p38, 0, %s37
      %s40 = sadd.s32 1, %s31
      %s41 = scalar_select %p38, %s40, %s31
      %p42 = scmp.ge.s32.totalorder %s41, 2
      %s43 = scalar_select %p42, 0, %s41
      %s44 = ssub.s32 %s31, %s43
      %s45 = ssub.s32 %s32, %s39
      %s46 = sor.u32 %s44, %s45
      %p47 = scmp.eq.s32.totalorder %s46, 0
      %s49 = sadd.s32 %s48, 1
      %s50 = scalar_select %p47, %s48, %s49
      %p53 = pneg %p47
      %p54 = scmp.eq.s32.totalorder %s24, 1
      %p55 = por %p53, %p54
      %p56 = scmp.ne.s32.totalorder %s48, %s51
      %p57 = scmp.eq.s32.totalorder %s24, 0
      %p58 = por %p56, %p57
      %p59 = scmp.ne.s32.totalorder %s48, %s51
      %p60 = scmp.eq.s32.totalorder %s29, 1
      %p61 = por %p59, %p60
      %p62 = scmp.ne.s32.totalorder %s51, %s52
      %p63 = scmp.eq.s32.totalorder %s29, 0
      %p64 = por %p62, %p63
      %p65 = scmp.ne.s32.totalorder %s51, %s52
      %p66 = scmp.eq.s32.totalorder %s30, 1
      %p67 = por %p65, %p66
      %p69 = scmp.ne.s32.totalorder %s52, %s68
      %p70 = scmp.eq.s32.totalorder %s30, 0
      %p71 = por %p69, %p70
      %s72 = ssub.s32 %s31, %s43
      %s73 = ssub.s32 %s32, %s39
      %s74 = sor.u32 %s72, %s73
      %p75 = scmp.eq.s32.totalorder %s74, 0
      %s77 = sadd.s32 %s76, 1
      %s78 = scalar_select %p75, %s76, %s77
      %p81 = pneg %p75
      %p82 = scmp.eq.s32.totalorder %s24, 1
      %p83 = por %p81, %p82
      %p84 = scmp.ne.s32.totalorder %s76, %s79
      %p85 = scmp.eq.s32.totalorder %s24, 0
      %p86 = por %p84, %p85
      %p87 = scmp.ne.s32.totalorder %s76, %s79
      %p88 = scmp.eq.s32.totalorder %s29, 1
      %p89 = por %p87, %p88
      %p90 = scmp.ne.s32.totalorder %s79, %s80
      %p91 = scmp.eq.s32.totalorder %s29, 0
      %p92 = por %p90, %p91
      %p93 = scmp.ne.s32.totalorder %s79, %s80
      %p94 = scmp.eq.s32.totalorder %s30, 1
      %p95 = por %p93, %p94
      %p97 = scmp.ne.s32.totalorder %s80, %s96
      %p98 = scmp.eq.s32.totalorder %s30, 0
      %p99 = por %p97, %p98
      %s101 = sadd.s32 %s100, 1
      %p104 = scmp.eq.s32.totalorder %s24, 1
      %p105 = scmp.ne.s32.totalorder %s100, %s102
      %p106 = scmp.eq.s32.totalorder %s24, 0
      %p107 = por %p105, %p106
      %p108 = scmp.ne.s32.totalorder %s100, %s102
      %p109 = scmp.eq.s32.totalorder %s29, 1
      %p110 = por %p108, %p109
      %p111 = scmp.ne.s32.totalorder %s102, %s103
      %p112 = scmp.eq.s32.totalorder %s29, 0
      %p113 = por %p111, %p112
      %p114 = scmp.ne.s32.totalorder %s102, %s103
      %p115 = scmp.eq.s32.totalorder %s30, 1
      %p116 = por %p114, %p115
      %p118 = scmp.ne.s32.totalorder %s103, %s117
      %p119 = scmp.eq.s32.totalorder %s30, 0
      %p120 = por %p118, %p119
      %s122 = sadd.s32 %s121, 1
      %p125 = scmp.eq.s32.totalorder %s24, 1
      %p126 = scmp.ne.s32.totalorder %s121, %s123
      %p127 = scmp.eq.s32.totalorder %s24, 0
      %p128 = por %p126, %p127
      %p129 = scmp.ne.s32.totalorder %s121, %s123
      %p130 = scmp.eq.s32.totalorder %s29, 1
      %p131 = por %p129, %p130
      %p132 = scmp.ne.s32.totalorder %s123, %s124
      %p133 = scmp.eq.s32.totalorder %s29, 0
      %p134 = por %p132, %p133
      %p135 = scmp.ne.s32.totalorder %s123, %s124
      %p136 = scmp.eq.s32.totalorder %s30, 1
      %p137 = por %p135, %p136
      %p139 = scmp.ne.s32.totalorder %s124, %s138
      %p140 = scmp.eq.s32.totalorder %s30, 0
      %p141 = por %p139, %p140
      %s143 = sadd.s32 %s142, 1
      %p146 = scmp.eq.s32.totalorder %s24, 1
      %p147 = scmp.ne.s32.totalorder %s142, %s144
      %p148 = scmp.eq.s32.totalorder %s24, 0
      %p149 = por %p147, %p148
      %p150 = scmp.ne.s32.totalorder %s142, %s144
      %p151 = scmp.eq.s32.totalorder %s29, 1
      %p152 = por %p150, %p151
      %p153 = scmp.ne.s32.totalorder %s144, %s145
      %p154 = scmp.eq.s32.totalorder %s29, 0
      %p155 = por %p153, %p154
      %p156 = scmp.ne.s32.totalorder %s144, %s145
      %p157 = scmp.eq.s32.totalorder %s30, 1
      %p158 = por %p156, %p157
      %p160 = scmp.ne.s32.totalorder %s145, %s159
      %p161 = scmp.eq.s32.totalorder %s30, 0
      %p162 = por %p160, %p161
      %s164 = sadd.s32 %s163, 1
      %p167 = scmp.eq.s32.totalorder %s24, 1
      %p168 = scmp.ne.s32.totalorder %s163, %s165
      %p169 = scmp.eq.s32.totalorder %s24, 0
      %p170 = por %p168, %p169
      %p171 = scmp.ne.s32.totalorder %s163, %s165
      %p172 = scmp.eq.s32.totalorder %s29, 1
      %p173 = por %p171, %p172
      %p174 = scmp.ne.s32.totalorder %s165, %s166
      %p175 = scmp.eq.s32.totalorder %s29, 0
      %p176 = por %p174, %p175
      %p177 = scmp.ne.s32.totalorder %s165, %s166
      %p178 = scmp.eq.s32.totalorder %s30, 1
      %p179 = por %p177, %p178
      %p181 = scmp.ne.s32.totalorder %s166, %s180
      %p182 = scmp.eq.s32.totalorder %s30, 0
      %p183 = por %p181, %p182
      %s184 = ssub.s32 %s31, %s43
      %s185 = ssub.s32 %s32, %s39
      %s186 = sor.u32 %s184, %s185
      %p187 = scmp.eq.s32.totalorder %s186, 0
      %s189 = sadd.s32 %s188, 1
      %s190 = scalar_select %p187, %s188, %s189
      %p193 = pneg %p187
      %p194 = scmp.eq.s32.totalorder %s24, 1
      %p195 = por %p193, %p194
      %p196 = scmp.ne.s32.totalorder %s188, %s191
      %p197 = scmp.eq.s32.totalorder %s24, 0
      %p198 = por %p196, %p197
      %p199 = scmp.ne.s32.totalorder %s188, %s191
      %p200 = scmp.eq.s32.totalorder %s29, 1
      %p201 = por %p199, %p200
      %p202 = scmp.ne.s32.totalorder %s191, %s192
      %p203 = scmp.eq.s32.totalorder %s29, 0
      %p204 = por %p202, %p203
      %p205 = scmp.ne.s32.totalorder %s191, %s192
      %p206 = scmp.eq.s32.totalorder %s30, 1
      %p207 = por %p205, %p206
      %p209 = scmp.ne.s32.totalorder %s192, %s208
      %p210 = scmp.eq.s32.totalorder %s30, 0
      %p211 = por %p209, %p210
      %p212 = scmp.le.s32.totalorder 1, %s24
      %p213 = scmp.lt.s32.totalorder %s24, 3
      %p214 = pnand %p212, %p213
      %p215 = pneg %p214
      // Predicated region
      $region9: #{residual_upsample.1} parent=5 // pred_check
        _
      $region10: #{residual_upsample.1} parent=5 // pred_check_branch
        %217 = sbr.rel (%p214) target = $region12
      $region11: #{residual_upsample.1} parent=5 // pred_region
        %s218 = ssub.s32 %s24, 1
        // Predicated region
        $region13: #{residual_upsample.1} parent=11 // pred_check
          %p219 = pneg %p113
        $region14: #{residual_upsample.1} parent=11 // pred_check_branch
          %221 = sbr.rel (%p219) target = $region16
        $region15: #{residual_upsample.1} parent=11 // pred_region
          %s223 = ssub.s32 16, 16
          %224 = vsyncadd [#allocation5], %s223
          %s226 = sshll.u32 %s2, 4
          %s227 = int_to_ptr.vmem [resolvable:$true] %s226
          %229 = dma.vmem_to_smem %s227, 16, [#allocation8], [#allocation5]
        $region16: #{residual_upsample.1} parent=11 // pred_fallthru
          _
        // Predicated region
        $region17: #{residual_upsample.1} parent=11 // pred_check
          %p230 = pneg %p134
        $region18: #{residual_upsample.1} parent=11 // pred_check_branch
          %232 = sbr.rel (%p230) target = $region20
        $region19: #{residual_upsample.1} parent=11 // pred_region
          %s234 = ssub.s32 16, 16
          %235 = vsyncadd [#allocation10], %s234
          %s237 = sshll.u32 %s3, 4
          %s238 = int_to_ptr.vmem [resolvable:$true] %s237
          %240 = dma.vmem_to_smem %s238, 16, [#allocation9], [#allocation10]
        $region20: #{residual_upsample.1} parent=11 // pred_fallthru
          _
        // Predicated region
        $region21: #{residual_upsample.1} parent=11 // pred_check
          %p241 = pneg %p155
        $region22: #{residual_upsample.1} parent=11 // pred_check_branch
          %243 = sbr.rel (%p241) target = $region24
        $region23: #{residual_upsample.1} parent=11 // pred_region
          %s245 = ssub.s32 16, 16
          %246 = vsyncadd [#allocation10], %s245
          %s248 = sshll.u32 %s4, 4
          %s249 = int_to_ptr.vmem [resolvable:$true] %s248
          %251 = dma.vmem_to_smem %s249, 16, [#allocation11], [#allocation10]
        $region24: #{residual_upsample.1} parent=11 // pred_fallthru
          _
        // Predicated region
        $region25: #{residual_upsample.1} parent=11 // pred_check
          %p252 = pneg %p176
        $region26: #{residual_upsample.1} parent=11 // pred_check_branch
          %254 = sbr.rel (%p252) target = $region28
        $region27: #{residual_upsample.1} parent=11 // pred_region
          %s256 = ssub.s32 16, 16
          %257 = vsyncadd [#allocation13], %s256
          %s259 = sshll.u32 %s5, 4
          %s260 = int_to_ptr.vmem [resolvable:$true] %s259
          %262 = dma.vmem_to_smem %s260, 16, [#allocation12], [#allocation13]
        $region28: #{residual_upsample.1} parent=11 // pred_fallthru
          _
      $region12: #{residual_upsample.1} parent=5 // pred_fallthru
        _
      %p263 = scmp.lt.s32.totalorder %s24, 2
      // Predicated region
      $region29: #{residual_upsample.1} parent=5 // pred_check
        %p264 = pneg %p263
      $region30: #{residual_upsample.1} parent=5 // pred_check_branch
        %266 = sbr.rel (%p264) target = $region32
      $region31: #{residual_upsample.1} parent=5 // pred_region
        // Predicated region
        $region33: #{residual_upsample.1} parent=31 // pred_check
          %p267 = pneg %p58
        $region34: #{residual_upsample.1} parent=31 // pred_check_branch
          %269 = sbr.rel (%p267) target = $region36
        $region35: #{residual_upsample.1} parent=31 // pred_region
          %s270 = sand.u32 %s48, 1
          %s271 = scalar_lea.sflag [#allocation3], %s270
          %s272 = sand.u32 %s48, 1
          %s273 = smul.addr %s272, 128
          %s274 = scalar_lea.vmem [#allocation2], %s273
          %s275 = smul.u32 2, %s32
          %s277 = ssub.s32 2048, 2048
          %278 = vsyncadd %s271, %s277
          %s279 = smul.addr %s31, 16
          %s280 = sadd.s32 %s275, %s279
          %s281 = smul.addr %s280, 128
          %s282 = scalar_lea.hbm %s0, %s281
          %s283 = sshll.u32 %s274, 4
          %s284 = int_to_ptr.vmem [resolvable:$true] %s283
          %289 = dma.hbm_to_vmem [thread:$0]  %s282, 2048, %s284, %s271, 128, 128, 8
        $region36: #{residual_upsample.1} parent=31 // pred_fallthru
          _
        // Predicated region
        $region37: #{residual_upsample.1} parent=31 // pred_check
          %p290 = pneg %p86
        $region38: #{residual_upsample.1} parent=31 // pred_check_branch
          %292 = sbr.rel (%p290) target = $region40
        $region39: #{residual_upsample.1} parent=31 // pred_region
          %s293 = sand.u32 %s76, 1
          %s294 = scalar_lea.sflag [#allocation7], %s293
          %s295 = sand.u32 %s76, 1
          %s296 = smul.addr %s295, 256
          %s297 = scalar_lea.vmem [#allocation6], %s296
          %s298 = smul.u32 4, %s32
          %s300 = ssub.s32 4096, 4096
          %301 = vsyncadd %s294, %s300
          %s302 = smul.addr %s31, 32
          %s303 = sadd.s32 %s298, %s302
          %s304 = smul.addr %s303, 128
          %s305 = scalar_lea.hbm %s1, %s304
          %s306 = sshll.u32 %s297, 4
          %s307 = int_to_ptr.vmem [resolvable:$true] %s306
          %312 = dma.hbm_to_vmem [thread:$0]  %s305, 4096, %s307, %s294, 128, 128, 8
        $region40: #{residual_upsample.1} parent=31 // pred_fallthru
          _
      $region32: #{residual_upsample.1} parent=5 // pred_fallthru
        _
      %p313 = scmp.le.s32.totalorder 1, %s24
      %p314 = scmp.lt.s32.totalorder %s24, 3
      %p315 = pnand %p313, %p314
      %p316 = pneg %p315
      // Predicated region
      $region41: #{residual_upsample.1} parent=5 // pred_check
        _
      $region42: #{residual_upsample.1} parent=5 // pred_check_branch
        %318 = sbr.rel (%p315) target = $region44
      $region43: #{residual_upsample.1} parent=5 // pred_region
        %s319 = ssub.s32 %s24, 1
        %s320 = sand.u32 %s51, 1
        %s321 = scalar_lea.sflag [#allocation3], %s320
        %s322 = sand.u32 %s51, 1
        %s323 = smul.addr %s322, 128
        %s324 = scalar_lea.vmem [#allocation2], %s323
        // Predicated region
        $region45: #{residual_upsample.1} parent=43 // pred_check
          %p325 = pneg %p64
        $region46: #{residual_upsample.1} parent=43 // pred_check_branch
          %327 = sbr.rel (%p325) target = $region48
        $region47: #{residual_upsample.1} parent=43 // pred_region
          %328 = dma.done %s321, 2048
        $region48: #{residual_upsample.1} parent=43 // pred_fallthru
          _
        %s329 = sand.u32 %s79, 1
        %s330 = scalar_lea.sflag [#allocation7], %s329
        %s331 = sand.u32 %s79, 1
        %s332 = smul.addr %s331, 256
        %s333 = scalar_lea.vmem [#allocation6], %s332
        // Predicated region
        $region49: #{residual_upsample.1} parent=43 // pred_check
          %p334 = pneg %p92
        $region50: #{residual_upsample.1} parent=43 // pred_check_branch
          %336 = sbr.rel (%p334) target = $region52
        $region51: #{residual_upsample.1} parent=43 // pred_region
          %337 = dma.done %s330, 4096
        $region52: #{residual_upsample.1} parent=43 // pred_fallthru
          _
        // Predicated region
        $region53: #{residual_upsample.1} parent=43 // pred_check
          %p338 = pneg %p113
        $region54: #{residual_upsample.1} parent=43 // pred_check_branch
          %340 = sbr.rel (%p338) target = $region56
        $region55: #{residual_upsample.1} parent=43 // pred_region
          %341 = dma.done [#allocation5], 16
        $region56: #{residual_upsample.1} parent=43 // pred_fallthru
          _
        // Predicated region
        $region57: #{residual_upsample.1} parent=43 // pred_check
          %p342 = pneg %p134
        $region58: #{residual_upsample.1} parent=43 // pred_check_branch
          %344 = sbr.rel (%p342) target = $region60
        $region59: #{residual_upsample.1} parent=43 // pred_region
          %345 = dma.done [#allocation10], 16
        $region60: #{residual_upsample.1} parent=43 // pred_fallthru
          _
        // Predicated region
        $region61: #{residual_upsample.1} parent=43 // pred_check
          %p346 = pneg %p155
        $region62: #{residual_upsample.1} parent=43 // pred_check_branch
          %348 = sbr.rel (%p346) target = $region64
        $region63: #{residual_upsample.1} parent=43 // pred_region
          %349 = dma.done [#allocation10], 16
        $region64: #{residual_upsample.1} parent=43 // pred_fallthru
          _
        // Predicated region
        $region65: #{residual_upsample.1} parent=43 // pred_check
          %p350 = pneg %p176
        $region66: #{residual_upsample.1} parent=43 // pred_check_branch
          %352 = sbr.rel (%p350) target = $region68
        $region67: #{residual_upsample.1} parent=43 // pred_region
          %353 = dma.done [#allocation13], 16
        $region68: #{residual_upsample.1} parent=43 // pred_fallthru
          _
        %354 = sfence
        %s355 = sand.u32 %s51, 1
        %s356 = scalar_lea.sflag [#allocation3], %s355
        %s357 = sand.u32 %s51, 1
        %s358 = smul.addr %s357, 128
        %s359 = scalar_lea.vmem [#allocation2], %s358
        %p360 = pneg %p64
        %p361 = pneg %p61
        %s362 = sand.u32 %s79, 1
        %s363 = scalar_lea.sflag [#allocation7], %s362
        %s364 = sand.u32 %s79, 1
        %s365 = smul.addr %s364, 256
        %s366 = scalar_lea.vmem [#allocation6], %s365
        %p367 = pneg %p92
        %p368 = pneg %p89
        %p369 = pneg %p113
        %p370 = pneg %p110
        %p371 = pneg %p134
        %p372 = pneg %p131
        %p373 = pneg %p155
        %p374 = pneg %p152
        %p375 = pneg %p176
        %p376 = pneg %p173
        %p377 = pneg %p204
        %p378 = pneg %p201
        %s379 = sand.u32 %s191, 1
        %s380 = scalar_lea.sflag [#allocation4], %s379
        %s381 = sand.u32 %s191, 1
        %s382 = smul.addr %s381, 256
        %s383 = scalar_lea.vmem [#allocation14], %s382
        %s384 = smul.u32 2, %s34
        %s385 = smul.u32 4, %s34
        %s386 = smul.u32 4, %s34
        %v387 = vlaneseq
        %v388 = vand.u32 %v387, 127
        %v389 = vlaneseq
        %v390 = vshrl.u32 %v389, 7
        %v391 = vadd.s32 %v390, 8
        %v392 = vmul.u32 %v390, 2
        %v393 = vmul.u32 %v391, 2
        %vm394 = vcmp.eq.s32.totalorder %v388, %v392
        %vm395 = vcmp.eq.s32.totalorder %v388, %v393
        %v396 = vsel %vm394, 1, 0
        %v397 = vsel %vm395, 1, 0
        %v398 = vcvt.s32.f32 %v396
        %v399 = vcvt.s32.f32 %v397
        %v400 = vadd.s32 %v392, 1
        %v401 = vadd.s32 %v393, 1
        %vm402 = vcmp.eq.s32.totalorder %v388, %v400
        %vm403 = vcmp.eq.s32.totalorder %v388, %v401
        %v404 = vsel %vm402, 1, 0
        %v405 = vsel %vm403, 1, 0
        %v406 = vcvt.s32.f32 %v404
        %v407 = vcvt.s32.f32 %v405
        %v408 = vadd.s32 %v390, 16
        %v409 = vadd.s32 %v390, 24
        %v410 = vmul.u32 %v388, 2
        %vm411 = vcmp.eq.s32.totalorder %v390, %v410
        %vm412 = vcmp.eq.s32.totalorder %v391, %v410
        %vm413 = vcmp.eq.s32.totalorder %v408, %v410
        %vm414 = vcmp.eq.s32.totalorder %v409, %v410
        %v415 = vsel %vm411, 1, 0
        %v416 = vsel %vm412, 1, 0
        %v417 = vsel %vm413, 1, 0
        %v418 = vsel %vm414, 1, 0
        %v419 = vcvt.s32.f32 %v415
        %v420 = vcvt.s32.f32 %v416
        %v421 = vcvt.s32.f32 %v417
        %v422 = vcvt.s32.f32 %v418
        %v423 = vadd.s32 %v410, 1
        %vm424 = vcmp.eq.s32.totalorder %v390, %v423
        %vm425 = vcmp.eq.s32.totalorder %v391, %v423
        %vm426 = vcmp.eq.s32.totalorder %v408, %v423
        %vm427 = vcmp.eq.s32.totalorder %v409, %v423
        %v428 = vsel %vm424, 1, 0
        %v429 = vsel %vm425, 1, 0
        %v430 = vsel %vm426, 1, 0
        %v431 = vsel %vm427, 1, 0
        %v432 = vcvt.s32.f32 %v428
        %v433 = vcvt.s32.f32 %v429
        %v434 = vcvt.s32.f32 %v430
        %v435 = vcvt.s32.f32 %v431
        %v436 = vld [vmem:[%s324] sm:$0xff]
        %v437 = vld [vmem:[%s324 + $0x8] sm:$0xff]
        %s438 = sld [smem:[#allocation8]]
        %v439 = vstv %s438
        %v440 = vmul.f32 %v439, %v436
        %v441 = vmul.f32 %v439, %v437
        %s442 = sld [smem:[#allocation8 + $0x1]]
        %v443 = vstv %s442
        %v444 = vmul.f32 %v443, %v436
        %v445 = vmul.f32 %v443, %v437
        %s446 = scalar_lea.vmem %s324, 16 [#allocation2]
        %v447 = vld [vmem:[%s446] sm:$0xff]
        %v448 = vld [vmem:[%s446 + $0x8] sm:$0xff]
        %s449 = sld [smem:[#allocation8 + $0x10]]
        %v450 = vstv %s449
        %v451 = vmul.f32 %v450, %v447
        %v452 = vmul.f32 %v450, %v448
        %v453 = vadd.f32 %v440, %v451
        %v454 = vadd.f32 %v441, %v452
        %s455 = sld [smem:[#allocation8 + $0x11]]
        %v456 = vstv %s455
        %v457 = vmul.f32 %v456, %v447
        %v458 = vmul.f32 %v456, %v448
        %v459 = vadd.f32 %v444, %v457
        %v460 = vadd.f32 %v445, %v458
        %s461 = scalar_lea.vmem %s324, 32 [#allocation2]
        %v462 = vld [vmem:[%s461] sm:$0xff]
        %v463 = vld [vmem:[%s461 + $0x8] sm:$0xff]
        %s464 = sld [smem:[#allocation8 + $0x20]]
        %v465 = vstv %s464
        %v466 = vmul.f32 %v465, %v462
        %v467 = vmul.f32 %v465, %v463
        %v468 = vadd.f32 %v453, %v466
        %v469 = vadd.f32 %v454, %v467
        %s470 = sld [smem:[#allocation8 + $0x21]]
        %v471 = vstv %s470
        %v472 = vmul.f32 %v471, %v462
        %v473 = vmul.f32 %v471, %v463
        %v474 = vadd.f32 %v459, %v472
        %v475 = vadd.f32 %v460, %v473
        %s476 = scalar_lea.vmem %s324, 48 [#allocation2]
        %v477 = vld [vmem:[%s476] sm:$0xff]
        %v478 = vld [vmem:[%s476 + $0x8] sm:$0xff]
        %s479 = sld [smem:[#allocation8 + $0x30]]
        %v480 = vstv %s479
        %v481 = vmul.f32 %v480, %v477
        %v482 = vmul.f32 %v480, %v478
        %v483 = vadd.f32 %v468, %v481
        %v484 = vadd.f32 %v469, %v482
        %s485 = sld [smem:[#allocation8 + $0x31]]
        %v486 = vstv %s485
        %v487 = vmul.f32 %v486, %v477
        %v488 = vmul.f32 %v486, %v478
        %v489 = vadd.f32 %v474, %v487
        %v490 = vadd.f32 %v475, %v488
        %s491 = scalar_lea.vmem %s324, 64 [#allocation2]
        %v492 = vld [vmem:[%s491] sm:$0xff]
        %v493 = vld [vmem:[%s491 + $0x8] sm:$0xff]
        %s494 = sld [smem:[#allocation8 + $0x40]]
        %v495 = vstv %s494
        %v496 = vmul.f32 %v495, %v492
        %v497 = vmul.f32 %v495, %v493
        %v498 = vadd.f32 %v483, %v496
        %v499 = vadd.f32 %v484, %v497
        %s500 = sld [smem:[#allocation8 + $0x41]]
        %v501 = vstv %s500
        %v502 = vmul.f32 %v501, %v492
        %v503 = vmul.f32 %v501, %v493
        %v504 = vadd.f32 %v489, %v502
        %v505 = vadd.f32 %v490, %v503
        %s506 = scalar_lea.vmem %s324, 80 [#allocation2]
        %v507 = vld [vmem:[%s506] sm:$0xff]
        %v508 = vld [vmem:[%s506 + $0x8] sm:$0xff]
        %s509 = sld [smem:[#allocation8 + $0x50]]
        %v510 = vstv %s509
        %v511 = vmul.f32 %v510, %v507
        %v512 = vmul.f32 %v510, %v508
        %v513 = vadd.f32 %v498, %v511
        %v514 = vadd.f32 %v499, %v512
        %s515 = sld [smem:[#allocation8 + $0x51]]
        %v516 = vstv %s515
        %v517 = vmul.f32 %v516, %v507
        %v518 = vmul.f32 %v516, %v508
        %v519 = vadd.f32 %v504, %v517
        %v520 = vadd.f32 %v505, %v518
        %s521 = scalar_lea.vmem %s324, 96 [#allocation2]
        %v522 = vld [vmem:[%s521] sm:$0xff]
        %v523 = vld [vmem:[%s521 + $0x8] sm:$0xff]
        %s524 = sld [smem:[#allocation8 + $0x60]]
        %v525 = vstv %s524
        %v526 = vmul.f32 %v525, %v522
        %v527 = vmul.f32 %v525, %v523
        %v528 = vadd.f32 %v513, %v526
        %v529 = vadd.f32 %v514, %v527
        %s530 = sld [smem:[#allocation8 + $0x61]]
        %v531 = vstv %s530
        %v532 = vmul.f32 %v531, %v522
        %v533 = vmul.f32 %v531, %v523
        %v534 = vadd.f32 %v519, %v532
        %v535 = vadd.f32 %v520, %v533
        %s536 = scalar_lea.vmem %s324, 112 [#allocation2]
        %v537 = vld [vmem:[%s536] sm:$0xff]
        %v538 = vld [vmem:[%s536 + $0x8] sm:$0xff]
        %s539 = sld [smem:[#allocation8 + $0x70]]
        %v540 = vstv %s539
        %v541 = vmul.f32 %v540, %v537
        %v542 = vmul.f32 %v540, %v538
        %v543 = vadd.f32 %v528, %v541
        %v544 = vadd.f32 %v529, %v542
        %s545 = sld [smem:[#allocation8 + $0x71]]
        %v546 = vstv %s545
        %v547 = vmul.f32 %v546, %v537
        %v548 = vmul.f32 %v546, %v538
        %v549 = vadd.f32 %v534, %v547
        %v550 = vadd.f32 %v535, %v548
        %vm551 = vcmask 130048
        %v553 = vsel %vm551, %v549, 0
        %v556 = vsel %vm551, %v550, 0
        %558 = vmatprep.subr.mxu0 0.0
        %559 = vmatpush1.msra.mxu0 %v406
        %560 = vmatprep.subr.mxu0 0.0
        %561 = vmatpush1.msra.mxu0 %v407
        %562 = vmatprep.subr.mxu0 0.0
        %563 = vmatpush1.msra.mxu0 0.0
        %564 = vmatprep.subr.mxu0 0.0
        %565 = vmatpush1.msra.mxu0 0.0
        %566 = vmatprep.subr.mxu0 0.0
        %567 = vmatpush1.msra.mxu0 0.0
        %568 = vmatprep.subr.mxu0 0.0
        %569 = vmatpush1.msra.mxu0 0.0
        %570 = vmatprep.subr.mxu0 0.0
        %571 = vmatpush1.msra.mxu0 0.0
        %572 = vmatprep.subr.mxu0 0.0
        %573 = vmatpush1.msra.mxu0 0.0
        %574 = vmatprep.subr.mxu0 0.0
        %575 = vmatpush1.msra.mxu0 0.0
        %576 = vmatprep.subr.mxu0 0.0
        %577 = vmatpush1.msra.mxu0 0.0
        %578 = vmatprep.subr.mxu0 0.0
        %579 = vmatpush1.msra.mxu0 0.0
        %580 = vmatprep.subr.mxu0 0.0
        %581 = vmatpush1.msra.mxu0 0.0
        %582 = vmatprep.subr.mxu0 0.0
        %583 = vmatpush1.msra.mxu0 0.0
        %584 = vmatprep.subr.mxu0 0.0
        %585 = vmatpush1.msra.mxu0 0.0
        %586 = vmatprep.subr.mxu0 0.0
        %587 = vmatpush1.msra.mxu0 0.0
        %588 = vmatprep.subr.mxu0 0.0
        %589 = vmatpush1.msra.mxu0 0.0
        %590 = vmatprep.subr.mxu0 0.0
        %591 = vmatpush1.msra.mxu0 0.0
        %592 = vmatprep.subr.mxu0 0.0
        %593 = vmatpush1.msra.mxu0 0.0
        %594 = vmatprep.subr.mxu0 0.0
        %595 = vmatpush1.msra.mxu0 0.0
        %596 = vmatprep.subr.mxu0 0.0
        %597 = vmatpush1.msra.mxu0 0.0
        %598 = vmatprep.subr.mxu0 0.0
        %599 = vmatpush1.msra.mxu0 0.0
        %600 = vmatprep.subr.mxu0 0.0
        %601 = vmatpush1.msra.mxu0 0.0
        %602 = vmatprep.subr.mxu0 0.0
        %603 = vmatpush1.msra.mxu0 0.0
        %604 = vmatprep.subr.mxu0 0.0
        %605 = vmatpush1.msra.mxu0 0.0
        %606 = vmatprep.subr.mxu0 0.0
        %607 = vmatpush1.msra.mxu0 0.0
        %608 = vmatprep.subr.mxu0 0.0
        %609 = vmatpush1.msra.mxu0 0.0
        %610 = vmatprep.subr.mxu0 0.0
        %611 = vmatpush1.msra.mxu0 0.0
        %612 = vmatprep.subr.mxu0 0.0
        %613 = vmatpush1.msra.mxu0 0.0
        %614 = vmatprep.subr.mxu0 0.0
        %615 = vmatpush1.msra.mxu0 0.0
        %616 = vmatprep.subr.mxu0 0.0
        %617 = vmatpush1.msra.mxu0 0.0
        %618 = vmatprep.subr.mxu0 0.0
        %619 = vmatpush1.msra.mxu0 0.0
        %620 = vmatprep.subr.mxu0 0.0
        %621 = vmatpush1.msra.mxu0 0.0
        %622 = vmatprep.mubr.f32.mxu0 0.0
        %623 = vmatmul.mubr.f32.gmra.mrb[0].mxu0 %v553
        %v624 = vpop.f32.mrb[0].mxu0
        %v625 = vadd.f32 0.0, %v624
        %v626 = vpop.f32.mrb[0].mxu0
        %627 = vmatprep.mubr.f32.mxu0 0.0
        %628 = vmatmul.mubr.f32.gmra.mrb[0].mxu0 %v556
        %v629 = vpop.f32.mrb[0].mxu0
        %v630 = vadd.f32 0.0, %v629
        %v631 = vpop.f32.mrb[0].mxu0
        %632 = vdwg.mxu0
        %v634 = vsel %vm551, %v543, 0
        %v637 = vsel %vm551, %v544, 0
        %639 = vmatprep.subr.mxu0 0.0
        %640 = vmatpush1.msra.mxu0 %v398
        %641 = vmatprep.subr.mxu0 0.0
        %642 = vmatpush1.msra.mxu0 %v399
        %643 = vmatprep.subr.mxu0 0.0
        %644 = vmatpush1.msra.mxu0 0.0
        %645 = vmatprep.subr.mxu0 0.0
        %646 = vmatpush1.msra.mxu0 0.0
        %647 = vmatprep.subr.mxu0 0.0
        %648 = vmatpush1.msra.mxu0 0.0
        %649 = vmatprep.subr.mxu0 0.0
        %650 = vmatpush1.msra.mxu0 0.0
        %651 = vmatprep.subr.mxu0 0.0
        %652 = vmatpush1.msra.mxu0 0.0
        %653 = vmatprep.subr.mxu0 0.0
        %654 = vmatpush1.msra.mxu0 0.0
        %655 = vmatprep.subr.mxu0 0.0
        %656 = vmatpush1.msra.mxu0 0.0
        %657 = vmatprep.subr.mxu0 0.0
        %658 = vmatpush1.msra.mxu0 0.0
        %659 = vmatprep.subr.mxu0 0.0
        %660 = vmatpush1.msra.mxu0 0.0
        %661 = vmatprep.subr.mxu0 0.0
        %662 = vmatpush1.msra.mxu0 0.0
        %663 = vmatprep.subr.mxu0 0.0
        %664 = vmatpush1.msra.mxu0 0.0
        %665 = vmatprep.subr.mxu0 0.0
        %666 = vmatpush1.msra.mxu0 0.0
        %667 = vmatprep.subr.mxu0 0.0
        %668 = vmatpush1.msra.mxu0 0.0
        %669 = vmatprep.subr.mxu0 0.0
        %670 = vmatpush1.msra.mxu0 0.0
        %671 = vmatprep.subr.mxu0 0.0
        %672 = vmatpush1.msra.mxu0 0.0
        %673 = vmatprep.subr.mxu0 0.0
        %674 = vmatpush1.msra.mxu0 0.0
        %675 = vmatprep.subr.mxu0 0.0
        %676 = vmatpush1.msra.mxu0 0.0
        %677 = vmatprep.subr.mxu0 0.0
        %678 = vmatpush1.msra.mxu0 0.0
        %679 = vmatprep.subr.mxu0 0.0
        %680 = vmatpush1.msra.mxu0 0.0
        %681 = vmatprep.subr.mxu0 0.0
        %682 = vmatpush1.msra.mxu0 0.0
        %683 = vmatprep.subr.mxu0 0.0
        %684 = vmatpush1.msra.mxu0 0.0
        %685 = vmatprep.subr.mxu0 0.0
        %686 = vmatpush1.msra.mxu0 0.0
        %687 = vmatprep.subr.mxu0 0.0
        %688 = vmatpush1.msra.mxu0 0.0
        %689 = vmatprep.subr.mxu0 0.0
        %690 = vmatpush1.msra.mxu0 0.0
        %691 = vmatprep.subr.mxu0 0.0
        %692 = vmatpush1.msra.mxu0 0.0
        %693 = vmatprep.subr.mxu0 0.0
        %694 = vmatpush1.msra.mxu0 0.0
        %695 = vmatprep.subr.mxu0 0.0
        %696 = vmatpush1.msra.mxu0 0.0
        %697 = vmatprep.subr.mxu0 0.0
        %698 = vmatpush1.msra.mxu0 0.0
        %699 = vmatprep.subr.mxu0 0.0
        %700 = vmatpush1.msra.mxu0 0.0
        %701 = vmatprep.subr.mxu0 0.0
        %702 = vmatpush1.msra.mxu0 0.0
        %703 = vmatprep.mubr.f32.mxu0 0.0
        %704 = vmatmul.mubr.f32.gmra.mrb[0].mxu0 %v634
        %v705 = vpop.f32.mrb[0].mxu0
        %v706 = vadd.f32 %v625, %v705
        %v707 = vpop.f32.mrb[0].mxu0
        %708 = vmatprep.mubr.f32.mxu0 0.0
        %709 = vmatmul.mubr.f32.gmra.mrb[0].mxu0 %v637
        %v710 = vpop.f32.mrb[0].mxu0
        %v711 = vadd.f32 %v630, %v710
        %v712 = vpop.f32.mrb[0].mxu0
        %713 = vdwg.mxu0
        %s714 = sld [smem:[#allocation8 + $0x2]]
        %v715 = vstv %s714
        %v716 = vmul.f32 %v715, %v436
        %v717 = vmul.f32 %v715, %v437
        %s718 = sld [smem:[#allocation8 + $0x3]]
        %v719 = vstv %s718
        %v720 = vmul.f32 %v719, %v436
        %v721 = vmul.f32 %v719, %v437
        %s722 = sld [smem:[#allocation8 + $0x12]]
        %v723 = vstv %s722
        %v724 = vmul.f32 %v723, %v447
        %v725 = vmul.f32 %v723, %v448
        %v726 = vadd.f32 %v716, %v724
        %v727 = vadd.f32 %v717, %v725
        %s728 = sld [smem:[#allocation8 + $0x13]]
        %v729 = vstv %s728
        %v730 = vmul.f32 %v729, %v447
        %v731 = vmul.f32 %v729, %v448
        %v732 = vadd.f32 %v720, %v730
        %v733 = vadd.f32 %v721, %v731
        %s734 = sld [smem:[#allocation8 + $0x22]]
        %v735 = vstv %s734
        %v736 = vmul.f32 %v735, %v462
        %v737 = vmul.f32 %v735, %v463
        %v738 = vadd.f32 %v726, %v736
        %v739 = vadd.f32 %v727, %v737
        %s740 = sld [smem:[#allocation8 + $0x23]]
        %v741 = vstv %s740
        %v742 = vmul.f32 %v741, %v462
        %v743 = vmul.f32 %v741, %v463
        %v744 = vadd.f32 %v732, %v742
        %v745 = vadd.f32 %v733, %v743
        %s746 = sld [smem:[#allocation8 + $0x32]]
        %v747 = vstv %s746
        %v748 = vmul.f32 %v747, %v477
        %v749 = vmul.f32 %v747, %v478
        %v750 = vadd.f32 %v738, %v748
        %v751 = vadd.f32 %v739, %v749
        %s752 = sld [smem:[#allocation8 + $0x33]]
        %v753 = vstv %s752
        %v754 = vmul.f32 %v753, %v477
        %v755 = vmul.f32 %v753, %v478
        %v756 = vadd.f32 %v744, %v754
        %v757 = vadd.f32 %v745, %v755
        %s758 = sld [smem:[#allocation8 + $0x42]]
        %v759 = vstv %s758
        %v760 = vmul.f32 %v759, %v492
        %v761 = vmul.f32 %v759, %v493
        %v762 = vadd.f32 %v750, %v760
        %v763 = vadd.f32 %v751, %v761
        %s764 = sld [smem:[#allocation8 + $0x43]]
        %v765 = vstv %s764
        %v766 = vmul.f32 %v765, %v492
        %v767 = vmul.f32 %v765, %v493
        %v768 = vadd.f32 %v756, %v766
        %v769 = vadd.f32 %v757, %v767
        %s770 = sld [smem:[#allocation8 + $0x52]]
        %v771 = vstv %s770
        %v772 = vmul.f32 %v771, %v507
        %v773 = vmul.f32 %v771, %v508
        %v774 = vadd.f32 %v762, %v772
        %v775 = vadd.f32 %v763, %v773
        %s776 = sld [smem:[#allocation8 + $0x53]]
        %v777 = vstv %s776
        %v778 = vmul.f32 %v777, %v507
        %v779 = vmul.f32 %v777, %v508
        %v780 = vadd.f32 %v768, %v778
        %v781 = vadd.f32 %v769, %v779
        %s782 = sld [smem:[#allocation8 + $0x62]]
        %v783 = vstv %s782
        %v784 = vmul.f32 %v783, %v522
        %v785 = vmul.f32 %v783, %v523
        %v786 = vadd.f32 %v774, %v784
        %v787 = vadd.f32 %v775, %v785
        %s788 = sld [smem:[#allocation8 + $0x63]]
        %v789 = vstv %s788
        %v790 = vmul.f32 %v789, %v522
        %v791 = vmul.f32 %v789, %v523
        %v792 = vadd.f32 %v780, %v790
        %v793 = vadd.f32 %v781, %v791
        %s794 = sld [smem:[#allocation8 + $0x72]]
        %v795 = vstv %s794
        %v796 = vmul.f32 %v795, %v537
        %v797 = vmul.f32 %v795, %v538
        %v798 = vadd.f32 %v786, %v796
        %v799 = vadd.f32 %v787, %v797
        %s800 = sld [smem:[#allocation8 + $0x73]]
        %v801 = vstv %s800
        %v802 = vmul.f32 %v801, %v537
        %v803 = vmul.f32 %v801, %v538
        %v804 = vadd.f32 %v792, %v802
        %v805 = vadd.f32 %v793, %v803
        %v807 = vsel %vm551, %v804, 0
        %v810 = vsel %vm551, %v805, 0
        %812 = vmatprep.subr.mxu0 0.0
        %813 = vmatpush1.msra.mxu0 %v406
        %814 = vmatprep.subr.mxu0 0.0
        %815 = vmatpush1.msra.mxu0 %v407
        %816 = vmatprep.subr.mxu0 0.0
        %817 = vmatpush1.msra.mxu0 0.0
        %818 = vmatprep.subr.mxu0 0.0
        %819 = vmatpush1.msra.mxu0 0.0
        %820 = vmatprep.subr.mxu0 0.0
        %821 = vmatpush1.msra.mxu0 0.0
        %822 = vmatprep.subr.mxu0 0.0
        %823 = vmatpush1.msra.mxu0 0.0
        %824 = vmatprep.subr.mxu0 0.0
        %825 = vmatpush1.msra.mxu0 0.0
        %826 = vmatprep.subr.mxu0 0.0
        %827 = vmatpush1.msra.mxu0 0.0
        %828 = vmatprep.subr.mxu0 0.0
        %829 = vmatpush1.msra.mxu0 0.0
        %830 = vmatprep.subr.mxu0 0.0
        %831 = vmatpush1.msra.mxu0 0.0
        %832 = vmatprep.subr.mxu0 0.0
        %833 = vmatpush1.msra.mxu0 0.0
        %834 = vmatprep.subr.mxu0 0.0
        %835 = vmatpush1.msra.mxu0 0.0
        %836 = vmatprep.subr.mxu0 0.0
        %837 = vmatpush1.msra.mxu0 0.0
        %838 = vmatprep.subr.mxu0 0.0
        %839 = vmatpush1.msra.mxu0 0.0
        %840 = vmatprep.subr.mxu0 0.0
        %841 = vmatpush1.msra.mxu0 0.0
        %842 = vmatprep.subr.mxu0 0.0
        %843 = vmatpush1.msra.mxu0 0.0
        %844 = vmatprep.subr.mxu0 0.0
        %845 = vmatpush1.msra.mxu0 0.0
        %846 = vmatprep.subr.mxu0 0.0
        %847 = vmatpush1.msra.mxu0 0.0
        %848 = vmatprep.subr.mxu0 0.0
        %849 = vmatpush1.msra.mxu0 0.0
        %850 = vmatprep.subr.mxu0 0.0
        %851 = vmatpush1.msra.mxu0 0.0
        %852 = vmatprep.subr.mxu0 0.0
        %853 = vmatpush1.msra.mxu0 0.0
        %854 = vmatprep.subr.mxu0 0.0
        %855 = vmatpush1.msra.mxu0 0.0
        %856 = vmatprep.subr.mxu0 0.0
        %857 = vmatpush1.msra.mxu0 0.0
        %858 = vmatprep.subr.mxu0 0.0
        %859 = vmatpush1.msra.mxu0 0.0
        %860 = vmatprep.subr.mxu0 0.0
        %861 = vmatpush1.msra.mxu0 0.0
        %862 = vmatprep.subr.mxu0 0.0
        %863 = vmatpush1.msra.mxu0 0.0
        %864 = vmatprep.subr.mxu0 0.0
        %865 = vmatpush1.msra.mxu0 0.0
        %866 = vmatprep.subr.mxu0 0.0
        %867 = vmatpush1.msra.mxu0 0.0
        %868 = vmatprep.subr.mxu0 0.0
        %869 = vmatpush1.msra.mxu0 0.0
        %870 = vmatprep.subr.mxu0 0.0
        %871 = vmatpush1.msra.mxu0 0.0
        %872 = vmatprep.subr.mxu0 0.0
        %873 = vmatpush1.msra.mxu0 0.0
        %874 = vmatprep.subr.mxu0 0.0
        %875 = vmatpush1.msra.mxu0 0.0
        %876 = vmatprep.mubr.f32.mxu0 0.0
        %877 = vmatmul.mubr.f32.gmra.mrb[0].mxu0 %v807
        %v878 = vpop.f32.mrb[0].mxu0
        %v879 = vadd.f32 0.0, %v878
        %v880 = vpop.f32.mrb[0].mxu0
        %881 = vmatprep.mubr.f32.mxu0 0.0
        %882 = vmatmul.mubr.f32.gmra.mrb[0].mxu0 %v810
        %v883 = vpop.f32.mrb[0].mxu0
        %v884 = vadd.f32 0.0, %v883
        %v885 = vpop.f32.mrb[0].mxu0
        %886 = vdwg.mxu0
        %v888 = vsel %vm551, %v798, 0
        %v891 = vsel %vm551, %v799, 0
        %893 = vmatprep.subr.mxu0 0.0
        %894 = vmatpush1.msra.mxu0 %v398
        %895 = vmatprep.subr.mxu0 0.0
        %896 = vmatpush1.msra.mxu0 %v399
        %897 = vmatprep.subr.mxu0 0.0
        %898 = vmatpush1.msra.mxu0 0.0
        %899 = vmatprep.subr.mxu0 0.0
        %900 = vmatpush1.msra.mxu0 0.0
        %901 = vmatprep.subr.mxu0 0.0
        %902 = vmatpush1.msra.mxu0 0.0
        %903 = vmatprep.subr.mxu0 0.0
        %904 = vmatpush1.msra.mxu0 0.0
        %905 = vmatprep.subr.mxu0 0.0
        %906 = vmatpush1.msra.mxu0 0.0
        %907 = vmatprep.subr.mxu0 0.0
        %908 = vmatpush1.msra.mxu0 0.0
        %909 = vmatprep.subr.mxu0 0.0
        %910 = vmatpush1.msra.mxu0 0.0
        %911 = vmatprep.subr.mxu0 0.0
        %912 = vmatpush1.msra.mxu0 0.0
        %913 = vmatprep.subr.mxu0 0.0
        %914 = vmatpush1.msra.mxu0 0.0
        %915 = vmatprep.subr.mxu0 0.0
        %916 = vmatpush1.msra.mxu0 0.0
        %917 = vmatprep.subr.mxu0 0.0
        %918 = vmatpush1.msra.mxu0 0.0
        %919 = vmatprep.subr.mxu0 0.0
        %920 = vmatpush1.msra.mxu0 0.0
        %921 = vmatprep.subr.mxu0 0.0
        %922 = vmatpush1.msra.mxu0 0.0
        %923 = vmatprep.subr.mxu0 0.0
        %924 = vmatpush1.msra.mxu0 0.0
        %925 = vmatprep.subr.mxu0 0.0
        %926 = vmatpush1.msra.mxu0 0.0
        %927 = vmatprep.subr.mxu0 0.0
        %928 = vmatpush1.msra.mxu0 0.0
        %929 = vmatprep.subr.mxu0 0.0
        %930 = vmatpush1.msra.mxu0 0.0
        %931 = vmatprep.subr.mxu0 0.0
        %932 = vmatpush1.msra.mxu0 0.0
        %933 = vmatprep.subr.mxu0 0.0
        %934 = vmatpush1.msra.mxu0 0.0
        %935 = vmatprep.subr.mxu0 0.0
        %936 = vmatpush1.msra.mxu0 0.0
        %937 = vmatprep.subr.mxu0 0.0
        %938 = vmatpush1.msra.mxu0 0.0
        %939 = vmatprep.subr.mxu0 0.0
        %940 = vmatpush1.msra.mxu0 0.0
        %941 = vmatprep.subr.mxu0 0.0
        %942 = vmatpush1.msra.mxu0 0.0
        %943 = vmatprep.subr.mxu0 0.0
        %944 = vmatpush1.msra.mxu0 0.0
        %945 = vmatprep.subr.mxu0 0.0
        %946 = vmatpush1.msra.mxu0 0.0
        %947 = vmatprep.subr.mxu0 0.0
        %948 = vmatpush1.msra.mxu0 0.0
        %949 = vmatprep.subr.mxu0 0.0
        %950 = vmatpush1.msra.mxu0 0.0
        %951 = vmatprep.subr.mxu0 0.0
        %952 = vmatpush1.msra.mxu0 0.0
        %953 = vmatprep.subr.mxu0 0.0
        %954 = vmatpush1.msra.mxu0 0.0
        %955 = vmatprep.subr.mxu0 0.0
        %956 = vmatpush1.msra.mxu0 0.0
        %957 = vmatprep.mubr.f32.mxu0 0.0
        %958 = vmatmul.mubr.f32.gmra.mrb[0].mxu0 %v888
        %v959 = vpop.f32.mrb[0].mxu0
        %v960 = vadd.f32 %v879, %v959
        %v961 = vpop.f32.mrb[0].mxu0
        %962 = vmatprep.mubr.f32.mxu0 0.0
        %963 = vmatmul.mubr.f32.gmra.mrb[0].mxu0 %v891
        %v964 = vpop.f32.mrb[0].mxu0
        %v965 = vadd.f32 %v884, %v964
        %v966 = vpop.f32.mrb[0].mxu0
        %967 = vdwg.mxu0
        %v969 = vsel %vm551, %v432, 0
        %v972 = vsel %vm551, %v433, 0
        %v975 = vsel %vm551, %v434, 0
        %v978 = vsel %vm551, %v435, 0
        %980 = vmatprep.subr.mxu0 0.0
        %981 = vmatpush1.msra.mxu0 %v960
        %982 = vmatprep.subr.mxu0 0.0
        %983 = vmatpush1.msra.mxu0 %v965
        %984 = vmatprep.subr.mxu0 0.0
        %985 = vmatpush1.msra.mxu0 0.0
        %986 = vmatprep.subr.mxu0 0.0
        %987 = vmatpush1.msra.mxu0 0.0
        %988 = vmatprep.subr.mxu0 0.0
        %989 = vmatpush1.msra.mxu0 0.0
        %990 = vmatprep.subr.mxu0 0.0
        %991 = vmatpush1.msra.mxu0 0.0
        %992 = vmatprep.subr.mxu0 0.0
        %993 = vmatpush1.msra.mxu0 0.0
        %994 = vmatprep.subr.mxu0 0.0
        %995 = vmatpush1.msra.mxu0 0.0
        %996 = vmatprep.subr.mxu0 0.0
        %997 = vmatpush1.msra.mxu0 0.0
        %998 = vmatprep.subr.mxu0 0.0
        %999 = vmatpush1.msra.mxu0 0.0
        %1000 = vmatprep.subr.mxu0 0.0
        %1001 = vmatpush1.msra.mxu0 0.0
        %1002 = vmatprep.subr.mxu0 0.0
        %1003 = vmatpush1.msra.mxu0 0.0
        %1004 = vmatprep.subr.mxu0 0.0
        %1005 = vmatpush1.msra.mxu0 0.0
        %1006 = vmatprep.subr.mxu0 0.0
        %1007 = vmatpush1.msra.mxu0 0.0
        %1008 = vmatprep.subr.mxu0 0.0
        %1009 = vmatpush1.msra.mxu0 0.0
        %1010 = vmatprep.subr.mxu0 0.0
        %1011 = vmatpush1.msra.mxu0 0.0
        %1012 = vmatprep.subr.mxu0 0.0
        %1013 = vmatpush1.msra.mxu0 0.0
        %1014 = vmatprep.subr.mxu0 0.0
        %1015 = vmatpush1.msra.mxu0 0.0
        %1016 = vmatprep.subr.mxu0 0.0
        %1017 = vmatpush1.msra.mxu0 0.0
        %1018 = vmatprep.subr.mxu0 0.0
        %1019 = vmatpush1.msra.mxu0 0.0
        %1020 = vmatprep.subr.mxu0 0.0
        %1021 = vmatpush1.msra.mxu0 0.0
        %1022 = vmatprep.subr.mxu0 0.0
        %1023 = vmatpush1.msra.mxu0 0.0
        %1024 = vmatprep.subr.mxu0 0.0
        %1025 = vmatpush1.msra.mxu0 0.0
        %1026 = vmatprep.subr.mxu0 0.0
        %1027 = vmatpush1.msra.mxu0 0.0
        %1028 = vmatprep.subr.mxu0 0.0
        %1029 = vmatpush1.msra.mxu0 0.0
        %1030 = vmatprep.subr.mxu0 0.0
        %1031 = vmatpush1.msra.mxu0 0.0
        %1032 = vmatprep.subr.mxu0 0.0
        %1033 = vmatpush1.msra.mxu0 0.0
        %1034 = vmatprep.subr.mxu0 0.0
        %1035 = vmatpush1.msra.mxu0 0.0
        %1036 = vmatprep.subr.mxu0 0.0
        %1037 = vmatpush1.msra.mxu0 0.0
        %1038 = vmatprep.subr.mxu0 0.0
        %1039 = vmatpush1.msra.mxu0 0.0
        %1040 = vmatprep.subr.mxu0 0.0
        %1041 = vmatpush1.msra.mxu0 0.0
        %1042 = vmatprep.subr.mxu0 0.0
        %1043 = vmatpush1.msra.mxu0 0.0
        %1044 = vmatprep.mubr.f32.mxu0 0.0
        %1045 = vmatmul.mubr.f32.gmra.mrb[0].mxu0 %v969
        %v1046 = vpop.f32.mrb[0].mxu0
        %v1047 = vadd.f32 0.0, %v1046
        %v1048 = vpop.f32.mrb[0].mxu0
        %1049 = vmatprep.mubr.f32.mxu0 0.0
        %1050 = vmatmul.mubr.f32.gmra.mrb[0].mxu0 %v972
        %v1051 = vpop.f32.mrb[0].mxu0
        %v1052 = vadd.f32 0.0, %v1051
        %v1053 = vpop.f32.mrb[0].mxu0
        %1054 = vmatprep.mubr.f32.mxu0 0.0
        %1055 = vmatmul.mubr.f32.gmra.mrb[0].mxu0 %v975
        %v1056 = vpop.f32.mrb[0].mxu0
        %v1057 = vadd.f32 0.0, %v1056
        %v1058 = vpop.f32.mrb[0].mxu0
        %1059 = vmatprep.mubr.f32.mxu0 0.0
        %1060 = vmatmul.mubr.f32.gmra.mrb[0].mxu0 %v978
        %v1061 = vpop.f32.mrb[0].mxu0
        %v1062 = vadd.f32 0.0, %v1061
        %v1063 = vpop.f32.mrb[0].mxu0
        %1064 = vdwg.mxu0
        %v1066 = vsel %vm551, %v419, 0
        %v1069 = vsel %vm551, %v420, 0
        %v1072 = vsel %vm551, %v421, 0
        %v1075 = vsel %vm551, %v422, 0
        %1077 = vmatprep.subr.mxu0 0.0
        %1078 = vmatpush1.msra.mxu0 %v706
        %1079 = vmatprep.subr.mxu0 0.0
        %1080 = vmatpush1.msra.mxu0 %v711
        %1081 = vmatprep.subr.mxu0 0.0
        %1082 = vmatpush1.msra.mxu0 0.0
        %1083 = vmatprep.subr.mxu0 0.0
        %1084 = vmatpush1.msra.mxu0 0.0
        %1085 = vmatprep.subr.mxu0 0.0
        %1086 = vmatpush1.msra.mxu0 0.0
        %1087 = vmatprep.subr.mxu0 0.0
        %1088 = vmatpush1.msra.mxu0 0.0
        %1089 = vmatprep.subr.mxu0 0.0
        %1090 = vmatpush1.msra.mxu0 0.0
        %1091 = vmatprep.subr.mxu0 0.0
        %1092 = vmatpush1.msra.mxu0 0.0
        %1093 = vmatprep.subr.mxu0 0.0
        %1094 = vmatpush1.msra.mxu0 0.0
        %1095 = vmatprep.subr.mxu0 0.0
        %1096 = vmatpush1.msra.mxu0 0.0
        %1097 = vmatprep.subr.mxu0 0.0
        %1098 = vmatpush1.msra.mxu0 0.0
        %1099 = vmatprep.subr.mxu0 0.0
        %1100 = vmatpush1.msra.mxu0 0.0
        %1101 = vmatprep.subr.mxu0 0.0
        %1102 = vmatpush1.msra.mxu0 0.0
        %1103 = vmatprep.subr.mxu0 0.0
        %1104 = vmatpush1.msra.mxu0 0.0
        %1105 = vmatprep.subr.mxu0 0.0
        %1106 = vmatpush1.msra.mxu0 0.0
        %1107 = vmatprep.subr.mxu0 0.0
        %1108 = vmatpush1.msra.mxu0 0.0
        %1109 = vmatprep.subr.mxu0 0.0
        %1110 = vmatpush1.msra.mxu0 0.0
        %1111 = vmatprep.subr.mxu0 0.0
        %1112 = vmatpush1.msra.mxu0 0.0
        %1113 = vmatprep.subr.mxu0 0.0
        %1114 = vmatpush1.msra.mxu0 0.0
        %1115 = vmatprep.subr.mxu0 0.0
        %1116 = vmatpush1.msra.mxu0 0.0
        %1117 = vmatprep.subr.mxu0 0.0
        %1118 = vmatpush1.msra.mxu0 0.0
        %1119 = vmatprep.subr.mxu0 0.0
        %1120 = vmatpush1.msra.mxu0 0.0
        %1121 = vmatprep.subr.mxu0 0.0
        %1122 = vmatpush1.msra.mxu0 0.0
        %1123 = vmatprep.subr.mxu0 0.0
        %1124 = vmatpush1.msra.mxu0 0.0
        %1125 = vmatprep.subr.mxu0 0.0
        %1126 = vmatpush1.msra.mxu0 0.0
        %1127 = vmatprep.subr.mxu0 0.0
        %1128 = vmatpush1.msra.mxu0 0.0
        %1129 = vmatprep.subr.mxu0 0.0
        %1130 = vmatpush1.msra.mxu0 0.0
        %1131 = vmatprep.subr.mxu0 0.0
        %1132 = vmatpush1.msra.mxu0 0.0
        %1133 = vmatprep.subr.mxu0 0.0
        %1134 = vmatpush1.msra.mxu0 0.0
        %1135 = vmatprep.subr.mxu0 0.0
        %1136 = vmatpush1.msra.mxu0 0.0
        %1137 = vmatprep.subr.mxu0 0.0
        %1138 = vmatpush1.msra.mxu0 0.0
        %1139 = vmatprep.subr.mxu0 0.0
        %1140 = vmatpush1.msra.mxu0 0.0
        %1141 = vmatprep.mubr.f32.mxu0 0.0
        %1142 = vmatmul.mubr.f32.gmra.mrb[0].mxu0 %v1066
        %v1143 = vpop.f32.mrb[0].mxu0
        %v1144 = vadd.f32 %v1047, %v1143
        %v1145 = vpop.f32.mrb[0].mxu0
        %1146 = vmatprep.mubr.f32.mxu0 0.0
        %1147 = vmatmul.mubr.f32.gmra.mrb[0].mxu0 %v1069
        %v1148 = vpop.f32.mrb[0].mxu0
        %v1149 = vadd.f32 %v1052, %v1148
        %v1150 = vpop.f32.mrb[0].mxu0
        %1151 = vmatprep.mubr.f32.mxu0 0.0
        %1152 = vmatmul.mubr.f32.gmra.mrb[0].mxu0 %v1072
        %v1153 = vpop.f32.mrb[0].mxu0
        %v1154 = vadd.f32 %v1057, %v1153
        %v1155 = vpop.f32.mrb[0].mxu0
        %1156 = vmatprep.mubr.f32.mxu0 0.0
        %1157 = vmatmul.mubr.f32.gmra.mrb[0].mxu0 %v1075
        %v1158 = vpop.f32.mrb[0].mxu0
        %v1159 = vadd.f32 %v1062, %v1158
        %v1160 = vpop.f32.mrb[0].mxu0
        %1161 = vdwg.mxu0
        %s1162 = sld [smem:[#allocation9]]
        %v1163 = vstv %s1162
        %v1164 = vadd.f32 %v1144, %v1163
        %v1165 = vadd.f32 %v1149, %v1163
        %v1166 = vadd.f32 %v1154, %v1163
        %v1167 = vadd.f32 %v1159, %v1163
        %vm1168 = vcmask 261120
        %1169 = vst.msk [vmem:[%s383] sm:$0xff] %vm1168, %v1164
        %1170 = vst.msk [vmem:[%s383 + $0x8] sm:$0xff] %vm1168, %v1165
        %1171 = vst.msk [vmem:[%s383 + $0x10] sm:$0xff] %vm1168, %v1166
        %1172 = vst.msk [vmem:[%s383 + $0x18] sm:$0xff] %vm1168, %v1167
        %v1173 = vld [vmem:[%s324] sm:$0xff]
        %v1174 = vld [vmem:[%s324 + $0x8] sm:$0xff]
        %s1175 = sld [smem:[#allocation8 + $0x4]]
        %v1176 = vstv %s1175
        %v1177 = vmul.f32 %v1176, %v1173
        %v1178 = vmul.f32 %v1176, %v1174
        %s1179 = sld [smem:[#allocation8 + $0x5]]
        %v1180 = vstv %s1179
        %v1181 = vmul.f32 %v1180, %v1173
        %v1182 = vmul.f32 %v1180, %v1174
        %v1183 = vld [vmem:[%s446] sm:$0xff]
        %v1184 = vld [vmem:[%s446 + $0x8] sm:$0xff]
        %s1185 = sld [smem:[#allocation8 + $0x14]]
        %v1186 = vstv %s1185
        %v1187 = vmul.f32 %v1186, %v1183
        %v1188 = vmul.f32 %v1186, %v1184
        %v1189 = vadd.f32 %v1177, %v1187
        %v1190 = vadd.f32 %v1178, %v1188
        %s1191 = sld [smem:[#allocation8 + $0x15]]
        %v1192 = vstv %s1191
        %v1193 = vmul.f32 %v1192, %v1183
        %v1194 = vmul.f32 %v1192, %v1184
        %v1195 = vadd.f32 %v1181, %v1193
        %v1196 = vadd.f32 %v1182, %v1194
        %v1197 = vld [vmem:[%s461] sm:$0xff]
        %v1198 = vld [vmem:[%s461 + $0x8] sm:$0xff]
        %s1199 = sld [smem:[#allocation8 + $0x24]]
        %v1200 = vstv %s1199
        %v1201 = vmul.f32 %v1200, %v1197
        %v1202 = vmul.f32 %v1200, %v1198
        %v1203 = vadd.f32 %v1189, %v1201
        %v1204 = vadd.f32 %v1190, %v1202
        %s1205 = sld [smem:[#allocation8 + $0x25]]
        %v1206 = vstv %s1205
        %v1207 = vmul.f32 %v1206, %v1197
        %v1208 = vmul.f32 %v1206, %v1198
        %v1209 = vadd.f32 %v1195, %v1207
        %v1210 = vadd.f32 %v1196, %v1208
        %v1211 = vld [vmem:[%s476] sm:$0xff]
        %v1212 = vld [vmem:[%s476 + $0x8] sm:$0xff]
        %s1213 = sld [smem:[#allocation8 + $0x34]]
        %v1214 = vstv %s1213
        %v1215 = vmul.f32 %v1214, %v1211
        %v1216 = vmul.f32 %v1214, %v1212
        %v1217 = vadd.f32 %v1203, %v1215
        %v1218 = vadd.f32 %v1204, %v1216
        %s1219 = sld [smem:[#allocation8 + $0x35]]
        %v1220 = vstv %s1219
        %v1221 = vmul.f32 %v1220, %v1211
        %v1222 = vmul.f32 %v1220, %v1212
        %v1223 = vadd.f32 %v1209, %v1221
        %v1224 = vadd.f32 %v1210, %v1222
        %v1225 = vld [vmem:[%s491] sm:$0xff]
        %v1226 = vld [vmem:[%s491 + $0x8] sm:$0xff]
        %s1227 = sld [smem:[#allocation8 + $0x44]]
        %v1228 = vstv %s1227
        %v1229 = vmul.f32 %v1228, %v1225
        %v1230 = vmul.f32 %v1228, %v1226
        %v1231 = vadd.f32 %v1217, %v1229
        %v1232 = vadd.f32 %v1218, %v1230
        %s1233 = sld [smem:[#allocation8 + $0x45]]
        %v1234 = vstv %s1233
        %v1235 = vmul.f32 %v1234, %v1225
        %v1236 = vmul.f32 %v1234, %v1226
        %v1237 = vadd.f32 %v1223, %v1235
        %v1238 = vadd.f32 %v1224, %v1236
        %v1239 = vld [vmem:[%s506] sm:$0xff]
        %v1240 = vld [vmem:[%s506 + $0x8] sm:$0xff]
        %s1241 = sld [smem:[#allocation8 + $0x54]]
        %v1242 = vstv %s1241
        %v1243 = vmul.f32 %v1242, %v1239
        %v1244 = vmul.f32 %v1242, %v1240
        %v1245 = vadd.f32 %v1231, %v1243
        %v1246 = vadd.f32 %v1232, %v1244
        %s1247 = sld [smem:[#allocation8 + $0x55]]
        %v1248 = vstv %s1247
        %v1249 = vmul.f32 %v1248, %v1239
        %v1250 = vmul.f32 %v1248, %v1240
        %v1251 = vadd.f32 %v1237, %v1249
        %v1252 = vadd.f32 %v1238, %v1250
        %v1253 = vld [vmem:[%s521] sm:$0xff]
        %v1254 = vld [vmem:[%s521 + $0x8] sm:$0xff]
        %s1255 = sld [smem:[#allocation8 + $0x64]]
        %v1256 = vstv %s1255
        %v1257 = vmul.f32 %v1256, %v1253
        %v1258 = vmul.f32 %v1256, %v1254
        %v1259 = vadd.f32 %v1245, %v1257
        %v1260 = vadd.f32 %v1246, %v1258
        %s1261 = sld [smem:[#allocation8 + $0x65]]
        %v1262 = vstv %s1261
        %v1263 = vmul.f32 %v1262, %v1253
        %v1264 = vmul.f32 %v1262, %v1254
        %v1265 = vadd.f32 %v1251, %v1263
        %v1266 = vadd.f32 %v1252, %v1264
        %v1267 = vld [vmem:[%s536] sm:$0xff]
        %v1268 = vld [vmem:[%s536 + $0x8] sm:$0xff]
        %s1269 = sld [smem:[#allocation8 + $0x74]]
        %v1270 = vstv %s1269
        %v1271 = vmul.f32 %v1270, %v1267
        %v1272 = vmul.f32 %v1270, %v1268
        %v1273 = vadd.f32 %v1259, %v1271
        %v1274 = vadd.f32 %v1260, %v1272
        %s1275 = sld [smem:[#allocation8 + $0x75]]
        %v1276 = vstv %s1275
        %v1277 = vmul.f32 %v1276, %v1267
        %v1278 = vmul.f32 %v1276, %v1268
        %v1279 = vadd.f32 %v1265, %v1277
        %v1280 = vadd.f32 %v1266, %v1278
        %v1282 = vsel %vm551, %v1279, 0
        %v1285 = vsel %vm551, %v1280, 0
        %1287 = vmatprep.subr.mxu0 0.0
        %1288 = vmatpush1.msra.mxu0 %v406
        %1289 = vmatprep.subr.mxu0 0.0
        %1290 = vmatpush1.msra.mxu0 %v407
        %1291 = vmatprep.subr.mxu0 0.0
        %1292 = vmatpush1.msra.mxu0 0.0
        %1293 = vmatprep.subr.mxu0 0.0
        %1294 = vmatpush1.msra.mxu0 0.0
        %1295 = vmatprep.subr.mxu0 0.0
        %1296 = vmatpush1.msra.mxu0 0.0
        %1297 = vmatprep.subr.mxu0 0.0
        %1298 = vmatpush1.msra.mxu0 0.0
        %1299 = vmatprep.subr.mxu0 0.0
        %1300 = vmatpush1.msra.mxu0 0.0
        %1301 = vmatprep.subr.mxu0 0.0
        %1302 = vmatpush1.msra.mxu0 0.0
        %1303 = vmatprep.subr.mxu0 0.0
        %1304 = vmatpush1.msra.mxu0 0.0
        %1305 = vmatprep.subr.mxu0 0.0
        %1306 = vmatpush1.msra.mxu0 0.0
        %1307 = vmatprep.subr.mxu0 0.0
        %1308 = vmatpush1.msra.mxu0 0.0
        %1309 = vmatprep.subr.mxu0 0.0
        %1310 = vmatpush1.msra.mxu0 0.0
        %1311 = vmatprep.subr.mxu0 0.0
        %1312 = vmatpush1.msra.mxu0 0.0
        %1313 = vmatprep.subr.mxu0 0.0
        %1314 = vmatpush1.msra.mxu0 0.0
        %1315 = vmatprep.subr.mxu0 0.0
        %1316 = vmatpush1.msra.mxu0 0.0
        %1317 = vmatprep.subr.mxu0 0.0
        %1318 = vmatpush1.msra.mxu0 0.0
        %1319 = vmatprep.subr.mxu0 0.0
        %1320 = vmatpush1.msra.mxu0 0.0
        %1321 = vmatprep.subr.mxu0 0.0
        %1322 = vmatpush1.msra.mxu0 0.0
        %1323 = vmatprep.subr.mxu0 0.0
        %1324 = vmatpush1.msra.mxu0 0.0
        %1325 = vmatprep.subr.mxu0 0.0
        %1326 = vmatpush1.msra.mxu0 0.0
        %1327 = vmatprep.subr.mxu0 0.0
        %1328 = vmatpush1.msra.mxu0 0.0
        %1329 = vmatprep.subr.mxu0 0.0
        %1330 = vmatpush1.msra.mxu0 0.0
        %1331 = vmatprep.subr.mxu0 0.0
        %1332 = vmatpush1.msra.mxu0 0.0
        %1333 = vmatprep.subr.mxu0 0.0
        %1334 = vmatpush1.msra.mxu0 0.0
        %1335 = vmatprep.subr.mxu0 0.0
        %1336 = vmatpush1.msra.mxu0 0.0
        %1337 = vmatprep.subr.mxu0 0.0
        %1338 = vmatpush1.msra.mxu0 0.0
        %1339 = vmatprep.subr.mxu0 0.0
        %1340 = vmatpush1.msra.mxu0 0.0
        %1341 = vmatprep.subr.mxu0 0.0
        %1342 = vmatpush1.msra.mxu0 0.0
        %1343 = vmatprep.subr.mxu0 0.0
        %1344 = vmatpush1.msra.mxu0 0.0
        %1345 = vmatprep.subr.mxu0 0.0
        %1346 = vmatpush1.msra.mxu0 0.0
        %1347 = vmatprep.subr.mxu0 0.0
        %1348 = vmatpush1.msra.mxu0 0.0
        %1349 = vmatprep.subr.mxu0 0.0
        %1350 = vmatpush1.msra.mxu0 0.0
        %1351 = vmatprep.mubr.f32.mxu0 0.0
        %1352 = vmatmul.mubr.f32.gmra.mrb[0].mxu0 %v1282
        %v1353 = vpop.f32.mrb[0].mxu0
        %v1354 = vadd.f32 0.0, %v1353
        %v1355 = vpop.f32.mrb[0].mxu0
        %1356 = vmatprep.mubr.f32.mxu0 0.0
        %1357 = vmatmul.mubr.f32.gmra.mrb[0].mxu0 %v1285
        %v1358 = vpop.f32.mrb[0].mxu0
        %v1359 = vadd.f32 0.0, %v1358
        %v1360 = vpop.f32.mrb[0].mxu0
        %1361 = vdwg.mxu0
        %v1363 = vsel %vm551, %v1273, 0
        %v1366 = vsel %vm551, %v1274, 0
        %1368 = vmatprep.subr.mxu0 0.0
        %1369 = vmatpush1.msra.mxu0 %v398
        %1370 = vmatprep.subr.mxu0 0.0
        %1371 = vmatpush1.msra.mxu0 %v399
        %1372 = vmatprep.subr.mxu0 0.0
        %1373 = vmatpush1.msra.mxu0 0.0
        %1374 = vmatprep.subr.mxu0 0.0
        %1375 = vmatpush1.msra.mxu0 0.0
        %1376 = vmatprep.subr.mxu0 0.0
        %1377 = vmatpush1.msra.mxu0 0.0
        %1378 = vmatprep.subr.mxu0 0.0
        %1379 = vmatpush1.msra.mxu0 0.0
        %1380 = vmatprep.subr.mxu0 0.0
        %1381 = vmatpush1.msra.mxu0 0.0
        %1382 = vmatprep.subr.mxu0 0.0
        %1383 = vmatpush1.msra.mxu0 0.0
        %1384 = vmatprep.subr.mxu0 0.0
        %1385 = vmatpush1.msra.mxu0 0.0
        %1386 = vmatprep.subr.mxu0 0.0
        %1387 = vmatpush1.msra.mxu0 0.0
        %1388 = vmatprep.subr.mxu0 0.0
        %1389 = vmatpush1.msra.mxu0 0.0
        %1390 = vmatprep.subr.mxu0 0.0
        %1391 = vmatpush1.msra.mxu0 0.0
        %1392 = vmatprep.subr.mxu0 0.0
        %1393 = vmatpush1.msra.mxu0 0.0
        %1394 = vmatprep.subr.mxu0 0.0
        %1395 = vmatpush1.msra.mxu0 0.0
        %1396 = vmatprep.subr.mxu0 0.0
        %1397 = vmatpush1.msra.mxu0 0.0
        %1398 = vmatprep.subr.mxu0 0.0
        %1399 = vmatpush1.msra.mxu0 0.0
        %1400 = vmatprep.subr.mxu0 0.0
        %1401 = vmatpush1.msra.mxu0 0.0
        %1402 = vmatprep.subr.mxu0 0.0
        %1403 = vmatpush1.msra.mxu0 0.0
        %1404 = vmatprep.subr.mxu0 0.0
        %1405 = vmatpush1.msra.mxu0 0.0
        %1406 = vmatprep.subr.mxu0 0.0
        %1407 = vmatpush1.msra.mxu0 0.0
        %1408 = vmatprep.subr.mxu0 0.0
        %1409 = vmatpush1.msra.mxu0 0.0
        %1410 = vmatprep.subr.mxu0 0.0
        %1411 = vmatpush1.msra.mxu0 0.0
        %1412 = vmatprep.subr.mxu0 0.0
        %1413 = vmatpush1.msra.mxu0 0.0
        %1414 = vmatprep.subr.mxu0 0.0
        %1415 = vmatpush1.msra.mxu0 0.0
        %1416 = vmatprep.subr.mxu0 0.0
        %1417 = vmatpush1.msra.mxu0 0.0
        %1418 = vmatprep.subr.mxu0 0.0
        %1419 = vmatpush1.msra.mxu0 0.0
        %1420 = vmatprep.subr.mxu0 0.0
        %1421 = vmatpush1.msra.mxu0 0.0
        %1422 = vmatprep.subr.mxu0 0.0
        %1423 = vmatpush1.msra.mxu0 0.0
        %1424 = vmatprep.subr.mxu0 0.0
        %1425 = vmatpush1.msra.mxu0 0.0
        %1426 = vmatprep.subr.mxu0 0.0
        %1427 = vmatpush1.msra.mxu0 0.0
        %1428 = vmatprep.subr.mxu0 0.0
        %1429 = vmatpush1.msra.mxu0 0.0
        %1430 = vmatprep.subr.mxu0 0.0
        %1431 = vmatpush1.msra.mxu0 0.0
        %1432 = vmatprep.mubr.f32.mxu0 0.0
        %1433 = vmatmul.mubr.f32.gmra.mrb[0].mxu0 %v1363
        %v1434 = vpop.f32.mrb[0].mxu0
        %v1435 = vadd.f32 %v1354, %v1434
        %v1436 = vpop.f32.mrb[0].mxu0
        %1437 = vmatprep.mubr.f32.mxu0 0.0
        %1438 = vmatmul.mubr.f32.gmra.mrb[0].mxu0 %v1366
        %v1439 = vpop.f32.mrb[0].mxu0
        %v1440 = vadd.f32 %v1359, %v1439
        %v1441 = vpop.f32.mrb[0].mxu0
        %1442 = vdwg.mxu0
        %s1443 = sld [smem:[#allocation8 + $0x6]]
        %v1444 = vstv %s1443
        %v1445 = vmul.f32 %v1444, %v1173
        %v1446 = vmul.f32 %v1444, %v1174
        %s1447 = sld [smem:[#allocation8 + $0x7]]
        %v1448 = vstv %s1447
        %v1449 = vmul.f32 %v1448, %v1173
        %v1450 = vmul.f32 %v1448, %v1174
        %s1451 = sld [smem:[#allocation8 + $0x16]]
        %v1452 = vstv %s1451
        %v1453 = vmul.f32 %v1452, %v1183
        %v1454 = vmul.f32 %v1452, %v1184
        %v1455 = vadd.f32 %v1445, %v1453
        %v1456 = vadd.f32 %v1446, %v1454
        %s1457 = sld [smem:[#allocation8 + $0x17]]
        %v1458 = vstv %s1457
        %v1459 = vmul.f32 %v1458, %v1183
        %v1460 = vmul.f32 %v1458, %v1184
        %v1461 = vadd.f32 %v1449, %v1459
        %v1462 = vadd.f32 %v1450, %v1460
        %s1463 = sld [smem:[#allocation8 + $0x26]]
        %v1464 = vstv %s1463
        %v1465 = vmul.f32 %v1464, %v1197
        %v1466 = vmul.f32 %v1464, %v1198
        %v1467 = vadd.f32 %v1455, %v1465
        %v1468 = vadd.f32 %v1456, %v1466
        %s1469 = sld [smem:[#allocation8 + $0x27]]
        %v1470 = vstv %s1469
        %v1471 = vmul.f32 %v1470, %v1197
        %v1472 = vmul.f32 %v1470, %v1198
        %v1473 = vadd.f32 %v1461, %v1471
        %v1474 = vadd.f32 %v1462, %v1472
        %s1475 = sld [smem:[#allocation8 + $0x36]]
        %v1476 = vstv %s1475
        %v1477 = vmul.f32 %v1476, %v1211
        %v1478 = vmul.f32 %v1476, %v1212
        %v1479 = vadd.f32 %v1467, %v1477
        %v1480 = vadd.f32 %v1468, %v1478
        %s1481 = sld [smem:[#allocation8 + $0x37]]
        %v1482 = vstv %s1481
        %v1483 = vmul.f32 %v1482, %v1211
        %v1484 = vmul.f32 %v1482, %v1212
        %v1485 = vadd.f32 %v1473, %v1483
        %v1486 = vadd.f32 %v1474, %v1484
        %s1487 = sld [smem:[#allocation8 + $0x46]]
        %v1488 = vstv %s1487
        %v1489 = vmul.f32 %v1488, %v1225
        %v1490 = vmul.f32 %v1488, %v1226
        %v1491 = vadd.f32 %v1479, %v1489
        %v1492 = vadd.f32 %v1480, %v1490
        %s1493 = sld [smem:[#allocation8 + $0x47]]
        %v1494 = vstv %s1493
        %v1495 = vmul.f32 %v1494, %v1225
        %v1496 = vmul.f32 %v1494, %v1226
        %v1497 = vadd.f32 %v1485, %v1495
        %v1498 = vadd.f32 %v1486, %v1496
        %s1499 = sld [smem:[#allocation8 + $0x56]]
        %v1500 = vstv %s1499
        %v1501 = vmul.f32 %v1500, %v1239
        %v1502 = vmul.f32 %v1500, %v1240
        %v1503 = vadd.f32 %v1491, %v1501
        %v1504 = vadd.f32 %v1492, %v1502
        %s1505 = sld [smem:[#allocation8 + $0x57]]
        %v1506 = vstv %s1505
        %v1507 = vmul.f32 %v1506, %v1239
        %v1508 = vmul.f32 %v1506, %v1240
        %v1509 = vadd.f32 %v1497, %v1507
        %v1510 = vadd.f32 %v1498, %v1508
        %s1511 = sld [smem:[#allocation8 + $0x66]]
        %v1512 = vstv %s1511
        %v1513 = vmul.f32 %v1512, %v1253
        %v1514 = vmul.f32 %v1512, %v1254
        %v1515 = vadd.f32 %v1503, %v1513
        %v1516 = vadd.f32 %v1504, %v1514
        %s1517 = sld [smem:[#allocation8 + $0x67]]
        %v1518 = vstv %s1517
        %v1519 = vmul.f32 %v1518, %v1253
        %v1520 = vmul.f32 %v1518, %v1254
        %v1521 = vadd.f32 %v1509, %v1519
        %v1522 = vadd.f32 %v1510, %v1520
        %s1523 = sld [smem:[#allocation8 + $0x76]]
        %v1524 = vstv %s1523
        %v1525 = vmul.f32 %v1524, %v1267
        %v1526 = vmul.f32 %v1524, %v1268
        %v1527 = vadd.f32 %v1515, %v1525
        %v1528 = vadd.f32 %v1516, %v1526
        %s1529 = sld [smem:[#allocation8 + $0x77]]
        %v1530 = vstv %s1529
        %v1531 = vmul.f32 %v1530, %v1267
        %v1532 = vmul.f32 %v1530, %v1268
        %v1533 = vadd.f32 %v1521, %v1531
        %v1534 = vadd.f32 %v1522, %v1532
        %v1536 = vsel %vm551, %v1533, 0
        %v1539 = vsel %vm551, %v1534, 0
        %1541 = vmatprep.subr.mxu0 0.0
        %1542 = vmatpush1.msra.mxu0 %v406
        %1543 = vmatprep.subr.mxu0 0.0
        %1544 = vmatpush1.msra.mxu0 %v407
        %1545 = vmatprep.subr.mxu0 0.0
        %1546 = vmatpush1.msra.mxu0 0.0
        %1547 = vmatprep.subr.mxu0 0.0
        %1548 = vmatpush1.msra.mxu0 0.0
        %1549 = vmatprep.subr.mxu0 0.0
        %1550 = vmatpush1.msra.mxu0 0.0
        %1551 = vmatprep.subr.mxu0 0.0
        %1552 = vmatpush1.msra.mxu0 0.0
        %1553 = vmatprep.subr.mxu0 0.0
        %1554 = vmatpush1.msra.mxu0 0.0
        %1555 = vmatprep.subr.mxu0 0.0
        %1556 = vmatpush1.msra.mxu0 0.0
        %1557 = vmatprep.subr.mxu0 0.0
        %1558 = vmatpush1.msra.mxu0 0.0
        %1559 = vmatprep.subr.mxu0 0.0
        %1560 = vmatpush1.msra.mxu0 0.0
        %1561 = vmatprep.subr.mxu0 0.0
        %1562 = vmatpush1.msra.mxu0 0.0
        %1563 = vmatprep.subr.mxu0 0.0
        %1564 = vmatpush1.msra.mxu0 0.0
        %1565 = vmatprep.subr.mxu0 0.0
        %1566 = vmatpush1.msra.mxu0 0.0
        %1567 = vmatprep.subr.mxu0 0.0
        %1568 = vmatpush1.msra.mxu0 0.0
        %1569 = vmatprep.subr.mxu0 0.0
        %1570 = vmatpush1.msra.mxu0 0.0
        %1571 = vmatprep.subr.mxu0 0.0
        %1572 = vmatpush1.msra.mxu0 0.0
        %1573 = vmatprep.subr.mxu0 0.0
        %1574 = vmatpush1.msra.mxu0 0.0
        %1575 = vmatprep.subr.mxu0 0.0
        %1576 = vmatpush1.msra.mxu0 0.0
        %1577 = vmatprep.subr.mxu0 0.0
        %1578 = vmatpush1.msra.mxu0 0.0
        %1579 = vmatprep.subr.mxu0 0.0
        %1580 = vmatpush1.msra.mxu0 0.0
        %1581 = vmatprep.subr.mxu0 0.0
        %1582 = vmatpush1.msra.mxu0 0.0
        %1583 = vmatprep.subr.mxu0 0.0
        %1584 = vmatpush1.msra.mxu0 0.0
        %1585 = vmatprep.subr.mxu0 0.0
        %1586 = vmatpush1.msra.mxu0 0.0
        %1587 = vmatprep.subr.mxu0 0.0
        %1588 = vmatpush1.msra.mxu0 0.0
        %1589 = vmatprep.subr.mxu0 0.0
        %1590 = vmatpush1.msra.mxu0 0.0
        %1591 = vmatprep.subr.mxu0 0.0
        %1592 = vmatpush1.msra.mxu0 0.0
        %1593 = vmatprep.subr.mxu0 0.0
        %1594 = vmatpush1.msra.mxu0 0.0
        %1595 = vmatprep.subr.mxu0 0.0
        %1596 = vmatpush1.msra.mxu0 0.0
        %1597 = vmatprep.subr.mxu0 0.0
        %1598 = vmatpush1.msra.mxu0 0.0
        %1599 = vmatprep.subr.mxu0 0.0
        %1600 = vmatpush1.msra.mxu0 0.0
        %1601 = vmatprep.subr.mxu0 0.0
        %1602 = vmatpush1.msra.mxu0 0.0
        %1603 = vmatprep.subr.mxu0 0.0
        %1604 = vmatpush1.msra.mxu0 0.0
        %1605 = vmatprep.mubr.f32.mxu0 0.0
        %1606 = vmatmul.mubr.f32.gmra.mrb[0].mxu0 %v1536
        %v1607 = vpop.f32.mrb[0].mxu0
        %v1608 = vadd.f32 0.0, %v1607
        %v1609 = vpop.f32.mrb[0].mxu0
        %1610 = vmatprep.mubr.f32.mxu0 0.0
        %1611 = vmatmul.mubr.f32.gmra.mrb[0].mxu0 %v1539
        %v1612 = vpop.f32.mrb[0].mxu0
        %v1613 = vadd.f32 0.0, %v1612
        %v1614 = vpop.f32.mrb[0].mxu0
        %1615 = vdwg.mxu0
        %v1617 = vsel %vm551, %v1527, 0
        %v1620 = vsel %vm551, %v1528, 0
        %1622 = vmatprep.subr.mxu0 0.0
        %1623 = vmatpush1.msra.mxu0 %v398
        %1624 = vmatprep.subr.mxu0 0.0
        %1625 = vmatpush1.msra.mxu0 %v399
        %1626 = vmatprep.subr.mxu0 0.0
        %1627 = vmatpush1.msra.mxu0 0.0
        %1628 = vmatprep.subr.mxu0 0.0
        %1629 = vmatpush1.msra.mxu0 0.0
        %1630 = vmatprep.subr.mxu0 0.0
        %1631 = vmatpush1.msra.mxu0 0.0
        %1632 = vmatprep.subr.mxu0 0.0
        %1633 = vmatpush1.msra.mxu0 0.0
        %1634 = vmatprep.subr.mxu0 0.0
        %1635 = vmatpush1.msra.mxu0 0.0
        %1636 = vmatprep.subr.mxu0 0.0
        %1637 = vmatpush1.msra.mxu0 0.0
        %1638 = vmatprep.subr.mxu0 0.0
        %1639 = vmatpush1.msra.mxu0 0.0
        %1640 = vmatprep.subr.mxu0 0.0
        %1641 = vmatpush1.msra.mxu0 0.0
        %1642 = vmatprep.subr.mxu0 0.0
        %1643 = vmatpush1.msra.mxu0 0.0
        %1644 = vmatprep.subr.mxu0 0.0
        %1645 = vmatpush1.msra.mxu0 0.0
        %1646 = vmatprep.subr.mxu0 0.0
        %1647 = vmatpush1.msra.mxu0 0.0
        %1648 = vmatprep.subr.mxu0 0.0
        %1649 = vmatpush1.msra.mxu0 0.0
        %1650 = vmatprep.subr.mxu0 0.0
        %1651 = vmatpush1.msra.mxu0 0.0
        %1652 = vmatprep.subr.mxu0 0.0
        %1653 = vmatpush1.msra.mxu0 0.0
        %1654 = vmatprep.subr.mxu0 0.0
        %1655 = vmatpush1.msra.mxu0 0.0
        %1656 = vmatprep.subr.mxu0 0.0
        %1657 = vmatpush1.msra.mxu0 0.0
        %1658 = vmatprep.subr.mxu0 0.0
        %1659 = vmatpush1.msra.mxu0 0.0
        %1660 = vmatprep.subr.mxu0 0.0
        %1661 = vmatpush1.msra.mxu0 0.0
        %1662 = vmatprep.subr.mxu0 0.0
        %1663 = vmatpush1.msra.mxu0 0.0
        %1664 = vmatprep.subr.mxu0 0.0
        %1665 = vmatpush1.msra.mxu0 0.0
        %1666 = vmatprep.subr.mxu0 0.0
        %1667 = vmatpush1.msra.mxu0 0.0
        %1668 = vmatprep.subr.mxu0 0.0
        %1669 = vmatpush1.msra.mxu0 0.0
        %1670 = vmatprep.subr.mxu0 0.0
        %1671 = vmatpush1.msra.mxu0 0.0
        %1672 = vmatprep.subr.mxu0 0.0
        %1673 = vmatpush1.msra.mxu0 0.0
        %1674 = vmatprep.subr.mxu0 0.0
        %1675 = vmatpush1.msra.mxu0 0.0
        %1676 = vmatprep.subr.mxu0 0.0
        %1677 = vmatpush1.msra.mxu0 0.0
        %1678 = vmatprep.subr.mxu0 0.0
        %1679 = vmatpush1.msra.mxu0 0.0
        %1680 = vmatprep.subr.mxu0 0.0
        %1681 = vmatpush1.msra.mxu0 0.0
        %1682 = vmatprep.subr.mxu0 0.0
        %1683 = vmatpush1.msra.mxu0 0.0
        %1684 = vmatprep.subr.mxu0 0.0
        %1685 = vmatpush1.msra.mxu0 0.0
        %1686 = vmatprep.mubr.f32.mxu0 0.0
        %1687 = vmatmul.mubr.f32.gmra.mrb[0].mxu0 %v1617
        %v1688 = vpop.f32.mrb[0].mxu0
        %v1689 = vadd.f32 %v1608, %v1688
        %v1690 = vpop.f32.mrb[0].mxu0
        %1691 = vmatprep.mubr.f32.mxu0 0.0
        %1692 = vmatmul.mubr.f32.gmra.mrb[0].mxu0 %v1620
        %v1693 = vpop.f32.mrb[0].mxu0
        %v1694 = vadd.f32 %v1613, %v1693
        %v1695 = vpop.f32.mrb[0].mxu0
        %1696 = vdwg.mxu0
        %1697 = vmatprep.subr.mxu0 0.0
        %1698 = vmatpush1.msra.mxu0 %v1689
        %1699 = vmatprep.subr.mxu0 0.0
        %1700 = vmatpush1.msra.mxu0 %v1694
        %1701 = vmatprep.subr.mxu0 0.0
        %1702 = vmatpush1.msra.mxu0 0.0
        %1703 = vmatprep.subr.mxu0 0.0
        %1704 = vmatpush1.msra.mxu0 0.0
        %1705 = vmatprep.subr.mxu0 0.0
        %1706 = vmatpush1.msra.mxu0 0.0
        %1707 = vmatprep.subr.mxu0 0.0
        %1708 = vmatpush1.msra.mxu0 0.0
        %1709 = vmatprep.subr.mxu0 0.0
        %1710 = vmatpush1.msra.mxu0 0.0
        %1711 = vmatprep.subr.mxu0 0.0
        %1712 = vmatpush1.msra.mxu0 0.0
        %1713 = vmatprep.subr.mxu0 0.0
        %1714 = vmatpush1.msra.mxu0 0.0
        %1715 = vmatprep.subr.mxu0 0.0
        %1716 = vmatpush1.msra.mxu0 0.0
        %1717 = vmatprep.subr.mxu0 0.0
        %1718 = vmatpush1.msra.mxu0 0.0
        %1719 = vmatprep.subr.mxu0 0.0
        %1720 = vmatpush1.msra.mxu0 0.0
        %1721 = vmatprep.subr.mxu0 0.0
        %1722 = vmatpush1.msra.mxu0 0.0
        %1723 = vmatprep.subr.mxu0 0.0
        %1724 = vmatpush1.msra.mxu0 0.0
        %1725 = vmatprep.subr.mxu0 0.0
        %1726 = vmatpush1.msra.mxu0 0.0
        %1727 = vmatprep.subr.mxu0 0.0
        %1728 = vmatpush1.msra.mxu0 0.0
        %1729 = vmatprep.subr.mxu0 0.0
        %1730 = vmatpush1.msra.mxu0 0.0
        %1731 = vmatprep.subr.mxu0 0.0
        %1732 = vmatpush1.msra.mxu0 0.0
        %1733 = vmatprep.subr.mxu0 0.0
        %1734 = vmatpush1.msra.mxu0 0.0
        %1735 = vmatprep.subr.mxu0 0.0
        %1736 = vmatpush1.msra.mxu0 0.0
        %1737 = vmatprep.subr.mxu0 0.0
        %1738 = vmatpush1.msra.mxu0 0.0
        %1739 = vmatprep.subr.mxu0 0.0
        %1740 = vmatpush1.msra.mxu0 0.0
        %1741 = vmatprep.subr.mxu0 0.0
        %1742 = vmatpush1.msra.mxu0 0.0
        %1743 = vmatprep.subr.mxu0 0.0
        %1744 = vmatpush1.msra.mxu0 0.0
        %1745 = vmatprep.subr.mxu0 0.0
        %1746 = vmatpush1.msra.mxu0 0.0
        %1747 = vmatprep.subr.mxu0 0.0
        %1748 = vmatpush1.msra.mxu0 0.0
        %1749 = vmatprep.subr.mxu0 0.0
        %1750 = vmatpush1.msra.mxu0 0.0
        %1751 = vmatprep.subr.mxu0 0.0
        %1752 = vmatpush1.msra.mxu0 0.0
        %1753 = vmatprep.subr.mxu0 0.0
        %1754 = vmatpush1.msra.mxu0 0.0
        %1755 = vmatprep.subr.mxu0 0.0
        %1756 = vmatpush1.msra.mxu0 0.0
        %1757 = vmatprep.subr.mxu0 0.0
        %1758 = vmatpush1.msra.mxu0 0.0
        %1759 = vmatprep.subr.mxu0 0.0
        %1760 = vmatpush1.msra.mxu0 0.0
        %1761 = vmatprep.mubr.f32.mxu0 0.0
        %1762 = vmatmul.mubr.f32.gmra.mrb[0].mxu0 %v969
        %v1763 = vpop.f32.mrb[0].mxu0
        %v1764 = vadd.f32 0.0, %v1763
        %v1765 = vpop.f32.mrb[0].mxu0
        %1766 = vmatprep.mubr.f32.mxu0 0.0
        %1767 = vmatmul.mubr.f32.gmra.mrb[0].mxu0 %v972
        %v1768 = vpop.f32.mrb[0].mxu0
        %v1769 = vadd.f32 0.0, %v1768
        %v1770 = vpop.f32.mrb[0].mxu0
        %1771 = vmatprep.mubr.f32.mxu0 0.0
        %1772 = vmatmul.mubr.f32.gmra.mrb[0].mxu0 %v975
        %v1773 = vpop.f32.mrb[0].mxu0
        %v1774 = vadd.f32 0.0, %v1773
        %v1775 = vpop.f32.mrb[0].mxu0
        %1776 = vmatprep.mubr.f32.mxu0 0.0
        %1777 = vmatmul.mubr.f32.gmra.mrb[0].mxu0 %v978
        %v1778 = vpop.f32.mrb[0].mxu0
        %v1779 = vadd.f32 0.0, %v1778
        %v1780 = vpop.f32.mrb[0].mxu0
        %1781 = vdwg.mxu0
        %1782 = vmatprep.subr.mxu0 0.0
        %1783 = vmatpush1.msra.mxu0 %v1435
        %1784 = vmatprep.subr.mxu0 0.0
        %1785 = vmatpush1.msra.mxu0 %v1440
        %1786 = vmatprep.subr.mxu0 0.0
        %1787 = vmatpush1.msra.mxu0 0.0
        %1788 = vmatprep.subr.mxu0 0.0
        %1789 = vmatpush1.msra.mxu0 0.0
        %1790 = vmatprep.subr.mxu0 0.0
        %1791 = vmatpush1.msra.mxu0 0.0
        %1792 = vmatprep.subr.mxu0 0.0
        %1793 = vmatpush1.msra.mxu0 0.0
        %1794 = vmatprep.subr.mxu0 0.0
        %1795 = vmatpush1.msra.mxu0 0.0
        %1796 = vmatprep.subr.mxu0 0.0
        %1797 = vmatpush1.msra.mxu0 0.0
        %1798 = vmatprep.subr.mxu0 0.0
        %1799 = vmatpush1.msra.mxu0 0.0
        %1800 = vmatprep.subr.mxu0 0.0
        %1801 = vmatpush1.msra.mxu0 0.0
        %1802 = vmatprep.subr.mxu0 0.0
        %1803 = vmatpush1.msra.mxu0 0.0
        %1804 = vmatprep.subr.mxu0 0.0
        %1805 = vmatpush1.msra.mxu0 0.0
        %1806 = vmatprep.subr.mxu0 0.0
        %1807 = vmatpush1.msra.mxu0 0.0
        %1808 = vmatprep.subr.mxu0 0.0
        %1809 = vmatpush1.msra.mxu0 0.0
        %1810 = vmatprep.subr.mxu0 0.0
        %1811 = vmatpush1.msra.mxu0 0.0
        %1812 = vmatprep.subr.mxu0 0.0
        %1813 = vmatpush1.msra.mxu0 0.0
        %1814 = vmatprep.subr.mxu0 0.0
        %1815 = vmatpush1.msra.mxu0 0.0
        %1816 = vmatprep.subr.mxu0 0.0
        %1817 = vmatpush1.msra.mxu0 0.0
        %1818 = vmatprep.subr.mxu0 0.0
        %1819 = vmatpush1.msra.mxu0 0.0
        %1820 = vmatprep.subr.mxu0 0.0
        %1821 = vmatpush1.msra.mxu0 0.0
        %1822 = vmatprep.subr.mxu0 0.0
        %1823 = vmatpush1.msra.mxu0 0.0
        %1824 = vmatprep.subr.mxu0 0.0
        %1825 = vmatpush1.msra.mxu0 0.0
        %1826 = vmatprep.subr.mxu0 0.0
        %1827 = vmatpush1.msra.mxu0 0.0
        %1828 = vmatprep.subr.mxu0 0.0
        %1829 = vmatpush1.msra.mxu0 0.0
        %1830 = vmatprep.subr.mxu0 0.0
        %1831 = vmatpush1.msra.mxu0 0.0
        %1832 = vmatprep.subr.mxu0 0.0
        %1833 = vmatpush1.msra.mxu0 0.0
        %1834 = vmatprep.subr.mxu0 0.0
        %1835 = vmatpush1.msra.mxu0 0.0
        %1836 = vmatprep.subr.mxu0 0.0
        %1837 = vmatpush1.msra.mxu0 0.0
        %1838 = vmatprep.subr.mxu0 0.0
        %1839 = vmatpush1.msra.mxu0 0.0
        %1840 = vmatprep.subr.mxu0 0.0
        %1841 = vmatpush1.msra.mxu0 0.0
        %1842 = vmatprep.subr.mxu0 0.0
        %1843 = vmatpush1.msra.mxu0 0.0
        %1844 = vmatprep.subr.mxu0 0.0
        %1845 = vmatpush1.msra.mxu0 0.0
        %1846 = vmatprep.mubr.f32.mxu0 0.0
        %1847 = vmatmul.mubr.f32.gmra.mrb[0].mxu0 %v1066
        %v1848 = vpop.f32.mrb[0].mxu0
        %v1849 = vadd.f32 %v1764, %v1848
        %v1850 = vpop.f32.mrb[0].mxu0
        %1851 = vmatprep.mubr.f32.mxu0 0.0
        %1852 = vmatmul.mubr.f32.gmra.mrb[0].mxu0 %v1069
        %v1853 = vpop.f32.mrb[0].mxu0
        %v1854 = vadd.f32 %v1769, %v1853
        %v1855 = vpop.f32.mrb[0].mxu0
        %1856 = vmatprep.mubr.f32.mxu0 0.0
        %1857 = vmatmul.mubr.f32.gmra.mrb[0].mxu0 %v1072
        %v1858 = vpop.f32.mrb[0].mxu0
        %v1859 = vadd.f32 %v1774, %v1858
        %v1860 = vpop.f32.mrb[0].mxu0
        %1861 = vmatprep.mubr.f32.mxu0 0.0
        %1862 = vmatmul.mubr.f32.gmra.mrb[0].mxu0 %v1075
        %v1863 = vpop.f32.mrb[0].mxu0
        %v1864 = vadd.f32 %v1779, %v1863
        %v1865 = vpop.f32.mrb[0].mxu0
        %1866 = vdwg.mxu0
        %s1867 = sld [smem:[#allocation9 + $0x1]]
        %v1868 = vstv %s1867
        %v1869 = vadd.f32 %v1849, %v1868
        %v1870 = vadd.f32 %v1854, %v1868
        %v1871 = vadd.f32 %v1859, %v1868
        %v1872 = vadd.f32 %v1864, %v1868
        %s1873 = scalar_lea.vmem %s383, 32 [#allocation14]
        %1874 = vst.msk [vmem:[%s1873] sm:$0xff] %vm1168, %v1869
        %1875 = vst.msk [vmem:[%s1873 + $0x8] sm:$0xff] %vm1168, %v1870
        %1876 = vst.msk [vmem:[%s1873 + $0x10] sm:$0xff] %vm1168, %v1871
        %1877 = vst.msk [vmem:[%s1873 + $0x18] sm:$0xff] %vm1168, %v1872
        %v1878 = vld [vmem:[%s324] sm:$0xff]
        %v1879 = vld [vmem:[%s324 + $0x8] sm:$0xff]
        %s1880 = sld [smem:[#allocation8 + $0x8]]
        %v1881 = vstv %s1880
        %v1882 = vmul.f32 %v1881, %v1878
        %v1883 = vmul.f32 %v1881, %v1879
        %s1884 = sld [smem:[#allocation8 + $0x9]]
        %v1885 = vstv %s1884
        %v1886 = vmul.f32 %v1885, %v1878
        %v1887 = vmul.f32 %v1885, %v1879
        %v1888 = vld [vmem:[%s446] sm:$0xff]
        %v1889 = vld [vmem:[%s446 + $0x8] sm:$0xff]
        %s1890 = sld [smem:[#allocation8 + $0x18]]
        %v1891 = vstv %s1890
        %v1892 = vmul.f32 %v1891, %v1888
        %v1893 = vmul.f32 %v1891, %v1889
        %v1894 = vadd.f32 %v1882, %v1892
        %v1895 = vadd.f32 %v1883, %v1893
        %s1896 = sld [smem:[#allocation8 + $0x19]]
        %v1897 = vstv %s1896
        %v1898 = vmul.f32 %v1897, %v1888
        %v1899 = vmul.f32 %v1897, %v1889
        %v1900 = vadd.f32 %v1886, %v1898
        %v1901 = vadd.f32 %v1887, %v1899
        %v1902 = vld [vmem:[%s461] sm:$0xff]
        %v1903 = vld [vmem:[%s461 + $0x8] sm:$0xff]
        %s1904 = sld [smem:[#allocation8 + $0x28]]
        %v1905 = vstv %s1904
        %v1906 = vmul.f32 %v1905, %v1902
        %v1907 = vmul.f32 %v1905, %v1903
        %v1908 = vadd.f32 %v1894, %v1906
        %v1909 = vadd.f32 %v1895, %v1907
        %s1910 = sld [smem:[#allocation8 + $0x29]]
        %v1911 = vstv %s1910
        %v1912 = vmul.f32 %v1911, %v1902
        %v1913 = vmul.f32 %v1911, %v1903
        %v1914 = vadd.f32 %v1900, %v1912
        %v1915 = vadd.f32 %v1901, %v1913
        %v1916 = vld [vmem:[%s476] sm:$0xff]
        %v1917 = vld [vmem:[%s476 + $0x8] sm:$0xff]
        %s1918 = sld [smem:[#allocation8 + $0x38]]
        %v1919 = vstv %s1918
        %v1920 = vmul.f32 %v1919, %v1916
        %v1921 = vmul.f32 %v1919, %v1917
        %v1922 = vadd.f32 %v1908, %v1920
        %v1923 = vadd.f32 %v1909, %v1921
        %s1924 = sld [smem:[#allocation8 + $0x39]]
        %v1925 = vstv %s1924
        %v1926 = vmul.f32 %v1925, %v1916
        %v1927 = vmul.f32 %v1925, %v1917
        %v1928 = vadd.f32 %v1914, %v1926
        %v1929 = vadd.f32 %v1915, %v1927
        %v1930 = vld [vmem:[%s491] sm:$0xff]
        %v1931 = vld [vmem:[%s491 + $0x8] sm:$0xff]
        %s1932 = sld [smem:[#allocation8 + $0x48]]
        %v1933 = vstv %s1932
        %v1934 = vmul.f32 %v1933, %v1930
        %v1935 = vmul.f32 %v1933, %v1931
        %v1936 = vadd.f32 %v1922, %v1934
        %v1937 = vadd.f32 %v1923, %v1935
        %s1938 = sld [smem:[#allocation8 + $0x49]]
        %v1939 = vstv %s1938
        %v1940 = vmul.f32 %v1939, %v1930
        %v1941 = vmul.f32 %v1939, %v1931
        %v1942 = vadd.f32 %v1928, %v1940
        %v1943 = vadd.f32 %v1929, %v1941
        %v1944 = vld [vmem:[%s506] sm:$0xff]
        %v1945 = vld [vmem:[%s506 + $0x8] sm:$0xff]
        %s1946 = sld [smem:[#allocation8 + $0x58]]
        %v1947 = vstv %s1946
        %v1948 = vmul.f32 %v1947, %v1944
        %v1949 = vmul.f32 %v1947, %v1945
        %v1950 = vadd.f32 %v1936, %v1948
        %v1951 = vadd.f32 %v1937, %v1949
        %s1952 = sld [smem:[#allocation8 + $0x59]]
        %v1953 = vstv %s1952
        %v1954 = vmul.f32 %v1953, %v1944
        %v1955 = vmul.f32 %v1953, %v1945
        %v1956 = vadd.f32 %v1942, %v1954
        %v1957 = vadd.f32 %v1943, %v1955
        %v1958 = vld [vmem:[%s521] sm:$0xff]
        %v1959 = vld [vmem:[%s521 + $0x8] sm:$0xff]
        %s1960 = sld [smem:[#allocation8 + $0x68]]
        %v1961 = vstv %s1960
        %v1962 = vmul.f32 %v1961, %v1958
        %v1963 = vmul.f32 %v1961, %v1959
        %v1964 = vadd.f32 %v1950, %v1962
        %v1965 = vadd.f32 %v1951, %v1963
        %s1966 = sld [smem:[#allocation8 + $0x69]]
        %v1967 = vstv %s1966
        %v1968 = vmul.f32 %v1967, %v1958
        %v1969 = vmul.f32 %v1967, %v1959
        %v1970 = vadd.f32 %v1956, %v1968
        %v1971 = vadd.f32 %v1957, %v1969
        %v1972 = vld [vmem:[%s536] sm:$0xff]
        %v1973 = vld [vmem:[%s536 + $0x8] sm:$0xff]
        %s1974 = sld [smem:[#allocation8 + $0x78]]
        %v1975 = vstv %s1974
        %v1976 = vmul.f32 %v1975, %v1972
        %v1977 = vmul.f32 %v1975, %v1973
        %v1978 = vadd.f32 %v1964, %v1976
        %v1979 = vadd.f32 %v1965, %v1977
        %s1980 = sld [smem:[#allocation8 + $0x79]]
        %v1981 = vstv %s1980
        %v1982 = vmul.f32 %v1981, %v1972
        %v1983 = vmul.f32 %v1981, %v1973
        %v1984 = vadd.f32 %v1970, %v1982
        %v1985 = vadd.f32 %v1971, %v1983
        %v1987 = vsel %vm551, %v1984, 0
        %v1990 = vsel %vm551, %v1985, 0
        %1992 = vmatprep.subr.mxu0 0.0
        %1993 = vmatpush1.msra.mxu0 %v406
        %1994 = vmatprep.subr.mxu0 0.0
        %1995 = vmatpush1.msra.mxu0 %v407
        %1996 = vmatprep.subr.mxu0 0.0
        %1997 = vmatpush1.msra.mxu0 0.0
        %1998 = vmatprep.subr.mxu0 0.0
        %1999 = vmatpush1.msra.mxu0 0.0
        %2000 = vmatprep.subr.mxu0 0.0
        %2001 = vmatpush1.msra.mxu0 0.0
        %2002 = vmatprep.subr.mxu0 0.0
        %2003 = vmatpush1.msra.mxu0 0.0
        %2004 = vmatprep.subr.mxu0 0.0
        %2005 = vmatpush1.msra.mxu0 0.0
        %2006 = vmatprep.subr.mxu0 0.0
        %2007 = vmatpush1.msra.mxu0 0.0
        %2008 = vmatprep.subr.mxu0 0.0
        %2009 = vmatpush1.msra.mxu0 0.0
        %2010 = vmatprep.subr.mxu0 0.0
        %2011 = vmatpush1.msra.mxu0 0.0
        %2012 = vmatprep.subr.mxu0 0.0
        %2013 = vmatpush1.msra.mxu0 0.0
        %2014 = vmatprep.subr.mxu0 0.0
        %2015 = vmatpush1.msra.mxu0 0.0
        %2016 = vmatprep.subr.mxu0 0.0
        %2017 = vmatpush1.msra.mxu0 0.0
        %2018 = vmatprep.subr.mxu0 0.0
        %2019 = vmatpush1.msra.mxu0 0.0
        %2020 = vmatprep.subr.mxu0 0.0
        %2021 = vmatpush1.msra.mxu0 0.0
        %2022 = vmatprep.subr.mxu0 0.0
        %2023 = vmatpush1.msra.mxu0 0.0
        %2024 = vmatprep.subr.mxu0 0.0
        %2025 = vmatpush1.msra.mxu0 0.0
        %2026 = vmatprep.subr.mxu0 0.0
        %2027 = vmatpush1.msra.mxu0 0.0
        %2028 = vmatprep.subr.mxu0 0.0
        %2029 = vmatpush1.msra.mxu0 0.0
        %2030 = vmatprep.subr.mxu0 0.0
        %2031 = vmatpush1.msra.mxu0 0.0
        %2032 = vmatprep.subr.mxu0 0.0
        %2033 = vmatpush1.msra.mxu0 0.0
        %2034 = vmatprep.subr.mxu0 0.0
        %2035 = vmatpush1.msra.mxu0 0.0
        %2036 = vmatprep.subr.mxu0 0.0
        %2037 = vmatpush1.msra.mxu0 0.0
        %2038 = vmatprep.subr.mxu0 0.0
        %2039 = vmatpush1.msra.mxu0 0.0
        %2040 = vmatprep.subr.mxu0 0.0
        %2041 = vmatpush1.msra.mxu0 0.0
        %2042 = vmatprep.subr.mxu0 0.0
        %2043 = vmatpush1.msra.mxu0 0.0
        %2044 = vmatprep.subr.mxu0 0.0
        %2045 = vmatpush1.msra.mxu0 0.0
        %2046 = vmatprep.subr.mxu0 0.0
        %2047 = vmatpush1.msra.mxu0 0.0
        %2048 = vmatprep.subr.mxu0 0.0
        %2049 = vmatpush1.msra.mxu0 0.0
        %2050 = vmatprep.subr.mxu0 0.0
        %2051 = vmatpush1.msra.mxu0 0.0
        %2052 = vmatprep.subr.mxu0 0.0
        %2053 = vmatpush1.msra.mxu0 0.0
        %2054 = vmatprep.subr.mxu0 0.0
        %2055 = vmatpush1.msra.mxu0 0.0
        %2056 = vmatprep.mubr.f32.mxu0 0.0
        %2057 = vmatmul.mubr.f32.gmra.mrb[0].mxu0 %v1987
        %v2058 = vpop.f32.mrb[0].mxu0
        %v2059 = vadd.f32 0.0, %v2058
        %v2060 = vpop.f32.mrb[0].mxu0
        %2061 = vmatprep.mubr.f32.mxu0 0.0
        %2062 = vmatmul.mubr.f32.gmra.mrb[0].mxu0 %v1990
        %v2063 = vpop.f32.mrb[0].mxu0
        %v2064 = vadd.f32 0.0, %v2063
        %v2065 = vpop.f32.mrb[0].mxu0
        %2066 = vdwg.mxu0
        %v2068 = vsel %vm551, %v1978, 0
        %v2071 = vsel %vm551, %v1979, 0
        %2073 = vmatprep.subr.mxu0 0.0
        %2074 = vmatpush1.msra.mxu0 %v398
        %2075 = vmatprep.subr.mxu0 0.0
        %2076 = vmatpush1.msra.mxu0 %v399
        %2077 = vmatprep.subr.mxu0 0.0
        %2078 = vmatpush1.msra.mxu0 0.0
        %2079 = vmatprep.subr.mxu0 0.0
        %2080 = vmatpush1.msra.mxu0 0.0
        %2081 = vmatprep.subr.mxu0 0.0
        %2082 = vmatpush1.msra.mxu0 0.0
        %2083 = vmatprep.subr.mxu0 0.0
        %2084 = vmatpush1.msra.mxu0 0.0
        %2085 = vmatprep.subr.mxu0 0.0
        %2086 = vmatpush1.msra.mxu0 0.0
        %2087 = vmatprep.subr.mxu0 0.0
        %2088 = vmatpush1.msra.mxu0 0.0
        %2089 = vmatprep.subr.mxu0 0.0
        %2090 = vmatpush1.msra.mxu0 0.0
        %2091 = vmatprep.subr.mxu0 0.0
        %2092 = vmatpush1.msra.mxu0 0.0
        %2093 = vmatprep.subr.mxu0 0.0
        %2094 = vmatpush1.msra.mxu0 0.0
        %2095 = vmatprep.subr.mxu0 0.0
        %2096 = vmatpush1.msra.mxu0 0.0
        %2097 = vmatprep.subr.mxu0 0.0
        %2098 = vmatpush1.msra.mxu0 0.0
        %2099 = vmatprep.subr.mxu0 0.0
        %2100 = vmatpush1.msra.mxu0 0.0
        %2101 = vmatprep.subr.mxu0 0.0
        %2102 = vmatpush1.msra.mxu0 0.0
        %2103 = vmatprep.subr.mxu0 0.0
        %2104 = vmatpush1.msra.mxu0 0.0
        %2105 = vmatprep.subr.mxu0 0.0
        %2106 = vmatpush1.msra.mxu0 0.0
        %2107 = vmatprep.subr.mxu0 0.0
        %2108 = vmatpush1.msra.mxu0 0.0
        %2109 = vmatprep.subr.mxu0 0.0
        %2110 = vmatpush1.msra.mxu0 0.0
        %2111 = vmatprep.subr.mxu0 0.0
        %2112 = vmatpush1.msra.mxu0 0.0
        %2113 = vmatprep.subr.mxu0 0.0
        %2114 = vmatpush1.msra.mxu0 0.0
        %2115 = vmatprep.subr.mxu0 0.0
        %2116 = vmatpush1.msra.mxu0 0.0
        %2117 = vmatprep.subr.mxu0 0.0
        %2118 = vmatpush1.msra.mxu0 0.0
        %2119 = vmatprep.subr.mxu0 0.0
        %2120 = vmatpush1.msra.mxu0 0.0
        %2121 = vmatprep.subr.mxu0 0.0
        %2122 = vmatpush1.msra.mxu0 0.0
        %2123 = vmatprep.subr.mxu0 0.0
        %2124 = vmatpush1.msra.mxu0 0.0
        %2125 = vmatprep.subr.mxu0 0.0
        %2126 = vmatpush1.msra.mxu0 0.0
        %2127 = vmatprep.subr.mxu0 0.0
        %2128 = vmatpush1.msra.mxu0 0.0
        %2129 = vmatprep.subr.mxu0 0.0
        %2130 = vmatpush1.msra.mxu0 0.0
        %2131 = vmatprep.subr.mxu0 0.0
        %2132 = vmatpush1.msra.mxu0 0.0
        %2133 = vmatprep.subr.mxu0 0.0
        %2134 = vmatpush1.msra.mxu0 0.0
        %2135 = vmatprep.subr.mxu0 0.0
        %2136 = vmatpush1.msra.mxu0 0.0
        %2137 = vmatprep.mubr.f32.mxu0 0.0
        %2138 = vmatmul.mubr.f32.gmra.mrb[0].mxu0 %v2068
        %v2139 = vpop.f32.mrb[0].mxu0
        %v2140 = vadd.f32 %v2059, %v2139
        %v2141 = vpop.f32.mrb[0].mxu0
        %2142 = vmatprep.mubr.f32.mxu0 0.0
        %2143 = vmatmul.mubr.f32.gmra.mrb[0].mxu0 %v2071
        %v2144 = vpop.f32.mrb[0].mxu0
        %v2145 = vadd.f32 %v2064, %v2144
        %v2146 = vpop.f32.mrb[0].mxu0
        %2147 = vdwg.mxu0
        %s2148 = sld [smem:[#allocation8 + $0xa]]
        %v2149 = vstv %s2148
        %v2150 = vmul.f32 %v2149, %v1878
        %v2151 = vmul.f32 %v2149, %v1879
        %s2152 = sld [smem:[#allocation8 + $0xb]]
        %v2153 = vstv %s2152
        %v2154 = vmul.f32 %v2153, %v1878
        %v2155 = vmul.f32 %v2153, %v1879
        %s2156 = sld [smem:[#allocation8 + $0x1a]]
        %v2157 = vstv %s2156
        %v2158 = vmul.f32 %v2157, %v1888
        %v2159 = vmul.f32 %v2157, %v1889
        %v2160 = vadd.f32 %v2150, %v2158
        %v2161 = vadd.f32 %v2151, %v2159
        %s2162 = sld [smem:[#allocation8 + $0x1b]]
        %v2163 = vstv %s2162
        %v2164 = vmul.f32 %v2163, %v1888
        %v2165 = vmul.f32 %v2163, %v1889
        %v2166 = vadd.f32 %v2154, %v2164
        %v2167 = vadd.f32 %v2155, %v2165
        %s2168 = sld [smem:[#allocation8 + $0x2a]]
        %v2169 = vstv %s2168
        %v2170 = vmul.f32 %v2169, %v1902
        %v2171 = vmul.f32 %v2169, %v1903
        %v2172 = vadd.f32 %v2160, %v2170
        %v2173 = vadd.f32 %v2161, %v2171
        %s2174 = sld [smem:[#allocation8 + $0x2b]]
        %v2175 = vstv %s2174
        %v2176 = vmul.f32 %v2175, %v1902
        %v2177 = vmul.f32 %v2175, %v1903
        %v2178 = vadd.f32 %v2166, %v2176
        %v2179 = vadd.f32 %v2167, %v2177
        %s2180 = sld [smem:[#allocation8 + $0x3a]]
        %v2181 = vstv %s2180
        %v2182 = vmul.f32 %v2181, %v1916
        %v2183 = vmul.f32 %v2181, %v1917
        %v2184 = vadd.f32 %v2172, %v2182
        %v2185 = vadd.f32 %v2173, %v2183
        %s2186 = sld [smem:[#allocation8 + $0x3b]]
        %v2187 = vstv %s2186
        %v2188 = vmul.f32 %v2187, %v1916
        %v2189 = vmul.f32 %v2187, %v1917
        %v2190 = vadd.f32 %v2178, %v2188
        %v2191 = vadd.f32 %v2179, %v2189
        %s2192 = sld [smem:[#allocation8 + $0x4a]]
        %v2193 = vstv %s2192
        %v2194 = vmul.f32 %v2193, %v1930
        %v2195 = vmul.f32 %v2193, %v1931
        %v2196 = vadd.f32 %v2184, %v2194
        %v2197 = vadd.f32 %v2185, %v2195
        %s2198 = sld [smem:[#allocation8 + $0x4b]]
        %v2199 = vstv %s2198
        %v2200 = vmul.f32 %v2199, %v1930
        %v2201 = vmul.f32 %v2199, %v1931
        %v2202 = vadd.f32 %v2190, %v2200
        %v2203 = vadd.f32 %v2191, %v2201
        %s2204 = sld [smem:[#allocation8 + $0x5a]]
        %v2205 = vstv %s2204
        %v2206 = vmul.f32 %v2205, %v1944
        %v2207 = vmul.f32 %v2205, %v1945
        %v2208 = vadd.f32 %v2196, %v2206
        %v2209 = vadd.f32 %v2197, %v2207
        %s2210 = sld [smem:[#allocation8 + $0x5b]]
        %v2211 = vstv %s2210
        %v2212 = vmul.f32 %v2211, %v1944
        %v2213 = vmul.f32 %v2211, %v1945
        %v2214 = vadd.f32 %v2202, %v2212
        %v2215 = vadd.f32 %v2203, %v2213
        %s2216 = sld [smem:[#allocation8 + $0x6a]]
        %v2217 = vstv %s2216
        %v2218 = vmul.f32 %v2217, %v1958
        %v2219 = vmul.f32 %v2217, %v1959
        %v2220 = vadd.f32 %v2208, %v2218
        %v2221 = vadd.f32 %v2209, %v2219
        %s2222 = sld [smem:[#allocation8 + $0x6b]]
        %v2223 = vstv %s2222
        %v2224 = vmul.f32 %v2223, %v1958
        %v2225 = vmul.f32 %v2223, %v1959
        %v2226 = vadd.f32 %v2214, %v2224
        %v2227 = vadd.f32 %v2215, %v2225
        %s2228 = sld [smem:[#allocation8 + $0x7a]]
        %v2229 = vstv %s2228
        %v2230 = vmul.f32 %v2229, %v1972
        %v2231 = vmul.f32 %v2229, %v1973
        %v2232 = vadd.f32 %v2220, %v2230
        %v2233 = vadd.f32 %v2221, %v2231
        %s2234 = sld [smem:[#allocation8 + $0x7b]]
        %v2235 = vstv %s2234
        %v2236 = vmul.f32 %v2235, %v1972
        %v2237 = vmul.f32 %v2235, %v1973
        %v2238 = vadd.f32 %v2226, %v2236
        %v2239 = vadd.f32 %v2227, %v2237
        %v2241 = vsel %vm551, %v2238, 0
        %v2244 = vsel %vm551, %v2239, 0
        %2246 = vmatprep.subr.mxu0 0.0
        %2247 = vmatpush1.msra.mxu0 %v406
        %2248 = vmatprep.subr.mxu0 0.0
        %2249 = vmatpush1.msra.mxu0 %v407
        %2250 = vmatprep.subr.mxu0 0.0
        %2251 = vmatpush1.msra.mxu0 0.0
        %2252 = vmatprep.subr.mxu0 0.0
        %2253 = vmatpush1.msra.mxu0 0.0
        %2254 = vmatprep.subr.mxu0 0.0
        %2255 = vmatpush1.msra.mxu0 0.0
        %2256 = vmatprep.subr.mxu0 0.0
        %2257 = vmatpush1.msra.mxu0 0.0
        %2258 = vmatprep.subr.mxu0 0.0
        %2259 = vmatpush1.msra.mxu0 0.0
        %2260 = vmatprep.subr.mxu0 0.0
        %2261 = vmatpush1.msra.mxu0 0.0
        %2262 = vmatprep.subr.mxu0 0.0
        %2263 = vmatpush1.msra.mxu0 0.0
        %2264 = vmatprep.subr.mxu0 0.0
        %2265 = vmatpush1.msra.mxu0 0.0
        %2266 = vmatprep.subr.mxu0 0.0
        %2267 = vmatpush1.msra.mxu0 0.0
        %2268 = vmatprep.subr.mxu0 0.0
        %2269 = vmatpush1.msra.mxu0 0.0
        %2270 = vmatprep.subr.mxu0 0.0
        %2271 = vmatpush1.msra.mxu0 0.0
        %2272 = vmatprep.subr.mxu0 0.0
        %2273 = vmatpush1.msra.mxu0 0.0
        %2274 = vmatprep.subr.mxu0 0.0
        %2275 = vmatpush1.msra.mxu0 0.0
        %2276 = vmatprep.subr.mxu0 0.0
        %2277 = vmatpush1.msra.mxu0 0.0
        %2278 = vmatprep.subr.mxu0 0.0
        %2279 = vmatpush1.msra.mxu0 0.0
        %2280 = vmatprep.subr.mxu0 0.0
        %2281 = vmatpush1.msra.mxu0 0.0
        %2282 = vmatprep.subr.mxu0 0.0
        %2283 = vmatpush1.msra.mxu0 0.0
        %2284 = vmatprep.subr.mxu0 0.0
        %2285 = vmatpush1.msra.mxu0 0.0
        %2286 = vmatprep.subr.mxu0 0.0
        %2287 = vmatpush1.msra.mxu0 0.0
        %2288 = vmatprep.subr.mxu0 0.0
        %2289 = vmatpush1.msra.mxu0 0.0
        %2290 = vmatprep.subr.mxu0 0.0
        %2291 = vmatpush1.msra.mxu0 0.0
        %2292 = vmatprep.subr.mxu0 0.0
        %2293 = vmatpush1.msra.mxu0 0.0
        %2294 = vmatprep.subr.mxu0 0.0
        %2295 = vmatpush1.msra.mxu0 0.0
        %2296 = vmatprep.subr.mxu0 0.0
        %2297 = vmatpush1.msra.mxu0 0.0
        %2298 = vmatprep.subr.mxu0 0.0
        %2299 = vmatpush1.msra.mxu0 0.0
        %2300 = vmatprep.subr.mxu0 0.0
        %2301 = vmatpush1.msra.mxu0 0.0
        %2302 = vmatprep.subr.mxu0 0.0
        %2303 = vmatpush1.msra.mxu0 0.0
        %2304 = vmatprep.subr.mxu0 0.0
        %2305 = vmatpush1.msra.mxu0 0.0
        %2306 = vmatprep.subr.mxu0 0.0
        %2307 = vmatpush1.msra.mxu0 0.0
        %2308 = vmatprep.subr.mxu0 0.0
        %2309 = vmatpush1.msra.mxu0 0.0
        %2310 = vmatprep.mubr.f32.mxu0 0.0
        %2311 = vmatmul.mubr.f32.gmra.mrb[0].mxu0 %v2241
        %v2312 = vpop.f32.mrb[0].mxu0
        %v2313 = vadd.f32 0.0, %v2312
        %v2314 = vpop.f32.mrb[0].mxu0
        %2315 = vmatprep.mubr.f32.mxu0 0.0
        %2316 = vmatmul.mubr.f32.gmra.mrb[0].mxu0 %v2244
        %v2317 = vpop.f32.mrb[0].mxu0
        %v2318 = vadd.f32 0.0, %v2317
        %v2319 = vpop.f32.mrb[0].mxu0
        %2320 = vdwg.mxu0
        %v2322 = vsel %vm551, %v2232, 0
        %v2325 = vsel %vm551, %v2233, 0
        %2327 = vmatprep.subr.mxu0 0.0
        %2328 = vmatpush1.msra.mxu0 %v398
        %2329 = vmatprep.subr.mxu0 0.0
        %2330 = vmatpush1.msra.mxu0 %v399
        %2331 = vmatprep.subr.mxu0 0.0
        %2332 = vmatpush1.msra.mxu0 0.0
        %2333 = vmatprep.subr.mxu0 0.0
        %2334 = vmatpush1.msra.mxu0 0.0
        %2335 = vmatprep.subr.mxu0 0.0
        %2336 = vmatpush1.msra.mxu0 0.0
        %2337 = vmatprep.subr.mxu0 0.0
        %2338 = vmatpush1.msra.mxu0 0.0
        %2339 = vmatprep.subr.mxu0 0.0
        %2340 = vmatpush1.msra.mxu0 0.0
        %2341 = vmatprep.subr.mxu0 0.0
        %2342 = vmatpush1.msra.mxu0 0.0
        %2343 = vmatprep.subr.mxu0 0.0
        %2344 = vmatpush1.msra.mxu0 0.0
        %2345 = vmatprep.subr.mxu0 0.0
        %2346 = vmatpush1.msra.mxu0 0.0
        %2347 = vmatprep.subr.mxu0 0.0
        %2348 = vmatpush1.msra.mxu0 0.0
        %2349 = vmatprep.subr.mxu0 0.0
        %2350 = vmatpush1.msra.mxu0 0.0
        %2351 = vmatprep.subr.mxu0 0.0
        %2352 = vmatpush1.msra.mxu0 0.0
        %2353 = vmatprep.subr.mxu0 0.0
        %2354 = vmatpush1.msra.mxu0 0.0
        %2355 = vmatprep.subr.mxu0 0.0
        %2356 = vmatpush1.msra.mxu0 0.0
        %2357 = vmatprep.subr.mxu0 0.0
        %2358 = vmatpush1.msra.mxu0 0.0
        %2359 = vmatprep.subr.mxu0 0.0
        %2360 = vmatpush1.msra.mxu0 0.0
        %2361 = vmatprep.subr.mxu0 0.0
        %2362 = vmatpush1.msra.mxu0 0.0
        %2363 = vmatprep.subr.mxu0 0.0
        %2364 = vmatpush1.msra.mxu0 0.0
        %2365 = vmatprep.subr.mxu0 0.0
        %2366 = vmatpush1.msra.mxu0 0.0
        %2367 = vmatprep.subr.mxu0 0.0
        %2368 = vmatpush1.msra.mxu0 0.0
        %2369 = vmatprep.subr.mxu0 0.0
        %2370 = vmatpush1.msra.mxu0 0.0
        %2371 = vmatprep.subr.mxu0 0.0
        %2372 = vmatpush1.msra.mxu0 0.0
        %2373 = vmatprep.subr.mxu0 0.0
        %2374 = vmatpush1.msra.mxu0 0.0
        %2375 = vmatprep.subr.mxu0 0.0
        %2376 = vmatpush1.msra.mxu0 0.0
        %2377 = vmatprep.subr.mxu0 0.0
        %2378 = vmatpush1.msra.mxu0 0.0
        %2379 = vmatprep.subr.mxu0 0.0
        %2380 = vmatpush1.msra.mxu0 0.0
        %2381 = vmatprep.subr.mxu0 0.0
        %2382 = vmatpush1.msra.mxu0 0.0
        %2383 = vmatprep.subr.mxu0 0.0
        %2384 = vmatpush1.msra.mxu0 0.0
        %2385 = vmatprep.subr.mxu0 0.0
        %2386 = vmatpush1.msra.mxu0 0.0
        %2387 = vmatprep.subr.mxu0 0.0
        %2388 = vmatpush1.msra.mxu0 0.0
        %2389 = vmatprep.subr.mxu0 0.0
        %2390 = vmatpush1.msra.mxu0 0.0
        %2391 = vmatprep.mubr.f32.mxu0 0.0
        %2392 = vmatmul.mubr.f32.gmra.mrb[0].mxu0 %v2322
        %v2393 = vpop.f32.mrb[0].mxu0
        %v2394 = vadd.f32 %v2313, %v2393
        %v2395 = vpop.f32.mrb[0].mxu0
        %2396 = vmatprep.mubr.f32.mxu0 0.0
        %2397 = vmatmul.mubr.f32.gmra.mrb[0].mxu0 %v2325
        %v2398 = vpop.f32.mrb[0].mxu0
        %v2399 = vadd.f32 %v2318, %v2398
        %v2400 = vpop.f32.mrb[0].mxu0
        %2401 = vdwg.mxu0
        %2402 = vmatprep.subr.mxu0 0.0
        %2403 = vmatpush1.msra.mxu0 %v2394
        %2404 = vmatprep.subr.mxu0 0.0
        %2405 = vmatpush1.msra.mxu0 %v2399
        %2406 = vmatprep.subr.mxu0 0.0
        %2407 = vmatpush1.msra.mxu0 0.0
        %2408 = vmatprep.subr.mxu0 0.0
        %2409 = vmatpush1.msra.mxu0 0.0
        %2410 = vmatprep.subr.mxu0 0.0
        %2411 = vmatpush1.msra.mxu0 0.0
        %2412 = vmatprep.subr.mxu0 0.0
        %2413 = vmatpush1.msra.mxu0 0.0
        %2414 = vmatprep.subr.mxu0 0.0
        %2415 = vmatpush1.msra.mxu0 0.0
        %2416 = vmatprep.subr.mxu0 0.0
        %2417 = vmatpush1.msra.mxu0 0.0
        %2418 = vmatprep.subr.mxu0 0.0
        %2419 = vmatpush1.msra.mxu0 0.0
        %2420 = vmatprep.subr.mxu0 0.0
        %2421 = vmatpush1.msra.mxu0 0.0
        %2422 = vmatprep.subr.mxu0 0.0
        %2423 = vmatpush1.msra.mxu0 0.0
        %2424 = vmatprep.subr.mxu0 0.0
        %2425 = vmatpush1.msra.mxu0 0.0
        %2426 = vmatprep.subr.mxu0 0.0
        %2427 = vmatpush1.msra.mxu0 0.0
        %2428 = vmatprep.subr.mxu0 0.0
        %2429 = vmatpush1.msra.mxu0 0.0
        %2430 = vmatprep.subr.mxu0 0.0
        %2431 = vmatpush1.msra.mxu0 0.0
        %2432 = vmatprep.subr.mxu0 0.0
        %2433 = vmatpush1.msra.mxu0 0.0
        %2434 = vmatprep.subr.mxu0 0.0
        %2435 = vmatpush1.msra.mxu0 0.0
        %2436 = vmatprep.subr.mxu0 0.0
        %2437 = vmatpush1.msra.mxu0 0.0
        %2438 = vmatprep.subr.mxu0 0.0
        %2439 = vmatpush1.msra.mxu0 0.0
        %2440 = vmatprep.subr.mxu0 0.0
        %2441 = vmatpush1.msra.mxu0 0.0
        %2442 = vmatprep.subr.mxu0 0.0
        %2443 = vmatpush1.msra.mxu0 0.0
        %2444 = vmatprep.subr.mxu0 0.0
        %2445 = vmatpush1.msra.mxu0 0.0
        %2446 = vmatprep.subr.mxu0 0.0
        %2447 = vmatpush1.msra.mxu0 0.0
        %2448 = vmatprep.subr.mxu0 0.0
        %2449 = vmatpush1.msra.mxu0 0.0
        %2450 = vmatprep.subr.mxu0 0.0
        %2451 = vmatpush1.msra.mxu0 0.0
        %2452 = vmatprep.subr.mxu0 0.0
        %2453 = vmatpush1.msra.mxu0 0.0
        %2454 = vmatprep.subr.mxu0 0.0
        %2455 = vmatpush1.msra.mxu0 0.0
        %2456 = vmatprep.subr.mxu0 0.0
        %2457 = vmatpush1.msra.mxu0 0.0
        %2458 = vmatprep.subr.mxu0 0.0
        %2459 = vmatpush1.msra.mxu0 0.0
        %2460 = vmatprep.subr.mxu0 0.0
        %2461 = vmatpush1.msra.mxu0 0.0
        %2462 = vmatprep.subr.mxu0 0.0
        %2463 = vmatpush1.msra.mxu0 0.0
        %2464 = vmatprep.subr.mxu0 0.0
        %2465 = vmatpush1.msra.mxu0 0.0
        %2466 = vmatprep.mubr.f32.mxu0 0.0
        %2467 = vmatmul.mubr.f32.gmra.mrb[0].mxu0 %v969
        %v2468 = vpop.f32.mrb[0].mxu0
        %v2469 = vadd.f32 0.0, %v2468
        %v2470 = vpop.f32.mrb[0].mxu0
        %2471 = vmatprep.mubr.f32.mxu0 0.0
        %2472 = vmatmul.mubr.f32.gmra.mrb[0].mxu0 %v972
        %v2473 = vpop.f32.mrb[0].mxu0
        %v2474 = vadd.f32 0.0, %v2473
        %v2475 = vpop.f32.mrb[0].mxu0
        %2476 = vmatprep.mubr.f32.mxu0 0.0
        %2477 = vmatmul.mubr.f32.gmra.mrb[0].mxu0 %v975
        %v2478 = vpop.f32.mrb[0].mxu0
        %v2479 = vadd.f32 0.0, %v2478
        %v2480 = vpop.f32.mrb[0].mxu0
        %2481 = vmatprep.mubr.f32.mxu0 0.0
        %2482 = vmatmul.mubr.f32.gmra.mrb[0].mxu0 %v978
        %v2483 = vpop.f32.mrb[0].mxu0
        %v2484 = vadd.f32 0.0, %v2483
        %v2485 = vpop.f32.mrb[0].mxu0
        %2486 = vdwg.mxu0
        %2487 = vmatprep.subr.mxu0 0.0
        %2488 = vmatpush1.msra.mxu0 %v2140
        %2489 = vmatprep.subr.mxu0 0.0
        %2490 = vmatpush1.msra.mxu0 %v2145
        %2491 = vmatprep.subr.mxu0 0.0
        %2492 = vmatpush1.msra.mxu0 0.0
        %2493 = vmatprep.subr.mxu0 0.0
        %2494 = vmatpush1.msra.mxu0 0.0
        %2495 = vmatprep.subr.mxu0 0.0
        %2496 = vmatpush1.msra.mxu0 0.0
        %2497 = vmatprep.subr.mxu0 0.0
        %2498 = vmatpush1.msra.mxu0 0.0
        %2499 = vmatprep.subr.mxu0 0.0
        %2500 = vmatpush1.msra.mxu0 0.0
        %2501 = vmatprep.subr.mxu0 0.0
        %2502 = vmatpush1.msra.mxu0 0.0
        %2503 = vmatprep.subr.mxu0 0.0
        %2504 = vmatpush1.msra.mxu0 0.0
        %2505 = vmatprep.subr.mxu0 0.0
        %2506 = vmatpush1.msra.mxu0 0.0
        %2507 = vmatprep.subr.mxu0 0.0
        %2508 = vmatpush1.msra.mxu0 0.0
        %2509 = vmatprep.subr.mxu0 0.0
        %2510 = vmatpush1.msra.mxu0 0.0
        %2511 = vmatprep.subr.mxu0 0.0
        %2512 = vmatpush1.msra.mxu0 0.0
        %2513 = vmatprep.subr.mxu0 0.0
        %2514 = vmatpush1.msra.mxu0 0.0
        %2515 = vmatprep.subr.mxu0 0.0
        %2516 = vmatpush1.msra.mxu0 0.0
        %2517 = vmatprep.subr.mxu0 0.0
        %2518 = vmatpush1.msra.mxu0 0.0
        %2519 = vmatprep.subr.mxu0 0.0
        %2520 = vmatpush1.msra.mxu0 0.0
        %2521 = vmatprep.subr.mxu0 0.0
        %2522 = vmatpush1.msra.mxu0 0.0
        %2523 = vmatprep.subr.mxu0 0.0
        %2524 = vmatpush1.msra.mxu0 0.0
        %2525 = vmatprep.subr.mxu0 0.0
        %2526 = vmatpush1.msra.mxu0 0.0
        %2527 = vmatprep.subr.mxu0 0.0
        %2528 = vmatpush1.msra.mxu0 0.0
        %2529 = vmatprep.subr.mxu0 0.0
        %2530 = vmatpush1.msra.mxu0 0.0
        %2531 = vmatprep.subr.mxu0 0.0
        %2532 = vmatpush1.msra.mxu0 0.0
        %2533 = vmatprep.subr.mxu0 0.0
        %2534 = vmatpush1.msra.mxu0 0.0
        %2535 = vmatprep.subr.mxu0 0.0
        %2536 = vmatpush1.msra.mxu0 0.0
        %2537 = vmatprep.subr.mxu0 0.0
        %2538 = vmatpush1.msra.mxu0 0.0
        %2539 = vmatprep.subr.mxu0 0.0
        %2540 = vmatpush1.msra.mxu0 0.0
        %2541 = vmatprep.subr.mxu0 0.0
        %2542 = vmatpush1.msra.mxu0 0.0
        %2543 = vmatprep.subr.mxu0 0.0
        %2544 = vmatpush1.msra.mxu0 0.0
        %2545 = vmatprep.subr.mxu0 0.0
        %2546 = vmatpush1.msra.mxu0 0.0
        %2547 = vmatprep.subr.mxu0 0.0
        %2548 = vmatpush1.msra.mxu0 0.0
        %2549 = vmatprep.subr.mxu0 0.0
        %2550 = vmatpush1.msra.mxu0 0.0
        %2551 = vmatprep.mubr.f32.mxu0 0.0
        %2552 = vmatmul.mubr.f32.gmra.mrb[0].mxu0 %v1066
        %v2553 = vpop.f32.mrb[0].mxu0
        %v2554 = vadd.f32 %v2469, %v2553
        %v2555 = vpop.f32.mrb[0].mxu0
        %2556 = vmatprep.mubr.f32.mxu0 0.0
        %2557 = vmatmul.mubr.f32.gmra.mrb[0].mxu0 %v1069
        %v2558 = vpop.f32.mrb[0].mxu0
        %v2559 = vadd.f32 %v2474, %v2558
        %v2560 = vpop.f32.mrb[0].mxu0
        %2561 = vmatprep.mubr.f32.mxu0 0.0
        %2562 = vmatmul.mubr.f32.gmra.mrb[0].mxu0 %v1072
        %v2563 = vpop.f32.mrb[0].mxu0
        %v2564 = vadd.f32 %v2479, %v2563
        %v2565 = vpop.f32.mrb[0].mxu0
        %2566 = vmatprep.mubr.f32.mxu0 0.0
        %2567 = vmatmul.mubr.f32.gmra.mrb[0].mxu0 %v1075
        %v2568 = vpop.f32.mrb[0].mxu0
        %v2569 = vadd.f32 %v2484, %v2568
        %v2570 = vpop.f32.mrb[0].mxu0
        %2571 = vdwg.mxu0
        %s2572 = sld [smem:[#allocation9 + $0x2]]
        %v2573 = vstv %s2572
        %v2574 = vadd.f32 %v2554, %v2573
        %v2575 = vadd.f32 %v2559, %v2573
        %v2576 = vadd.f32 %v2564, %v2573
        %v2577 = vadd.f32 %v2569, %v2573
        %s2578 = scalar_lea.vmem %s383, 64 [#allocation14]
        %2579 = vst.msk [vmem:[%s2578] sm:$0xff] %vm1168, %v2574
        %2580 = vst.msk [vmem:[%s2578 + $0x8] sm:$0xff] %vm1168, %v2575
        %2581 = vst.msk [vmem:[%s2578 + $0x10] sm:$0xff] %vm1168, %v2576
        %2582 = vst.msk [vmem:[%s2578 + $0x18] sm:$0xff] %vm1168, %v2577
        %v2583 = vld [vmem:[%s324] sm:$0xff]
        %v2584 = vld [vmem:[%s324 + $0x8] sm:$0xff]
        %s2585 = sld [smem:[#allocation8 + $0xc]]
        %v2586 = vstv %s2585
        %v2587 = vmul.f32 %v2586, %v2583
        %v2588 = vmul.f32 %v2586, %v2584
        %s2589 = sld [smem:[#allocation8 + $0xd]]
        %v2590 = vstv %s2589
        %v2591 = vmul.f32 %v2590, %v2583
        %v2592 = vmul.f32 %v2590, %v2584
        %v2593 = vld [vmem:[%s446] sm:$0xff]
        %v2594 = vld [vmem:[%s446 + $0x8] sm:$0xff]
        %s2595 = sld [smem:[#allocation8 + $0x1c]]
        %v2596 = vstv %s2595
        %v2597 = vmul.f32 %v2596, %v2593
        %v2598 = vmul.f32 %v2596, %v2594
        %v2599 = vadd.f32 %v2587, %v2597
        %v2600 = vadd.f32 %v2588, %v2598
        %s2601 = sld [smem:[#allocation8 + $0x1d]]
        %v2602 = vstv %s2601
        %v2603 = vmul.f32 %v2602, %v2593
        %v2604 = vmul.f32 %v2602, %v2594
        %v2605 = vadd.f32 %v2591, %v2603
        %v2606 = vadd.f32 %v2592, %v2604
        %v2607 = vld [vmem:[%s461] sm:$0xff]
        %v2608 = vld [vmem:[%s461 + $0x8] sm:$0xff]
        %s2609 = sld [smem:[#allocation8 + $0x2c]]
        %v2610 = vstv %s2609
        %v2611 = vmul.f32 %v2610, %v2607
        %v2612 = vmul.f32 %v2610, %v2608
        %v2613 = vadd.f32 %v2599, %v2611
        %v2614 = vadd.f32 %v2600, %v2612
        %s2615 = sld [smem:[#allocation8 + $0x2d]]
        %v2616 = vstv %s2615
        %v2617 = vmul.f32 %v2616, %v2607
        %v2618 = vmul.f32 %v2616, %v2608
        %v2619 = vadd.f32 %v2605, %v2617
        %v2620 = vadd.f32 %v2606, %v2618
        %v2621 = vld [vmem:[%s476] sm:$0xff]
        %v2622 = vld [vmem:[%s476 + $0x8] sm:$0xff]
        %s2623 = sld [smem:[#allocation8 + $0x3c]]
        %v2624 = vstv %s2623
        %v2625 = vmul.f32 %v2624, %v2621
        %v2626 = vmul.f32 %v2624, %v2622
        %v2627 = vadd.f32 %v2613, %v2625
        %v2628 = vadd.f32 %v2614, %v2626
        %s2629 = sld [smem:[#allocation8 + $0x3d]]
        %v2630 = vstv %s2629
        %v2631 = vmul.f32 %v2630, %v2621
        %v2632 = vmul.f32 %v2630, %v2622
        %v2633 = vadd.f32 %v2619, %v2631
        %v2634 = vadd.f32 %v2620, %v2632
        %v2635 = vld [vmem:[%s491] sm:$0xff]
        %v2636 = vld [vmem:[%s491 + $0x8] sm:$0xff]
        %s2637 = sld [smem:[#allocation8 + $0x4c]]
        %v2638 = vstv %s2637
        %v2639 = vmul.f32 %v2638, %v2635
        %v2640 = vmul.f32 %v2638, %v2636
        %v2641 = vadd.f32 %v2627, %v2639
        %v2642 = vadd.f32 %v2628, %v2640
        %s2643 = sld [smem:[#allocation8 + $0x4d]]
        %v2644 = vstv %s2643
        %v2645 = vmul.f32 %v2644, %v2635
        %v2646 = vmul.f32 %v2644, %v2636
        %v2647 = vadd.f32 %v2633, %v2645
        %v2648 = vadd.f32 %v2634, %v2646
        %v2649 = vld [vmem:[%s506] sm:$0xff]
        %v2650 = vld [vmem:[%s506 + $0x8] sm:$0xff]
        %s2651 = sld [smem:[#allocation8 + $0x5c]]
        %v2652 = vstv %s2651
        %v2653 = vmul.f32 %v2652, %v2649
        %v2654 = vmul.f32 %v2652, %v2650
        %v2655 = vadd.f32 %v2641, %v2653
        %v2656 = vadd.f32 %v2642, %v2654
        %s2657 = sld [smem:[#allocation8 + $0x5d]]
        %v2658 = vstv %s2657
        %v2659 = vmul.f32 %v2658, %v2649
        %v2660 = vmul.f32 %v2658, %v2650
        %v2661 = vadd.f32 %v2647, %v2659
        %v2662 = vadd.f32 %v2648, %v2660
        %v2663 = vld [vmem:[%s521] sm:$0xff]
        %v2664 = vld [vmem:[%s521 + $0x8] sm:$0xff]
        %s2665 = sld [smem:[#allocation8 + $0x6c]]
        %v2666 = vstv %s2665
        %v2667 = vmul.f32 %v2666, %v2663
        %v2668 = vmul.f32 %v2666, %v2664
        %v2669 = vadd.f32 %v2655, %v2667
        %v2670 = vadd.f32 %v2656, %v2668
        %s2671 = sld [smem:[#allocation8 + $0x6d]]
        %v2672 = vstv %s2671
        %v2673 = vmul.f32 %v2672, %v2663
        %v2674 = vmul.f32 %v2672, %v2664
        %v2675 = vadd.f32 %v2661, %v2673
        %v2676 = vadd.f32 %v2662, %v2674
        %v2677 = vld [vmem:[%s536] sm:$0xff]
        %v2678 = vld [vmem:[%s536 + $0x8] sm:$0xff]
        %s2679 = sld [smem:[#allocation8 + $0x7c]]
        %v2680 = vstv %s2679
        %v2681 = vmul.f32 %v2680, %v2677
        %v2682 = vmul.f32 %v2680, %v2678
        %v2683 = vadd.f32 %v2669, %v2681
        %v2684 = vadd.f32 %v2670, %v2682
        %s2685 = sld [smem:[#allocation8 + $0x7d]]
        %v2686 = vstv %s2685
        %v2687 = vmul.f32 %v2686, %v2677
        %v2688 = vmul.f32 %v2686, %v2678
        %v2689 = vadd.f32 %v2675, %v2687
        %v2690 = vadd.f32 %v2676, %v2688
        %v2692 = vsel %vm551, %v2689, 0
        %v2695 = vsel %vm551, %v2690, 0
        %2697 = vmatprep.subr.mxu0 0.0
        %2698 = vmatpush1.msra.mxu0 %v406
        %2699 = vmatprep.subr.mxu0 0.0
        %2700 = vmatpush1.msra.mxu0 %v407
        %2701 = vmatprep.subr.mxu0 0.0
        %2702 = vmatpush1.msra.mxu0 0.0
        %2703 = vmatprep.subr.mxu0 0.0
        %2704 = vmatpush1.msra.mxu0 0.0
        %2705 = vmatprep.subr.mxu0 0.0
        %2706 = vmatpush1.msra.mxu0 0.0
        %2707 = vmatprep.subr.mxu0 0.0
        %2708 = vmatpush1.msra.mxu0 0.0
        %2709 = vmatprep.subr.mxu0 0.0
        %2710 = vmatpush1.msra.mxu0 0.0
        %2711 = vmatprep.subr.mxu0 0.0
        %2712 = vmatpush1.msra.mxu0 0.0
        %2713 = vmatprep.subr.mxu0 0.0
        %2714 = vmatpush1.msra.mxu0 0.0
        %2715 = vmatprep.subr.mxu0 0.0
        %2716 = vmatpush1.msra.mxu0 0.0
        %2717 = vmatprep.subr.mxu0 0.0
        %2718 = vmatpush1.msra.mxu0 0.0
        %2719 = vmatprep.subr.mxu0 0.0
        %2720 = vmatpush1.msra.mxu0 0.0
        %2721 = vmatprep.subr.mxu0 0.0
        %2722 = vmatpush1.msra.mxu0 0.0
        %2723 = vmatprep.subr.mxu0 0.0
        %2724 = vmatpush1.msra.mxu0 0.0
        %2725 = vmatprep.subr.mxu0 0.0
        %2726 = vmatpush1.msra.mxu0 0.0
        %2727 = vmatprep.subr.mxu0 0.0
        %2728 = vmatpush1.msra.mxu0 0.0
        %2729 = vmatprep.subr.mxu0 0.0
        %2730 = vmatpush1.msra.mxu0 0.0
        %2731 = vmatprep.subr.mxu0 0.0
        %2732 = vmatpush1.msra.mxu0 0.0
        %2733 = vmatprep.subr.mxu0 0.0
        %2734 = vmatpush1.msra.mxu0 0.0
        %2735 = vmatprep.subr.mxu0 0.0
        %2736 = vmatpush1.msra.mxu0 0.0
        %2737 = vmatprep.subr.mxu0 0.0
        %2738 = vmatpush1.msra.mxu0 0.0
        %2739 = vmatprep.subr.mxu0 0.0
        %2740 = vmatpush1.msra.mxu0 0.0
        %2741 = vmatprep.subr.mxu0 0.0
        %2742 = vmatpush1.msra.mxu0 0.0
        %2743 = vmatprep.subr.mxu0 0.0
        %2744 = vmatpush1.msra.mxu0 0.0
        %2745 = vmatprep.subr.mxu0 0.0
        %2746 = vmatpush1.msra.mxu0 0.0
        %2747 = vmatprep.subr.mxu0 0.0
        %2748 = vmatpush1.msra.mxu0 0.0
        %2749 = vmatprep.subr.mxu0 0.0
        %2750 = vmatpush1.msra.mxu0 0.0
        %2751 = vmatprep.subr.mxu0 0.0
        %2752 = vmatpush1.msra.mxu0 0.0
        %2753 = vmatprep.subr.mxu0 0.0
        %2754 = vmatpush1.msra.mxu0 0.0
        %2755 = vmatprep.subr.mxu0 0.0
        %2756 = vmatpush1.msra.mxu0 0.0
        %2757 = vmatprep.subr.mxu0 0.0
        %2758 = vmatpush1.msra.mxu0 0.0
        %2759 = vmatprep.subr.mxu0 0.0
        %2760 = vmatpush1.msra.mxu0 0.0
        %2761 = vmatprep.mubr.f32.mxu0 0.0
        %2762 = vmatmul.mubr.f32.gmra.mrb[0].mxu0 %v2692
        %v2763 = vpop.f32.mrb[0].mxu0
        %v2764 = vadd.f32 0.0, %v2763
        %v2765 = vpop.f32.mrb[0].mxu0
        %2766 = vmatprep.mubr.f32.mxu0 0.0
        %2767 = vmatmul.mubr.f32.gmra.mrb[0].mxu0 %v2695
        %v2768 = vpop.f32.mrb[0].mxu0
        %v2769 = vadd.f32 0.0, %v2768
        %v2770 = vpop.f32.mrb[0].mxu0
        %2771 = vdwg.mxu0
        %v2773 = vsel %vm551, %v2683, 0
        %v2776 = vsel %vm551, %v2684, 0
        %2778 = vmatprep.subr.mxu0 0.0
        %2779 = vmatpush1.msra.mxu0 %v398
        %2780 = vmatprep.subr.mxu0 0.0
        %2781 = vmatpush1.msra.mxu0 %v399
        %2782 = vmatprep.subr.mxu0 0.0
        %2783 = vmatpush1.msra.mxu0 0.0
        %2784 = vmatprep.subr.mxu0 0.0
        %2785 = vmatpush1.msra.mxu0 0.0
        %2786 = vmatprep.subr.mxu0 0.0
        %2787 = vmatpush1.msra.mxu0 0.0
        %2788 = vmatprep.subr.mxu0 0.0
        %2789 = vmatpush1.msra.mxu0 0.0
        %2790 = vmatprep.subr.mxu0 0.0
        %2791 = vmatpush1.msra.mxu0 0.0
        %2792 = vmatprep.subr.mxu0 0.0
        %2793 = vmatpush1.msra.mxu0 0.0
        %2794 = vmatprep.subr.mxu0 0.0
        %2795 = vmatpush1.msra.mxu0 0.0
        %2796 = vmatprep.subr.mxu0 0.0
        %2797 = vmatpush1.msra.mxu0 0.0
        %2798 = vmatprep.subr.mxu0 0.0
        %2799 = vmatpush1.msra.mxu0 0.0
        %2800 = vmatprep.subr.mxu0 0.0
        %2801 = vmatpush1.msra.mxu0 0.0
        %2802 = vmatprep.subr.mxu0 0.0
        %2803 = vmatpush1.msra.mxu0 0.0
        %2804 = vmatprep.subr.mxu0 0.0
        %2805 = vmatpush1.msra.mxu0 0.0
        %2806 = vmatprep.subr.mxu0 0.0
        %2807 = vmatpush1.msra.mxu0 0.0
        %2808 = vmatprep.subr.mxu0 0.0
        %2809 = vmatpush1.msra.mxu0 0.0
        %2810 = vmatprep.subr.mxu0 0.0
        %2811 = vmatpush1.msra.mxu0 0.0
        %2812 = vmatprep.subr.mxu0 0.0
        %2813 = vmatpush1.msra.mxu0 0.0
        %2814 = vmatprep.subr.mxu0 0.0
        %2815 = vmatpush1.msra.mxu0 0.0
        %2816 = vmatprep.subr.mxu0 0.0
        %2817 = vmatpush1.msra.mxu0 0.0
        %2818 = vmatprep.subr.mxu0 0.0
        %2819 = vmatpush1.msra.mxu0 0.0
        %2820 = vmatprep.subr.mxu0 0.0
        %2821 = vmatpush1.msra.mxu0 0.0
        %2822 = vmatprep.subr.mxu0 0.0
        %2823 = vmatpush1.msra.mxu0 0.0
        %2824 = vmatprep.subr.mxu0 0.0
        %2825 = vmatpush1.msra.mxu0 0.0
        %2826 = vmatprep.subr.mxu0 0.0
        %2827 = vmatpush1.msra.mxu0 0.0
        %2828 = vmatprep.subr.mxu0 0.0
        %2829 = vmatpush1.msra.mxu0 0.0
        %2830 = vmatprep.subr.mxu0 0.0
        %2831 = vmatpush1.msra.mxu0 0.0
        %2832 = vmatprep.subr.mxu0 0.0
        %2833 = vmatpush1.msra.mxu0 0.0
        %2834 = vmatprep.subr.mxu0 0.0
        %2835 = vmatpush1.msra.mxu0 0.0
        %2836 = vmatprep.subr.mxu0 0.0
        %2837 = vmatpush1.msra.mxu0 0.0
        %2838 = vmatprep.subr.mxu0 0.0
        %2839 = vmatpush1.msra.mxu0 0.0
        %2840 = vmatprep.subr.mxu0 0.0
        %2841 = vmatpush1.msra.mxu0 0.0
        %2842 = vmatprep.mubr.f32.mxu0 0.0
        %2843 = vmatmul.mubr.f32.gmra.mrb[0].mxu0 %v2773
        %v2844 = vpop.f32.mrb[0].mxu0
        %v2845 = vadd.f32 %v2764, %v2844
        %v2846 = vpop.f32.mrb[0].mxu0
        %2847 = vmatprep.mubr.f32.mxu0 0.0
        %2848 = vmatmul.mubr.f32.gmra.mrb[0].mxu0 %v2776
        %v2849 = vpop.f32.mrb[0].mxu0
        %v2850 = vadd.f32 %v2769, %v2849
        %v2851 = vpop.f32.mrb[0].mxu0
        %2852 = vdwg.mxu0
        %s2853 = sld [smem:[#allocation8 + $0xe]]
        %v2854 = vstv %s2853
        %v2855 = vmul.f32 %v2854, %v2583
        %v2856 = vmul.f32 %v2854, %v2584
        %s2857 = sld [smem:[#allocation8 + $0xf]]
        %v2858 = vstv %s2857
        %v2859 = vmul.f32 %v2858, %v2583
        %v2860 = vmul.f32 %v2858, %v2584
        %s2861 = sld [smem:[#allocation8 + $0x1e]]
        %v2862 = vstv %s2861
        %v2863 = vmul.f32 %v2862, %v2593
        %v2864 = vmul.f32 %v2862, %v2594
        %v2865 = vadd.f32 %v2855, %v2863
        %v2866 = vadd.f32 %v2856, %v2864
        %s2867 = sld [smem:[#allocation8 + $0x1f]]
        %v2868 = vstv %s2867
        %v2869 = vmul.f32 %v2868, %v2593
        %v2870 = vmul.f32 %v2868, %v2594
        %v2871 = vadd.f32 %v2859, %v2869
        %v2872 = vadd.f32 %v2860, %v2870
        %s2873 = sld [smem:[#allocation8 + $0x2e]]
        %v2874 = vstv %s2873
        %v2875 = vmul.f32 %v2874, %v2607
        %v2876 = vmul.f32 %v2874, %v2608
        %v2877 = vadd.f32 %v2865, %v2875
        %v2878 = vadd.f32 %v2866, %v2876
        %s2879 = sld [smem:[#allocation8 + $0x2f]]
        %v2880 = vstv %s2879
        %v2881 = vmul.f32 %v2880, %v2607
        %v2882 = vmul.f32 %v2880, %v2608
        %v2883 = vadd.f32 %v2871, %v2881
        %v2884 = vadd.f32 %v2872, %v2882
        %s2885 = sld [smem:[#allocation8 + $0x3e]]
        %v2886 = vstv %s2885
        %v2887 = vmul.f32 %v2886, %v2621
        %v2888 = vmul.f32 %v2886, %v2622
        %v2889 = vadd.f32 %v2877, %v2887
        %v2890 = vadd.f32 %v2878, %v2888
        %s2891 = sld [smem:[#allocation8 + $0x3f]]
        %v2892 = vstv %s2891
        %v2893 = vmul.f32 %v2892, %v2621
        %v2894 = vmul.f32 %v2892, %v2622
        %v2895 = vadd.f32 %v2883, %v2893
        %v2896 = vadd.f32 %v2884, %v2894
        %s2897 = sld [smem:[#allocation8 + $0x4e]]
        %v2898 = vstv %s2897
        %v2899 = vmul.f32 %v2898, %v2635
        %v2900 = vmul.f32 %v2898, %v2636
        %v2901 = vadd.f32 %v2889, %v2899
        %v2902 = vadd.f32 %v2890, %v2900
        %s2903 = sld [smem:[#allocation8 + $0x4f]]
        %v2904 = vstv %s2903
        %v2905 = vmul.f32 %v2904, %v2635
        %v2906 = vmul.f32 %v2904, %v2636
        %v2907 = vadd.f32 %v2895, %v2905
        %v2908 = vadd.f32 %v2896, %v2906
        %s2909 = sld [smem:[#allocation8 + $0x5e]]
        %v2910 = vstv %s2909
        %v2911 = vmul.f32 %v2910, %v2649
        %v2912 = vmul.f32 %v2910, %v2650
        %v2913 = vadd.f32 %v2901, %v2911
        %v2914 = vadd.f32 %v2902, %v2912
        %s2915 = sld [smem:[#allocation8 + $0x5f]]
        %v2916 = vstv %s2915
        %v2917 = vmul.f32 %v2916, %v2649
        %v2918 = vmul.f32 %v2916, %v2650
        %v2919 = vadd.f32 %v2907, %v2917
        %v2920 = vadd.f32 %v2908, %v2918
        %s2921 = sld [smem:[#allocation8 + $0x6e]]
        %v2922 = vstv %s2921
        %v2923 = vmul.f32 %v2922, %v2663
        %v2924 = vmul.f32 %v2922, %v2664
        %v2925 = vadd.f32 %v2913, %v2923
        %v2926 = vadd.f32 %v2914, %v2924
        %s2927 = sld [smem:[#allocation8 + $0x6f]]
        %v2928 = vstv %s2927
        %v2929 = vmul.f32 %v2928, %v2663
        %v2930 = vmul.f32 %v2928, %v2664
        %v2931 = vadd.f32 %v2919, %v2929
        %v2932 = vadd.f32 %v2920, %v2930
        %s2933 = sld [smem:[#allocation8 + $0x7e]]
        %v2934 = vstv %s2933
        %v2935 = vmul.f32 %v2934, %v2677
        %v2936 = vmul.f32 %v2934, %v2678
        %v2937 = vadd.f32 %v2925, %v2935
        %v2938 = vadd.f32 %v2926, %v2936
        %s2939 = sld [smem:[#allocation8 + $0x7f]]
        %v2940 = vstv %s2939
        %v2941 = vmul.f32 %v2940, %v2677
        %v2942 = vmul.f32 %v2940, %v2678
        %v2943 = vadd.f32 %v2931, %v2941
        %v2944 = vadd.f32 %v2932, %v2942
        %v2946 = vsel %vm551, %v2943, 0
        %v2949 = vsel %vm551, %v2944, 0
        %2951 = vmatprep.subr.mxu0 0.0
        %2952 = vmatpush1.msra.mxu0 %v406
        %2953 = vmatprep.subr.mxu0 0.0
        %2954 = vmatpush1.msra.mxu0 %v407
        %2955 = vmatprep.subr.mxu0 0.0
        %2956 = vmatpush1.msra.mxu0 0.0
        %2957 = vmatprep.subr.mxu0 0.0
        %2958 = vmatpush1.msra.mxu0 0.0
        %2959 = vmatprep.subr.mxu0 0.0
        %2960 = vmatpush1.msra.mxu0 0.0
        %2961 = vmatprep.subr.mxu0 0.0
        %2962 = vmatpush1.msra.mxu0 0.0
        %2963 = vmatprep.subr.mxu0 0.0
        %2964 = vmatpush1.msra.mxu0 0.0
        %2965 = vmatprep.subr.mxu0 0.0
        %2966 = vmatpush1.msra.mxu0 0.0
        %2967 = vmatprep.subr.mxu0 0.0
        %2968 = vmatpush1.msra.mxu0 0.0
        %2969 = vmatprep.subr.mxu0 0.0
        %2970 = vmatpush1.msra.mxu0 0.0
        %2971 = vmatprep.subr.mxu0 0.0
        %2972 = vmatpush1.msra.mxu0 0.0
        %2973 = vmatprep.subr.mxu0 0.0
        %2974 = vmatpush1.msra.mxu0 0.0
        %2975 = vmatprep.subr.mxu0 0.0
        %2976 = vmatpush1.msra.mxu0 0.0
        %2977 = vmatprep.subr.mxu0 0.0
        %2978 = vmatpush1.msra.mxu0 0.0
        %2979 = vmatprep.subr.mxu0 0.0
        %2980 = vmatpush1.msra.mxu0 0.0
        %2981 = vmatprep.subr.mxu0 0.0
        %2982 = vmatpush1.msra.mxu0 0.0
        %2983 = vmatprep.subr.mxu0 0.0
        %2984 = vmatpush1.msra.mxu0 0.0
        %2985 = vmatprep.subr.mxu0 0.0
        %2986 = vmatpush1.msra.mxu0 0.0
        %2987 = vmatprep.subr.mxu0 0.0
        %2988 = vmatpush1.msra.mxu0 0.0
        %2989 = vmatprep.subr.mxu0 0.0
        %2990 = vmatpush1.msra.mxu0 0.0
        %2991 = vmatprep.subr.mxu0 0.0
        %2992 = vmatpush1.msra.mxu0 0.0
        %2993 = vmatprep.subr.mxu0 0.0
        %2994 = vmatpush1.msra.mxu0 0.0
        %2995 = vmatprep.subr.mxu0 0.0
        %2996 = vmatpush1.msra.mxu0 0.0
        %2997 = vmatprep.subr.mxu0 0.0
        %2998 = vmatpush1.msra.mxu0 0.0
        %2999 = vmatprep.subr.mxu0 0.0
        %3000 = vmatpush1.msra.mxu0 0.0
        %3001 = vmatprep.subr.mxu0 0.0
        %3002 = vmatpush1.msra.mxu0 0.0
        %3003 = vmatprep.subr.mxu0 0.0
        %3004 = vmatpush1.msra.mxu0 0.0
        %3005 = vmatprep.subr.mxu0 0.0
        %3006 = vmatpush1.msra.mxu0 0.0
        %3007 = vmatprep.subr.mxu0 0.0
        %3008 = vmatpush1.msra.mxu0 0.0
        %3009 = vmatprep.subr.mxu0 0.0
        %3010 = vmatpush1.msra.mxu0 0.0
        %3011 = vmatprep.subr.mxu0 0.0
        %3012 = vmatpush1.msra.mxu0 0.0
        %3013 = vmatprep.subr.mxu0 0.0
        %3014 = vmatpush1.msra.mxu0 0.0
        %3015 = vmatprep.mubr.f32.mxu0 0.0
        %3016 = vmatmul.mubr.f32.gmra.mrb[0].mxu0 %v2946
        %v3017 = vpop.f32.mrb[0].mxu0
        %v3018 = vadd.f32 0.0, %v3017
        %v3019 = vpop.f32.mrb[0].mxu0
        %3020 = vmatprep.mubr.f32.mxu0 0.0
        %3021 = vmatmul.mubr.f32.gmra.mrb[0].mxu0 %v2949
        %v3022 = vpop.f32.mrb[0].mxu0
        %v3023 = vadd.f32 0.0, %v3022
        %v3024 = vpop.f32.mrb[0].mxu0
        %3025 = vdwg.mxu0
        %v3027 = vsel %vm551, %v2937, 0
        %v3030 = vsel %vm551, %v2938, 0
        %3032 = vmatprep.subr.mxu0 0.0
        %3033 = vmatpush1.msra.mxu0 %v398
        %3034 = vmatprep.subr.mxu0 0.0
        %3035 = vmatpush1.msra.mxu0 %v399
        %3036 = vmatprep.subr.mxu0 0.0
        %3037 = vmatpush1.msra.mxu0 0.0
        %3038 = vmatprep.subr.mxu0 0.0
        %3039 = vmatpush1.msra.mxu0 0.0
        %3040 = vmatprep.subr.mxu0 0.0
        %3041 = vmatpush1.msra.mxu0 0.0
        %3042 = vmatprep.subr.mxu0 0.0
        %3043 = vmatpush1.msra.mxu0 0.0
        %3044 = vmatprep.subr.mxu0 0.0
        %3045 = vmatpush1.msra.mxu0 0.0
        %3046 = vmatprep.subr.mxu0 0.0
        %3047 = vmatpush1.msra.mxu0 0.0
        %3048 = vmatprep.subr.mxu0 0.0
        %3049 = vmatpush1.msra.mxu0 0.0
        %3050 = vmatprep.subr.mxu0 0.0
        %3051 = vmatpush1.msra.mxu0 0.0
        %3052 = vmatprep.subr.mxu0 0.0
        %3053 = vmatpush1.msra.mxu0 0.0
        %3054 = vmatprep.subr.mxu0 0.0
        %3055 = vmatpush1.msra.mxu0 0.0
        %3056 = vmatprep.subr.mxu0 0.0
        %3057 = vmatpush1.msra.mxu0 0.0
        %3058 = vmatprep.subr.mxu0 0.0
        %3059 = vmatpush1.msra.mxu0 0.0
        %3060 = vmatprep.subr.mxu0 0.0
        %3061 = vmatpush1.msra.mxu0 0.0
        %3062 = vmatprep.subr.mxu0 0.0
        %3063 = vmatpush1.msra.mxu0 0.0
        %3064 = vmatprep.subr.mxu0 0.0
        %3065 = vmatpush1.msra.mxu0 0.0
        %3066 = vmatprep.subr.mxu0 0.0
        %3067 = vmatpush1.msra.mxu0 0.0
        %3068 = vmatprep.subr.mxu0 0.0
        %3069 = vmatpush1.msra.mxu0 0.0
        %3070 = vmatprep.subr.mxu0 0.0
        %3071 = vmatpush1.msra.mxu0 0.0
        %3072 = vmatprep.subr.mxu0 0.0
        %3073 = vmatpush1.msra.mxu0 0.0
        %3074 = vmatprep.subr.mxu0 0.0
        %3075 = vmatpush1.msra.mxu0 0.0
        %3076 = vmatprep.subr.mxu0 0.0
        %3077 = vmatpush1.msra.mxu0 0.0
        %3078 = vmatprep.subr.mxu0 0.0
        %3079 = vmatpush1.msra.mxu0 0.0
        %3080 = vmatprep.subr.mxu0 0.0
        %3081 = vmatpush1.msra.mxu0 0.0
        %3082 = vmatprep.subr.mxu0 0.0
        %3083 = vmatpush1.msra.mxu0 0.0
        %3084 = vmatprep.subr.mxu0 0.0
        %3085 = vmatpush1.msra.mxu0 0.0
        %3086 = vmatprep.subr.mxu0 0.0
        %3087 = vmatpush1.msra.mxu0 0.0
        %3088 = vmatprep.subr.mxu0 0.0
        %3089 = vmatpush1.msra.mxu0 0.0
        %3090 = vmatprep.subr.mxu0 0.0
        %3091 = vmatpush1.msra.mxu0 0.0
        %3092 = vmatprep.subr.mxu0 0.0
        %3093 = vmatpush1.msra.mxu0 0.0
        %3094 = vmatprep.subr.mxu0 0.0
        %3095 = vmatpush1.msra.mxu0 0.0
        %3096 = vmatprep.mubr.f32.mxu0 0.0
        %3097 = vmatmul.mubr.f32.gmra.mrb[0].mxu0 %v3027
        %v3098 = vpop.f32.mrb[0].mxu0
        %v3099 = vadd.f32 %v3018, %v3098
        %v3100 = vpop.f32.mrb[0].mxu0
        %3101 = vmatprep.mubr.f32.mxu0 0.0
        %3102 = vmatmul.mubr.f32.gmra.mrb[0].mxu0 %v3030
        %v3103 = vpop.f32.mrb[0].mxu0
        %v3104 = vadd.f32 %v3023, %v3103
        %v3105 = vpop.f32.mrb[0].mxu0
        %3106 = vdwg.mxu0
        %3107 = vmatprep.subr.mxu0 0.0
        %3108 = vmatpush1.msra.mxu0 %v3099
        %3109 = vmatprep.subr.mxu0 0.0
        %3110 = vmatpush1.msra.mxu0 %v3104
        %3111 = vmatprep.subr.mxu0 0.0
        %3112 = vmatpush1.msra.mxu0 0.0
        %3113 = vmatprep.subr.mxu0 0.0
        %3114 = vmatpush1.msra.mxu0 0.0
        %3115 = vmatprep.subr.mxu0 0.0
        %3116 = vmatpush1.msra.mxu0 0.0
        %3117 = vmatprep.subr.mxu0 0.0
        %3118 = vmatpush1.msra.mxu0 0.0
        %3119 = vmatprep.subr.mxu0 0.0
        %3120 = vmatpush1.msra.mxu0 0.0
        %3121 = vmatprep.subr.mxu0 0.0
        %3122 = vmatpush1.msra.mxu0 0.0
        %3123 = vmatprep.subr.mxu0 0.0
        %3124 = vmatpush1.msra.mxu0 0.0
        %3125 = vmatprep.subr.mxu0 0.0
        %3126 = vmatpush1.msra.mxu0 0.0
        %3127 = vmatprep.subr.mxu0 0.0
        %3128 = vmatpush1.msra.mxu0 0.0
        %3129 = vmatprep.subr.mxu0 0.0
        %3130 = vmatpush1.msra.mxu0 0.0
        %3131 = vmatprep.subr.mxu0 0.0
        %3132 = vmatpush1.msra.mxu0 0.0
        %3133 = vmatprep.subr.mxu0 0.0
        %3134 = vmatpush1.msra.mxu0 0.0
        %3135 = vmatprep.subr.mxu0 0.0
        %3136 = vmatpush1.msra.mxu0 0.0
        %3137 = vmatprep.subr.mxu0 0.0
        %3138 = vmatpush1.msra.mxu0 0.0
        %3139 = vmatprep.subr.mxu0 0.0
        %3140 = vmatpush1.msra.mxu0 0.0
        %3141 = vmatprep.subr.mxu0 0.0
        %3142 = vmatpush1.msra.mxu0 0.0
        %3143 = vmatprep.subr.mxu0 0.0
        %3144 = vmatpush1.msra.mxu0 0.0
        %3145 = vmatprep.subr.mxu0 0.0
        %3146 = vmatpush1.msra.mxu0 0.0
        %3147 = vmatprep.subr.mxu0 0.0
        %3148 = vmatpush1.msra.mxu0 0.0
        %3149 = vmatprep.subr.mxu0 0.0
        %3150 = vmatpush1.msra.mxu0 0.0
        %3151 = vmatprep.subr.mxu0 0.0
        %3152 = vmatpush1.msra.mxu0 0.0
        %3153 = vmatprep.subr.mxu0 0.0
        %3154 = vmatpush1.msra.mxu0 0.0
        %3155 = vmatprep.subr.mxu0 0.0
        %3156 = vmatpush1.msra.mxu0 0.0
        %3157 = vmatprep.subr.mxu0 0.0
        %3158 = vmatpush1.msra.mxu0 0.0
        %3159 = vmatprep.subr.mxu0 0.0
        %3160 = vmatpush1.msra.mxu0 0.0
        %3161 = vmatprep.subr.mxu0 0.0
        %3162 = vmatpush1.msra.mxu0 0.0
        %3163 = vmatprep.subr.mxu0 0.0
        %3164 = vmatpush1.msra.mxu0 0.0
        %3165 = vmatprep.subr.mxu0 0.0
        %3166 = vmatpush1.msra.mxu0 0.0
        %3167 = vmatprep.subr.mxu0 0.0
        %3168 = vmatpush1.msra.mxu0 0.0
        %3169 = vmatprep.subr.mxu0 0.0
        %3170 = vmatpush1.msra.mxu0 0.0
        %3171 = vmatprep.mubr.f32.mxu0 0.0
        %3172 = vmatmul.mubr.f32.gmra.mrb[0].mxu0 %v969
        %v3173 = vpop.f32.mrb[0].mxu0
        %v3174 = vadd.f32 0.0, %v3173
        %v3175 = vpop.f32.mrb[0].mxu0
        %3176 = vmatprep.mubr.f32.mxu0 0.0
        %3177 = vmatmul.mubr.f32.gmra.mrb[0].mxu0 %v972
        %v3178 = vpop.f32.mrb[0].mxu0
        %v3179 = vadd.f32 0.0, %v3178
        %v3180 = vpop.f32.mrb[0].mxu0
        %3181 = vmatprep.mubr.f32.mxu0 0.0
        %3182 = vmatmul.mubr.f32.gmra.mrb[0].mxu0 %v975
        %v3183 = vpop.f32.mrb[0].mxu0
        %v3184 = vadd.f32 0.0, %v3183
        %v3185 = vpop.f32.mrb[0].mxu0
        %3186 = vmatprep.mubr.f32.mxu0 0.0
        %3187 = vmatmul.mubr.f32.gmra.mrb[0].mxu0 %v978
        %v3188 = vpop.f32.mrb[0].mxu0
        %v3189 = vadd.f32 0.0, %v3188
        %v3190 = vpop.f32.mrb[0].mxu0
        %3191 = vdwg.mxu0
        %3192 = vmatprep.subr.mxu0 0.0
        %3193 = vmatpush1.msra.mxu0 %v2845
        %3194 = vmatprep.subr.mxu0 0.0
        %3195 = vmatpush1.msra.mxu0 %v2850
        %3196 = vmatprep.subr.mxu0 0.0
        %3197 = vmatpush1.msra.mxu0 0.0
        %3198 = vmatprep.subr.mxu0 0.0
        %3199 = vmatpush1.msra.mxu0 0.0
        %3200 = vmatprep.subr.mxu0 0.0
        %3201 = vmatpush1.msra.mxu0 0.0
        %3202 = vmatprep.subr.mxu0 0.0
        %3203 = vmatpush1.msra.mxu0 0.0
        %3204 = vmatprep.subr.mxu0 0.0
        %3205 = vmatpush1.msra.mxu0 0.0
        %3206 = vmatprep.subr.mxu0 0.0
        %3207 = vmatpush1.msra.mxu0 0.0
        %3208 = vmatprep.subr.mxu0 0.0
        %3209 = vmatpush1.msra.mxu0 0.0
        %3210 = vmatprep.subr.mxu0 0.0
        %3211 = vmatpush1.msra.mxu0 0.0
        %3212 = vmatprep.subr.mxu0 0.0
        %3213 = vmatpush1.msra.mxu0 0.0
        %3214 = vmatprep.subr.mxu0 0.0
        %3215 = vmatpush1.msra.mxu0 0.0
        %3216 = vmatprep.subr.mxu0 0.0
        %3217 = vmatpush1.msra.mxu0 0.0
        %3218 = vmatprep.subr.mxu0 0.0
        %3219 = vmatpush1.msra.mxu0 0.0
        %3220 = vmatprep.subr.mxu0 0.0
        %3221 = vmatpush1.msra.mxu0 0.0
        %3222 = vmatprep.subr.mxu0 0.0
        %3223 = vmatpush1.msra.mxu0 0.0
        %3224 = vmatprep.subr.mxu0 0.0
        %3225 = vmatpush1.msra.mxu0 0.0
        %3226 = vmatprep.subr.mxu0 0.0
        %3227 = vmatpush1.msra.mxu0 0.0
        %3228 = vmatprep.subr.mxu0 0.0
        %3229 = vmatpush1.msra.mxu0 0.0
        %3230 = vmatprep.subr.mxu0 0.0
        %3231 = vmatpush1.msra.mxu0 0.0
        %3232 = vmatprep.subr.mxu0 0.0
        %3233 = vmatpush1.msra.mxu0 0.0
        %3234 = vmatprep.subr.mxu0 0.0
        %3235 = vmatpush1.msra.mxu0 0.0
        %3236 = vmatprep.subr.mxu0 0.0
        %3237 = vmatpush1.msra.mxu0 0.0
        %3238 = vmatprep.subr.mxu0 0.0
        %3239 = vmatpush1.msra.mxu0 0.0
        %3240 = vmatprep.subr.mxu0 0.0
        %3241 = vmatpush1.msra.mxu0 0.0
        %3242 = vmatprep.subr.mxu0 0.0
        %3243 = vmatpush1.msra.mxu0 0.0
        %3244 = vmatprep.subr.mxu0 0.0
        %3245 = vmatpush1.msra.mxu0 0.0
        %3246 = vmatprep.subr.mxu0 0.0
        %3247 = vmatpush1.msra.mxu0 0.0
        %3248 = vmatprep.subr.mxu0 0.0
        %3249 = vmatpush1.msra.mxu0 0.0
        %3250 = vmatprep.subr.mxu0 0.0
        %3251 = vmatpush1.msra.mxu0 0.0
        %3252 = vmatprep.subr.mxu0 0.0
        %3253 = vmatpush1.msra.mxu0 0.0
        %3254 = vmatprep.subr.mxu0 0.0
        %3255 = vmatpush1.msra.mxu0 0.0
        %3256 = vmatprep.mubr.f32.mxu0 0.0
        %3257 = vmatmul.mubr.f32.gmra.mrb[0].mxu0 %v1066
        %v3258 = vpop.f32.mrb[0].mxu0
        %v3259 = vadd.f32 %v3174, %v3258
        %v3260 = vpop.f32.mrb[0].mxu0
        %3261 = vmatprep.mubr.f32.mxu0 0.0
        %3262 = vmatmul.mubr.f32.gmra.mrb[0].mxu0 %v1069
        %v3263 = vpop.f32.mrb[0].mxu0
        %v3264 = vadd.f32 %v3179, %v3263
        %v3265 = vpop.f32.mrb[0].mxu0
        %3266 = vmatprep.mubr.f32.mxu0 0.0
        %3267 = vmatmul.mubr.f32.gmra.mrb[0].mxu0 %v1072
        %v3268 = vpop.f32.mrb[0].mxu0
        %v3269 = vadd.f32 %v3184, %v3268
        %v3270 = vpop.f32.mrb[0].mxu0
        %3271 = vmatprep.mubr.f32.mxu0 0.0
        %3272 = vmatmul.mubr.f32.gmra.mrb[0].mxu0 %v1075
        %v3273 = vpop.f32.mrb[0].mxu0
        %v3274 = vadd.f32 %v3189, %v3273
        %v3275 = vpop.f32.mrb[0].mxu0
        %3276 = vdwg.mxu0
        %s3277 = sld [smem:[#allocation9 + $0x3]]
        %v3278 = vstv %s3277
        %v3279 = vadd.f32 %v3259, %v3278
        %v3280 = vadd.f32 %v3264, %v3278
        %v3281 = vadd.f32 %v3269, %v3278
        %v3282 = vadd.f32 %v3274, %v3278
        %s3283 = scalar_lea.vmem %s383, 96 [#allocation14]
        %3284 = vst.msk [vmem:[%s3283] sm:$0xff] %vm1168, %v3279
        %3285 = vst.msk [vmem:[%s3283 + $0x8] sm:$0xff] %vm1168, %v3280
        %3286 = vst.msk [vmem:[%s3283 + $0x10] sm:$0xff] %vm1168, %v3281
        %3287 = vst.msk [vmem:[%s3283 + $0x18] sm:$0xff] %vm1168, %v3282
        %s3288 = sld [smem:[#allocation11]]
        %v3289 = vld [vmem:[%s333] sm:$0xff]
        %v3290 = vld [vmem:[%s333 + $0x8] sm:$0xff]
        %v3291 = vld [vmem:[%s333 + $0x10] sm:$0xff]
        %v3292 = vld [vmem:[%s333 + $0x18] sm:$0xff]
        %v3293 = vstv %s3288
        %v3294 = vmul.f32 %v3293, %v3289
        %v3295 = vmul.f32 %v3293, %v3290
        %v3296 = vmul.f32 %v3293, %v3291
        %v3297 = vmul.f32 %v3293, %v3292
        %s3298 = sld [smem:[#allocation11 + $0x1]]
        %s3299 = scalar_lea.vmem %s333, 32 [#allocation6]
        %v3300 = vld [vmem:[%s3299] sm:$0xff]
        %v3301 = vld [vmem:[%s3299 + $0x8] sm:$0xff]
        %v3302 = vld [vmem:[%s3299 + $0x10] sm:$0xff]
        %v3303 = vld [vmem:[%s3299 + $0x18] sm:$0xff]
        %v3304 = vstv %s3298
        %v3305 = vmul.f32 %v3304, %v3300
        %v3306 = vmul.f32 %v3304, %v3301
        %v3307 = vmul.f32 %v3304, %v3302
        %v3308 = vmul.f32 %v3304, %v3303
        %v3309 = vadd.f32 %v3294, %v3305
        %v3310 = vadd.f32 %v3295, %v3306
        %v3311 = vadd.f32 %v3296, %v3307
        %v3312 = vadd.f32 %v3297, %v3308
        %s3313 = sld [smem:[#allocation11 + $0x2]]
        %s3314 = scalar_lea.vmem %s333, 64 [#allocation6]
        %v3315 = vld [vmem:[%s3314] sm:$0xff]
        %v3316 = vld [vmem:[%s3314 + $0x8] sm:$0xff]
        %v3317 = vld [vmem:[%s3314 + $0x10] sm:$0xff]
        %v3318 = vld [vmem:[%s3314 + $0x18] sm:$0xff]
        %v3319 = vstv %s3313
        %v3320 = vmul.f32 %v3319, %v3315
        %v3321 = vmul.f32 %v3319, %v3316
        %v3322 = vmul.f32 %v3319, %v3317
        %v3323 = vmul.f32 %v3319, %v3318
        %v3324 = vadd.f32 %v3309, %v3320
        %v3325 = vadd.f32 %v3310, %v3321
        %v3326 = vadd.f32 %v3311, %v3322
        %v3327 = vadd.f32 %v3312, %v3323
        %s3328 = sld [smem:[#allocation11 + $0x3]]
        %s3329 = scalar_lea.vmem %s333, 96 [#allocation6]
        %v3330 = vld [vmem:[%s3329] sm:$0xff]
        %v3331 = vld [vmem:[%s3329 + $0x8] sm:$0xff]
        %v3332 = vld [vmem:[%s3329 + $0x10] sm:$0xff]
        %v3333 = vld [vmem:[%s3329 + $0x18] sm:$0xff]
        %v3334 = vstv %s3328
        %v3335 = vmul.f32 %v3334, %v3330
        %v3336 = vmul.f32 %v3334, %v3331
        %v3337 = vmul.f32 %v3334, %v3332
        %v3338 = vmul.f32 %v3334, %v3333
        %v3339 = vadd.f32 %v3324, %v3335
        %v3340 = vadd.f32 %v3325, %v3336
        %v3341 = vadd.f32 %v3326, %v3337
        %v3342 = vadd.f32 %v3327, %v3338
        %s3343 = sld [smem:[#allocation11 + $0x4]]
        %s3344 = scalar_lea.vmem %s333, 128 [#allocation6]
        %v3345 = vld [vmem:[%s3344] sm:$0xff]
        %v3346 = vld [vmem:[%s3344 + $0x8] sm:$0xff]
        %v3347 = vld [vmem:[%s3344 + $0x10] sm:$0xff]
        %v3348 = vld [vmem:[%s3344 + $0x18] sm:$0xff]
        %v3349 = vstv %s3343
        %v3350 = vmul.f32 %v3349, %v3345
        %v3351 = vmul.f32 %v3349, %v3346
        %v3352 = vmul.f32 %v3349, %v3347
        %v3353 = vmul.f32 %v3349, %v3348
        %v3354 = vadd.f32 %v3339, %v3350
        %v3355 = vadd.f32 %v3340, %v3351
        %v3356 = vadd.f32 %v3341, %v3352
        %v3357 = vadd.f32 %v3342, %v3353
        %s3358 = sld [smem:[#allocation11 + $0x5]]
        %s3359 = scalar_lea.vmem %s333, 160 [#allocation6]
        %v3360 = vld [vmem:[%s3359] sm:$0xff]
        %v3361 = vld [vmem:[%s3359 + $0x8] sm:$0xff]
        %v3362 = vld [vmem:[%s3359 + $0x10] sm:$0xff]
        %v3363 = vld [vmem:[%s3359 + $0x18] sm:$0xff]
        %v3364 = vstv %s3358
        %v3365 = vmul.f32 %v3364, %v3360
        %v3366 = vmul.f32 %v3364, %v3361
        %v3367 = vmul.f32 %v3364, %v3362
        %v3368 = vmul.f32 %v3364, %v3363
        %v3369 = vadd.f32 %v3354, %v3365
        %v3370 = vadd.f32 %v3355, %v3366
        %v3371 = vadd.f32 %v3356, %v3367
        %v3372 = vadd.f32 %v3357, %v3368
        %s3373 = sld [smem:[#allocation11 + $0x6]]
        %s3374 = scalar_lea.vmem %s333, 192 [#allocation6]
        %v3375 = vld [vmem:[%s3374] sm:$0xff]
        %v3376 = vld [vmem:[%s3374 + $0x8] sm:$0xff]
        %v3377 = vld [vmem:[%s3374 + $0x10] sm:$0xff]
        %v3378 = vld [vmem:[%s3374 + $0x18] sm:$0xff]
        %v3379 = vstv %s3373
        %v3380 = vmul.f32 %v3379, %v3375
        %v3381 = vmul.f32 %v3379, %v3376
        %v3382 = vmul.f32 %v3379, %v3377
        %v3383 = vmul.f32 %v3379, %v3378
        %v3384 = vadd.f32 %v3369, %v3380
        %v3385 = vadd.f32 %v3370, %v3381
        %v3386 = vadd.f32 %v3371, %v3382
        %v3387 = vadd.f32 %v3372, %v3383
        %s3388 = sld [smem:[#allocation11 + $0x7]]
        %s3389 = scalar_lea.vmem %s333, 224 [#allocation6]
        %v3390 = vld [vmem:[%s3389] sm:$0xff]
        %v3391 = vld [vmem:[%s3389 + $0x8] sm:$0xff]
        %v3392 = vld [vmem:[%s3389 + $0x10] sm:$0xff]
        %v3393 = vld [vmem:[%s3389 + $0x18] sm:$0xff]
        %v3394 = vstv %s3388
        %v3395 = vmul.f32 %v3394, %v3390
        %v3396 = vmul.f32 %v3394, %v3391
        %v3397 = vmul.f32 %v3394, %v3392
        %v3398 = vmul.f32 %v3394, %v3393
        %v3399 = vadd.f32 %v3384, %v3395
        %v3400 = vadd.f32 %v3385, %v3396
        %v3401 = vadd.f32 %v3386, %v3397
        %v3402 = vadd.f32 %v3387, %v3398
        %s3403 = sld [smem:[#allocation12]]
        %v3404 = vstv %s3403
        %v3405 = vadd.f32 %v3399, %v3404
        %v3406 = vadd.f32 %v3400, %v3404
        %v3407 = vadd.f32 %v3401, %v3404
        %v3408 = vadd.f32 %v3402, %v3404
        %s3409 = scalar_lea.vmem %s383, 128 [#allocation14]
        %3410 = vst.msk [vmem:[%s3409] sm:$0xff] %vm1168, %v3405
        %3411 = vst.msk [vmem:[%s3409 + $0x8] sm:$0xff] %vm1168, %v3406
        %3412 = vst.msk [vmem:[%s3409 + $0x10] sm:$0xff] %vm1168, %v3407
        %3413 = vst.msk [vmem:[%s3409 + $0x18] sm:$0xff] %vm1168, %v3408
        %s3414 = sld [smem:[#allocation11 + $0x8]]
        %v3415 = vld [vmem:[%s333] sm:$0xff]
        %v3416 = vld [vmem:[%s333 + $0x8] sm:$0xff]
        %v3417 = vld [vmem:[%s333 + $0x10] sm:$0xff]
        %v3418 = vld [vmem:[%s333 + $0x18] sm:$0xff]
        %v3419 = vstv %s3414
        %v3420 = vmul.f32 %v3419, %v3415
        %v3421 = vmul.f32 %v3419, %v3416
        %v3422 = vmul.f32 %v3419, %v3417
        %v3423 = vmul.f32 %v3419, %v3418
        %s3424 = sld [smem:[#allocation11 + $0x9]]
        %v3425 = vld [vmem:[%s3299] sm:$0xff]
        %v3426 = vld [vmem:[%s3299 + $0x8] sm:$0xff]
        %v3427 = vld [vmem:[%s3299 + $0x10] sm:$0xff]
        %v3428 = vld [vmem:[%s3299 + $0x18] sm:$0xff]
        %v3429 = vstv %s3424
        %v3430 = vmul.f32 %v3429, %v3425
        %v3431 = vmul.f32 %v3429, %v3426
        %v3432 = vmul.f32 %v3429, %v3427
        %v3433 = vmul.f32 %v3429, %v3428
        %v3434 = vadd.f32 %v3420, %v3430
        %v3435 = vadd.f32 %v3421, %v3431
        %v3436 = vadd.f32 %v3422, %v3432
        %v3437 = vadd.f32 %v3423, %v3433
        %s3438 = sld [smem:[#allocation11 + $0xa]]
        %v3439 = vld [vmem:[%s3314] sm:$0xff]
        %v3440 = vld [vmem:[%s3314 + $0x8] sm:$0xff]
        %v3441 = vld [vmem:[%s3314 + $0x10] sm:$0xff]
        %v3442 = vld [vmem:[%s3314 + $0x18] sm:$0xff]
        %v3443 = vstv %s3438
        %v3444 = vmul.f32 %v3443, %v3439
        %v3445 = vmul.f32 %v3443, %v3440
        %v3446 = vmul.f32 %v3443, %v3441
        %v3447 = vmul.f32 %v3443, %v3442
        %v3448 = vadd.f32 %v3434, %v3444
        %v3449 = vadd.f32 %v3435, %v3445
        %v3450 = vadd.f32 %v3436, %v3446
        %v3451 = vadd.f32 %v3437, %v3447
        %s3452 = sld [smem:[#allocation11 + $0xb]]
        %v3453 = vld [vmem:[%s3329] sm:$0xff]
        %v3454 = vld [vmem:[%s3329 + $0x8] sm:$0xff]
        %v3455 = vld [vmem:[%s3329 + $0x10] sm:$0xff]
        %v3456 = vld [vmem:[%s3329 + $0x18] sm:$0xff]
        %v3457 = vstv %s3452
        %v3458 = vmul.f32 %v3457, %v3453
        %v3459 = vmul.f32 %v3457, %v3454
        %v3460 = vmul.f32 %v3457, %v3455
        %v3461 = vmul.f32 %v3457, %v3456
        %v3462 = vadd.f32 %v3448, %v3458
        %v3463 = vadd.f32 %v3449, %v3459
        %v3464 = vadd.f32 %v3450, %v3460
        %v3465 = vadd.f32 %v3451, %v3461
        %s3466 = sld [smem:[#allocation11 + $0xc]]
        %v3467 = vld [vmem:[%s3344] sm:$0xff]
        %v3468 = vld [vmem:[%s3344 + $0x8] sm:$0xff]
        %v3469 = vld [vmem:[%s3344 + $0x10] sm:$0xff]
        %v3470 = vld [vmem:[%s3344 + $0x18] sm:$0xff]
        %v3471 = vstv %s3466
        %v3472 = vmul.f32 %v3471, %v3467
        %v3473 = vmul.f32 %v3471, %v3468
        %v3474 = vmul.f32 %v3471, %v3469
        %v3475 = vmul.f32 %v3471, %v3470
        %v3476 = vadd.f32 %v3462, %v3472
        %v3477 = vadd.f32 %v3463, %v3473
        %v3478 = vadd.f32 %v3464, %v3474
        %v3479 = vadd.f32 %v3465, %v3475
        %s3480 = sld [smem:[#allocation11 + $0xd]]
        %v3481 = vld [vmem:[%s3359] sm:$0xff]
        %v3482 = vld [vmem:[%s3359 + $0x8] sm:$0xff]
        %v3483 = vld [vmem:[%s3359 + $0x10] sm:$0xff]
        %v3484 = vld [vmem:[%s3359 + $0x18] sm:$0xff]
        %v3485 = vstv %s3480
        %v3486 = vmul.f32 %v3485, %v3481
        %v3487 = vmul.f32 %v3485, %v3482
        %v3488 = vmul.f32 %v3485, %v3483
        %v3489 = vmul.f32 %v3485, %v3484
        %v3490 = vadd.f32 %v3476, %v3486
        %v3491 = vadd.f32 %v3477, %v3487
        %v3492 = vadd.f32 %v3478, %v3488
        %v3493 = vadd.f32 %v3479, %v3489
        %s3494 = sld [smem:[#allocation11 + $0xe]]
        %v3495 = vld [vmem:[%s3374] sm:$0xff]
        %v3496 = vld [vmem:[%s3374 + $0x8] sm:$0xff]
        %v3497 = vld [vmem:[%s3374 + $0x10] sm:$0xff]
        %v3498 = vld [vmem:[%s3374 + $0x18] sm:$0xff]
        %v3499 = vstv %s3494
        %v3500 = vmul.f32 %v3499, %v3495
        %v3501 = vmul.f32 %v3499, %v3496
        %v3502 = vmul.f32 %v3499, %v3497
        %v3503 = vmul.f32 %v3499, %v3498
        %v3504 = vadd.f32 %v3490, %v3500
        %v3505 = vadd.f32 %v3491, %v3501
        %v3506 = vadd.f32 %v3492, %v3502
        %v3507 = vadd.f32 %v3493, %v3503
        %s3508 = sld [smem:[#allocation11 + $0xf]]
        %v3509 = vld [vmem:[%s3389] sm:$0xff]
        %v3510 = vld [vmem:[%s3389 + $0x8] sm:$0xff]
        %v3511 = vld [vmem:[%s3389 + $0x10] sm:$0xff]
        %v3512 = vld [vmem:[%s3389 + $0x18] sm:$0xff]
        %v3513 = vstv %s3508
        %v3514 = vmul.f32 %v3513, %v3509
        %v3515 = vmul.f32 %v3513, %v3510
        %v3516 = vmul.f32 %v3513, %v3511
        %v3517 = vmul.f32 %v3513, %v3512
        %v3518 = vadd.f32 %v3504, %v3514
        %v3519 = vadd.f32 %v3505, %v3515
        %v3520 = vadd.f32 %v3506, %v3516
        %v3521 = vadd.f32 %v3507, %v3517
        %s3522 = sld [smem:[#allocation12 + $0x1]]
        %v3523 = vstv %s3522
        %v3524 = vadd.f32 %v3518, %v3523
        %v3525 = vadd.f32 %v3519, %v3523
        %v3526 = vadd.f32 %v3520, %v3523
        %v3527 = vadd.f32 %v3521, %v3523
        %s3528 = scalar_lea.vmem %s383, 160 [#allocation14]
        %3529 = vst.msk [vmem:[%s3528] sm:$0xff] %vm1168, %v3524
        %3530 = vst.msk [vmem:[%s3528 + $0x8] sm:$0xff] %vm1168, %v3525
        %3531 = vst.msk [vmem:[%s3528 + $0x10] sm:$0xff] %vm1168, %v3526
        %3532 = vst.msk [vmem:[%s3528 + $0x18] sm:$0xff] %vm1168, %v3527
        %s3533 = sld [smem:[#allocation11 + $0x10]]
        %v3534 = vld [vmem:[%s333] sm:$0xff]
        %v3535 = vld [vmem:[%s333 + $0x8] sm:$0xff]
        %v3536 = vld [vmem:[%s333 + $0x10] sm:$0xff]
        %v3537 = vld [vmem:[%s333 + $0x18] sm:$0xff]
        %v3538 = vstv %s3533
        %v3539 = vmul.f32 %v3538, %v3534
        %v3540 = vmul.f32 %v3538, %v3535
        %v3541 = vmul.f32 %v3538, %v3536
        %v3542 = vmul.f32 %v3538, %v3537
        %s3543 = sld [smem:[#allocation11 + $0x11]]
        %v3544 = vld [vmem:[%s3299] sm:$0xff]
        %v3545 = vld [vmem:[%s3299 + $0x8] sm:$0xff]
        %v3546 = vld [vmem:[%s3299 + $0x10] sm:$0xff]
        %v3547 = vld [vmem:[%s3299 + $0x18] sm:$0xff]
        %v3548 = vstv %s3543
        %v3549 = vmul.f32 %v3548, %v3544
        %v3550 = vmul.f32 %v3548, %v3545
        %v3551 = vmul.f32 %v3548, %v3546
        %v3552 = vmul.f32 %v3548, %v3547
        %v3553 = vadd.f32 %v3539, %v3549
        %v3554 = vadd.f32 %v3540, %v3550
        %v3555 = vadd.f32 %v3541, %v3551
        %v3556 = vadd.f32 %v3542, %v3552
        %s3557 = sld [smem:[#allocation11 + $0x12]]
        %v3558 = vld [vmem:[%s3314] sm:$0xff]
        %v3559 = vld [vmem:[%s3314 + $0x8] sm:$0xff]
        %v3560 = vld [vmem:[%s3314 + $0x10] sm:$0xff]
        %v3561 = vld [vmem:[%s3314 + $0x18] sm:$0xff]
        %v3562 = vstv %s3557
        %v3563 = vmul.f32 %v3562, %v3558
        %v3564 = vmul.f32 %v3562, %v3559
        %v3565 = vmul.f32 %v3562, %v3560
        %v3566 = vmul.f32 %v3562, %v3561
        %v3567 = vadd.f32 %v3553, %v3563
        %v3568 = vadd.f32 %v3554, %v3564
        %v3569 = vadd.f32 %v3555, %v3565
        %v3570 = vadd.f32 %v3556, %v3566
        %s3571 = sld [smem:[#allocation11 + $0x13]]
        %v3572 = vld [vmem:[%s3329] sm:$0xff]
        %v3573 = vld [vmem:[%s3329 + $0x8] sm:$0xff]
        %v3574 = vld [vmem:[%s3329 + $0x10] sm:$0xff]
        %v3575 = vld [vmem:[%s3329 + $0x18] sm:$0xff]
        %v3576 = vstv %s3571
        %v3577 = vmul.f32 %v3576, %v3572
        %v3578 = vmul.f32 %v3576, %v3573
        %v3579 = vmul.f32 %v3576, %v3574
        %v3580 = vmul.f32 %v3576, %v3575
        %v3581 = vadd.f32 %v3567, %v3577
        %v3582 = vadd.f32 %v3568, %v3578
        %v3583 = vadd.f32 %v3569, %v3579
        %v3584 = vadd.f32 %v3570, %v3580
        %s3585 = sld [smem:[#allocation11 + $0x14]]
        %v3586 = vld [vmem:[%s3344] sm:$0xff]
        %v3587 = vld [vmem:[%s3344 + $0x8] sm:$0xff]
        %v3588 = vld [vmem:[%s3344 + $0x10] sm:$0xff]
        %v3589 = vld [vmem:[%s3344 + $0x18] sm:$0xff]
        %v3590 = vstv %s3585
        %v3591 = vmul.f32 %v3590, %v3586
        %v3592 = vmul.f32 %v3590, %v3587
        %v3593 = vmul.f32 %v3590, %v3588
        %v3594 = vmul.f32 %v3590, %v3589
        %v3595 = vadd.f32 %v3581, %v3591
        %v3596 = vadd.f32 %v3582, %v3592
        %v3597 = vadd.f32 %v3583, %v3593
        %v3598 = vadd.f32 %v3584, %v3594
        %s3599 = sld [smem:[#allocation11 + $0x15]]
        %v3600 = vld [vmem:[%s3359] sm:$0xff]
        %v3601 = vld [vmem:[%s3359 + $0x8] sm:$0xff]
        %v3602 = vld [vmem:[%s3359 + $0x10] sm:$0xff]
        %v3603 = vld [vmem:[%s3359 + $0x18] sm:$0xff]
        %v3604 = vstv %s3599
        %v3605 = vmul.f32 %v3604, %v3600
        %v3606 = vmul.f32 %v3604, %v3601
        %v3607 = vmul.f32 %v3604, %v3602
        %v3608 = vmul.f32 %v3604, %v3603
        %v3609 = vadd.f32 %v3595, %v3605
        %v3610 = vadd.f32 %v3596, %v3606
        %v3611 = vadd.f32 %v3597, %v3607
        %v3612 = vadd.f32 %v3598, %v3608
        %s3613 = sld [smem:[#allocation11 + $0x16]]
        %v3614 = vld [vmem:[%s3374] sm:$0xff]
        %v3615 = vld [vmem:[%s3374 + $0x8] sm:$0xff]
        %v3616 = vld [vmem:[%s3374 + $0x10] sm:$0xff]
        %v3617 = vld [vmem:[%s3374 + $0x18] sm:$0xff]
        %v3618 = vstv %s3613
        %v3619 = vmul.f32 %v3618, %v3614
        %v3620 = vmul.f32 %v3618, %v3615
        %v3621 = vmul.f32 %v3618, %v3616
        %v3622 = vmul.f32 %v3618, %v3617
        %v3623 = vadd.f32 %v3609, %v3619
        %v3624 = vadd.f32 %v3610, %v3620
        %v3625 = vadd.f32 %v3611, %v3621
        %v3626 = vadd.f32 %v3612, %v3622
        %s3627 = sld [smem:[#allocation11 + $0x17]]
        %v3628 = vld [vmem:[%s3389] sm:$0xff]
        %v3629 = vld [vmem:[%s3389 + $0x8] sm:$0xff]
        %v3630 = vld [vmem:[%s3389 + $0x10] sm:$0xff]
        %v3631 = vld [vmem:[%s3389 + $0x18] sm:$0xff]
        %v3632 = vstv %s3627
        %v3633 = vmul.f32 %v3632, %v3628
        %v3634 = vmul.f32 %v3632, %v3629
        %v3635 = vmul.f32 %v3632, %v3630
        %v3636 = vmul.f32 %v3632, %v3631
        %v3637 = vadd.f32 %v3623, %v3633
        %v3638 = vadd.f32 %v3624, %v3634
        %v3639 = vadd.f32 %v3625, %v3635
        %v3640 = vadd.f32 %v3626, %v3636
        %s3641 = sld [smem:[#allocation12 + $0x2]]
        %v3642 = vstv %s3641
        %v3643 = vadd.f32 %v3637, %v3642
        %v3644 = vadd.f32 %v3638, %v3642
        %v3645 = vadd.f32 %v3639, %v3642
        %v3646 = vadd.f32 %v3640, %v3642
        %s3647 = scalar_lea.vmem %s383, 192 [#allocation14]
        %3648 = vst.msk [vmem:[%s3647] sm:$0xff] %vm1168, %v3643
        %3649 = vst.msk [vmem:[%s3647 + $0x8] sm:$0xff] %vm1168, %v3644
        %3650 = vst.msk [vmem:[%s3647 + $0x10] sm:$0xff] %vm1168, %v3645
        %3651 = vst.msk [vmem:[%s3647 + $0x18] sm:$0xff] %vm1168, %v3646
        %s3652 = sld [smem:[#allocation11 + $0x18]]
        %v3653 = vld [vmem:[%s333] sm:$0xff]
        %v3654 = vld [vmem:[%s333 + $0x8] sm:$0xff]
        %v3655 = vld [vmem:[%s333 + $0x10] sm:$0xff]
        %v3656 = vld [vmem:[%s333 + $0x18] sm:$0xff]
        %v3657 = vstv %s3652
        %v3658 = vmul.f32 %v3657, %v3653
        %v3659 = vmul.f32 %v3657, %v3654
        %v3660 = vmul.f32 %v3657, %v3655
        %v3661 = vmul.f32 %v3657, %v3656
        %s3662 = sld [smem:[#allocation11 + $0x19]]
        %v3663 = vld [vmem:[%s3299] sm:$0xff]
        %v3664 = vld [vmem:[%s3299 + $0x8] sm:$0xff]
        %v3665 = vld [vmem:[%s3299 + $0x10] sm:$0xff]
        %v3666 = vld [vmem:[%s3299 + $0x18] sm:$0xff]
        %v3667 = vstv %s3662
        %v3668 = vmul.f32 %v3667, %v3663
        %v3669 = vmul.f32 %v3667, %v3664
        %v3670 = vmul.f32 %v3667, %v3665
        %v3671 = vmul.f32 %v3667, %v3666
        %v3672 = vadd.f32 %v3658, %v3668
        %v3673 = vadd.f32 %v3659, %v3669
        %v3674 = vadd.f32 %v3660, %v3670
        %v3675 = vadd.f32 %v3661, %v3671
        %s3676 = sld [smem:[#allocation11 + $0x1a]]
        %v3677 = vld [vmem:[%s3314] sm:$0xff]
        %v3678 = vld [vmem:[%s3314 + $0x8] sm:$0xff]
        %v3679 = vld [vmem:[%s3314 + $0x10] sm:$0xff]
        %v3680 = vld [vmem:[%s3314 + $0x18] sm:$0xff]
        %v3681 = vstv %s3676
        %v3682 = vmul.f32 %v3681, %v3677
        %v3683 = vmul.f32 %v3681, %v3678
        %v3684 = vmul.f32 %v3681, %v3679
        %v3685 = vmul.f32 %v3681, %v3680
        %v3686 = vadd.f32 %v3672, %v3682
        %v3687 = vadd.f32 %v3673, %v3683
        %v3688 = vadd.f32 %v3674, %v3684
        %v3689 = vadd.f32 %v3675, %v3685
        %s3690 = sld [smem:[#allocation11 + $0x1b]]
        %v3691 = vld [vmem:[%s3329] sm:$0xff]
        %v3692 = vld [vmem:[%s3329 + $0x8] sm:$0xff]
        %v3693 = vld [vmem:[%s3329 + $0x10] sm:$0xff]
        %v3694 = vld [vmem:[%s3329 + $0x18] sm:$0xff]
        %v3695 = vstv %s3690
        %v3696 = vmul.f32 %v3695, %v3691
        %v3697 = vmul.f32 %v3695, %v3692
        %v3698 = vmul.f32 %v3695, %v3693
        %v3699 = vmul.f32 %v3695, %v3694
        %v3700 = vadd.f32 %v3686, %v3696
        %v3701 = vadd.f32 %v3687, %v3697
        %v3702 = vadd.f32 %v3688, %v3698
        %v3703 = vadd.f32 %v3689, %v3699
        %s3704 = sld [smem:[#allocation11 + $0x1c]]
        %v3705 = vld [vmem:[%s3344] sm:$0xff]
        %v3706 = vld [vmem:[%s3344 + $0x8] sm:$0xff]
        %v3707 = vld [vmem:[%s3344 + $0x10] sm:$0xff]
        %v3708 = vld [vmem:[%s3344 + $0x18] sm:$0xff]
        %v3709 = vstv %s3704
        %v3710 = vmul.f32 %v3709, %v3705
        %v3711 = vmul.f32 %v3709, %v3706
        %v3712 = vmul.f32 %v3709, %v3707
        %v3713 = vmul.f32 %v3709, %v3708
        %v3714 = vadd.f32 %v3700, %v3710
        %v3715 = vadd.f32 %v3701, %v3711
        %v3716 = vadd.f32 %v3702, %v3712
        %v3717 = vadd.f32 %v3703, %v3713
        %s3718 = sld [smem:[#allocation11 + $0x1d]]
        %v3719 = vld [vmem:[%s3359] sm:$0xff]
        %v3720 = vld [vmem:[%s3359 + $0x8] sm:$0xff]
        %v3721 = vld [vmem:[%s3359 + $0x10] sm:$0xff]
        %v3722 = vld [vmem:[%s3359 + $0x18] sm:$0xff]
        %v3723 = vstv %s3718
        %v3724 = vmul.f32 %v3723, %v3719
        %v3725 = vmul.f32 %v3723, %v3720
        %v3726 = vmul.f32 %v3723, %v3721
        %v3727 = vmul.f32 %v3723, %v3722
        %v3728 = vadd.f32 %v3714, %v3724
        %v3729 = vadd.f32 %v3715, %v3725
        %v3730 = vadd.f32 %v3716, %v3726
        %v3731 = vadd.f32 %v3717, %v3727
        %s3732 = sld [smem:[#allocation11 + $0x1e]]
        %v3733 = vld [vmem:[%s3374] sm:$0xff]
        %v3734 = vld [vmem:[%s3374 + $0x8] sm:$0xff]
        %v3735 = vld [vmem:[%s3374 + $0x10] sm:$0xff]
        %v3736 = vld [vmem:[%s3374 + $0x18] sm:$0xff]
        %v3737 = vstv %s3732
        %v3738 = vmul.f32 %v3737, %v3733
        %v3739 = vmul.f32 %v3737, %v3734
        %v3740 = vmul.f32 %v3737, %v3735
        %v3741 = vmul.f32 %v3737, %v3736
        %v3742 = vadd.f32 %v3728, %v3738
        %v3743 = vadd.f32 %v3729, %v3739
        %v3744 = vadd.f32 %v3730, %v3740
        %v3745 = vadd.f32 %v3731, %v3741
        %s3746 = sld [smem:[#allocation11 + $0x1f]]
        %v3747 = vld [vmem:[%s3389] sm:$0xff]
        %v3748 = vld [vmem:[%s3389 + $0x8] sm:$0xff]
        %v3749 = vld [vmem:[%s3389 + $0x10] sm:$0xff]
        %v3750 = vld [vmem:[%s3389 + $0x18] sm:$0xff]
        %v3751 = vstv %s3746
        %v3752 = vmul.f32 %v3751, %v3747
        %v3753 = vmul.f32 %v3751, %v3748
        %v3754 = vmul.f32 %v3751, %v3749
        %v3755 = vmul.f32 %v3751, %v3750
        %v3756 = vadd.f32 %v3742, %v3752
        %v3757 = vadd.f32 %v3743, %v3753
        %v3758 = vadd.f32 %v3744, %v3754
        %v3759 = vadd.f32 %v3745, %v3755
        %s3760 = sld [smem:[#allocation12 + $0x3]]
        %v3761 = vstv %s3760
        %v3762 = vadd.f32 %v3756, %v3761
        %v3763 = vadd.f32 %v3757, %v3761
        %v3764 = vadd.f32 %v3758, %v3761
        %v3765 = vadd.f32 %v3759, %v3761
        %s3766 = scalar_lea.vmem %s383, 224 [#allocation14]
        %3767 = vst.msk [vmem:[%s3766] sm:$0xff] %vm1168, %v3762
        %3768 = vst.msk [vmem:[%s3766 + $0x8] sm:$0xff] %vm1168, %v3763
        %3769 = vst.msk [vmem:[%s3766 + $0x10] sm:$0xff] %vm1168, %v3764
        %3770 = vst.msk [vmem:[%s3766 + $0x18] sm:$0xff] %vm1168, %v3765
        %s3771 = sand.u32 %s191, 1
        %s3772 = scalar_lea.sflag [#allocation4], %s3771
        %s3773 = sand.u32 %s191, 1
        %s3774 = smul.addr %s3773, 256
        %s3775 = scalar_lea.vmem [#allocation14], %s3774
        // Predicated region
        $region69: #{residual_upsample.1} parent=43 // pred_check
          %p3776 = pneg %p201
        $region70: #{residual_upsample.1} parent=43 // pred_check_branch
          %3778 = sbr.rel (%p3776) target = $region72
        $region71: #{residual_upsample.1} parent=43 // pred_region
          %s3779 = smul.u32 4, %s34
          %s3781 = ssub.s32 4096, 4096
          %3782 = vsyncadd %s3772, %s3781
          %s3783 = smul.addr %s33, 32
          %s3784 = sadd.s32 %s3779, %s3783
          %s3785 = smul.addr %s3784, 128
          %s3786 = scalar_lea.hbm %s6, %s3785
          %s3787 = sshll.u32 %s3775, 4
          %s3788 = int_to_ptr.vmem [resolvable:$true] %s3787
          %3793 = dma.vmem_to_hbm [thread:$0]  %s3788, 4096, %s3786, %s3772, 128, 128, 8
        $region72: #{residual_upsample.1} parent=43 // pred_fallthru
          _
      $region44: #{residual_upsample.1} parent=5 // pred_fallthru
        _
      %p3794 = scmp.le.s32.totalorder 2, %s24
      // Predicated region
      $region73: #{residual_upsample.1} parent=5 // pred_check
        %p3795 = pneg %p3794
      $region74: #{residual_upsample.1} parent=5 // pred_check_branch
        %3797 = sbr.rel (%p3795) target = $region76
      $region75: #{residual_upsample.1} parent=5 // pred_region
        %s3798 = ssub.s32 %s24, 2
        // Predicated region
        $region77: #{residual_upsample.1} parent=75 // pred_check
          %p3799 = pneg %p207
        $region78: #{residual_upsample.1} parent=75 // pred_check_branch
          %3801 = sbr.rel (%p3799) target = $region80
        $region79: #{residual_upsample.1} parent=75 // pred_region
          %s3802 = sand.u32 %s192, 1
          %s3803 = scalar_lea.sflag [#allocation4], %s3802
          %s3804 = sand.u32 %s192, 1
          %s3805 = smul.addr %s3804, 256
          %s3806 = scalar_lea.vmem [#allocation14], %s3805
          %3807 = dma.done %s3803, 4096
        $region80: #{residual_upsample.1} parent=75 // pred_fallthru
          _
      $region76: #{residual_upsample.1} parent=5 // pred_fallthru
        _
    $region6: #{residual_upsample.1} parent=1 // loop_footer
      %s28 = sadd.s32 1, %s24
    $region7: #{residual_upsample.1} parent=1 // loop_footer_branch
      %23 = sbr.rel target = $region3
    $region8: #{residual_upsample.1} parent=1 // loop_exit
      _
    %3808 = vsyncpa [#allocation3], 1
    %s3809 = scalar_lea.sflag [#allocation3], 1
    %3810 = vsyncpa %s3809, 1
    %3811 = vsyncpa [#allocation7], 1
    %s3812 = scalar_lea.sflag [#allocation7], 1
    %3813 = vsyncpa %s3812, 1
    %3814 = vsyncpa [#allocation4], 1
    %s3815 = scalar_lea.sflag [#allocation4], 1
    %3816 = vsyncpa %s3815, 1
    %3817 = vsyncpa [#allocation5], 1
    %s3818 = scalar_lea.sflag [#allocation5], 1
    %3819 = vsyncpa %s3818, 1
    %3820 = vsyncpa [#allocation10], 1
    %3821 = vsyncpa [#allocation13], 1

</llo_original>
